<compile_context>
chip_gen: v5e
topology: v5e:2x2
jax: 0.10.0
libtpu: 0.0.40
codegen_flags: <defaults>
</compile_context>

<pallas_src>
import functools

import jax
import jax.numpy as jnp
from jax.experimental import pallas as pl
from jax.experimental.pallas import tpu as pltpu


# --------------------------------------------------------------------------------------
# Fused Pallas kernel: all LSTM layers (fwd+bwd fused) + MLP head in one invocation.
#
# Gate layout ("interleaved"): the 8H gate columns are [i_f,i_b | f_f,f_b | g_f,g_b | o_f,o_b]
# (each block H wide), so both directions are updated with 4 slices of width 2H and the
# carried state h = [h_fwd | h_bwd] never needs to be split or concatenated.
# --------------------------------------------------------------------------------------
def _fused_lstm_kernel(
    x_ref,                                   # (T*B, d_in)  time-major, flattened
    mp1_ref, mq1_ref, b1_ref, whh1_ref,      # layer 1 packed weights
    mpr_ref, mqr_ref, br_ref, whhr_ref,      # layers 2..L packed weights (stacked)
    hw1_ref, hb1_ref, hw2_ref, hb2_ref,      # MLP head
    out_ref,                                 # (n_rows, d_out)
    p_scr, q_scr, seq_scr, feat_scr,         # VMEM scratch
    *, T, B, H, nb_layers,
):
    f32 = jnp.float32

    def run_layer(whh, store_seq):
        # whh: (2H, 8H) block-structured recurrent weights, loaded ONCE (hoisted).
        h = jnp.zeros((B, 2 * H), f32)       # [h_fwd | h_bwd], carried in vregs
        c = jnp.zeros((B, 2 * H), f32)
        for t in range(T):                   # static unroll: T is small and known at trace time
            # Hoisted input projections: fwd reads seq position t, bwd reads T-1-t.
            gx = p_scr[pl.ds(t * B, B), :] + q_scr[pl.ds((T - 1 - t) * B, B), :]
            gates = jnp.dot(h, whh, preferred_element_type=f32) + gx      # (B, 8H)
            i_g = jax.nn.sigmoid(gates[:, 0 * 2 * H:1 * 2 * H])
            f_g = jax.nn.sigmoid(gates[:, 1 * 2 * H:2 * 2 * H])
            g_g = jnp.tanh(gates[:, 2 * 2 * H:3 * 2 * H])
            o_g = jax.nn.sigmoid(gates[:, 3 * 2 * H:4 * 2 * H])
            c = f_g * c + i_g * g_g
            h = o_g * jnp.tanh(c)
            if store_seq:
                # Processing-order per-step output: [fwd(t) | bwd(T-1-t)]
                seq_scr[pl.ds(t * B, B), :] = h
        return h

    # ---------------- layer 1: input projection hoisted out of the recurrence ----------
    x = x_ref[...]                                                         # (T*B, d_in)
    p_scr[...] = jnp.dot(x, mp1_ref[...], preferred_element_type=f32) + b1_ref[...]
    q_scr[...] = jnp.dot(x, mq1_ref[...], preferred_element_type=f32)
    h_last = run_layer(whh1_ref[...], store_seq=nb_layers > 1)

    # ---------------- layers 2..L -------------------------------------------------------
    for l in range(nb_layers - 1):
        seq = seq_scr[...]                   # previous layer's processing-order outputs
        p_scr[...] = jnp.dot(seq, mpr_ref[l], preferred_element_type=f32) + br_ref[l]
        q_scr[...] = jnp.dot(seq, mqr_ref[l], preferred_element_type=f32)
        h_last = run_layer(whhr_ref[l], store_seq=l < nb_layers - 2)

    # ---------------- build torch's h_n[-layer].reshape(-1, 2H) feature matrix ----------
    # h_last = [h_fwd_final | h_bwd_final] per batch row; torch flattens (2, B, H) row-major.
    seq_scr[pl.ds(0, B), :] = h_last         # park final states in VMEM for sliced reads
    for d in range(2):                       # 0 = fwd final hidden, 1 = bwd final hidden
        for b in range(B):
            flat = (d * B + b) * H
            r, col = flat // (2 * H), flat % (2 * H)
            feat_scr[pl.ds(r, 1), pl.ds(col, H)] = seq_scr[pl.ds(b, 1), pl.ds(d * H, H)]

    # ---------------- MLP head epilogue: Linear -> LeakyReLU(0.01) -> Linear ------------
    feat = feat_scr[...]
    hid = jnp.dot(feat, hw1_ref[...], preferred_element_type=f32) + hb1_ref[...]
    hid = jnp.where(hid > 0, hid, 0.01 * hid)
    out_ref[...] = jnp.dot(hid, hw2_ref[...], preferred_element_type=f32) + hb2_ref[...]


# --------------------------------------------------------------------------------------
# Weight packing: torch-layout per-direction weights -> fused block-structured layout.
# --------------------------------------------------------------------------------------
def _interleave_gate_cols(w_t, is_fwd, H):
    """(rows, 4H) gate-ordered (i,f,g,o) columns -> (rows, 8H) fwd/bwd-interleaved layout."""
    rows = w_t.shape[0]
    out = jnp.zeros((rows, 8 * H), jnp.float32)
    off = 0 if is_fwd else H
    for k in range(4):
        out = out.at[:, 2 * k * H + off:2 * k * H + off + H].set(w_t[:, k * H:(k + 1) * H])
    return out


def _interleave_bias(b_f, b_b, H):
    out = jnp.zeros((8 * H,), jnp.float32)
    for k in range(4):
        out = out.at[2 * k * H:2 * k * H + H].set(b_f[k * H:(k + 1) * H])
        out = out.at[2 * k * H + H:2 * (k + 1) * H].set(b_b[k * H:(k + 1) * H])
    return out.reshape(1, 8 * H)


def pack_params(params, d_hidden):
    """Repack per-direction LSTM weights into the fused layout used by the kernel."""
    H = d_hidden
    layers = params["lstm"]
    assert len(layers) >= 2, "fused kernel expects nb_layers >= 2"

    def whh_cat(p):
        return jnp.concatenate(
            [_interleave_gate_cols(p["w_hh_f"], True, H),
             _interleave_gate_cols(p["w_hh_b"], False, H)], axis=0)       # (2H, 8H)

    p0 = layers[0]
    packed = {
        "mp1": _interleave_gate_cols(p0["w_ih_f"], True, H),              # (d_in, 8H)
        "mq1": _interleave_gate_cols(p0["w_ih_b"], False, H),
        "b1": _interleave_bias(p0["b_f"], p0["b_b"], H),
        "whh1": whh_cat(p0),
    }

    mpr, mqr, br, whhr = [], [], [], []
    for p in layers[1:]:
        wa = _interleave_gate_cols(p["w_ih_f"], True, H)                  # (2H, 8H)
        wb = _interleave_gate_cols(p["w_ih_b"], False, H)
        # Previous layer's stored step-s output is [fwd(s) | bwd(T-1-s)]; MP/MQ turn it into
        # the two gate-x streams so that gate_x(step t) = P[t] + Q[T-1-t].
        mpr.append(jnp.concatenate([wa[:H, :], wb[H:, :]], axis=0))
        mqr.append(jnp.concatenate([wb[:H, :], wa[H:, :]], axis=0))
        br.append(_interleave_bias(p["b_f"], p["b_b"], H))
        whhr.append(whh_cat(p))
    packed["mpr"] = jnp.stack(mpr)                                        # (L-1, 2H, 8H)
    packed["mqr"] = jnp.stack(mqr)
    packed["br"] = jnp.stack(br)                                          # (L-1, 1, 8H)
    packed["whhr"] = jnp.stack(whhr)

    pp = params["pred"]
    packed["hw1"] = pp["w1"]
    packed["hb1"] = pp["b1"].reshape(1, -1)
    packed["hw2"] = pp["w2"]
    packed["hb2"] = pp["b2"].reshape(1, -1)
    return packed


# --------------------------------------------------------------------------------------
# Forward wrapper: one pallas_call for the whole model.
# --------------------------------------------------------------------------------------
def lstm_model_forward(X, packed, *, d_hidden, nb_layers):
    """Forward pass matching LSTM.forward. X: (B, d_in, T) float32."""
    B, d_in, T = X.shape
    H = d_hidden
    d_out = packed["hw2"].shape[1]
    n_rows = (2 * B * H) // (2 * H)          # rows of torch's h_n.reshape(-1, 2H)  (== B)
    x = jnp.transpose(X, (2, 0, 1)).reshape(T * B, d_in)                  # time-major flat

    vmem = pl.BlockSpec(memory_space=pltpu.MemorySpace.VMEM)
    kernel = functools.partial(_fused_lstm_kernel, T=T, B=B, H=H, nb_layers=nb_layers)
    return pl.pallas_call(
        kernel,
        out_shape=jax.ShapeDtypeStruct((n_rows, d_out), jnp.float32),
        in_specs=[vmem] * 13,
        out_specs=vmem,
        scratch_shapes=[
            pltpu.VMEM((T * B, 8 * H), jnp.float32),   # P: gate-x stream (fwd positions)
            pltpu.VMEM((T * B, 8 * H), jnp.float32),   # Q: gate-x stream (bwd positions)
            pltpu.VMEM((T * B, 2 * H), jnp.float32),   # per-layer output sequence
            pltpu.VMEM((n_rows, 2 * H), jnp.float32),  # MLP feature matrix
        ],
    )(
        x,
        packed["mp1"], packed["mq1"], packed["b1"], packed["whh1"],
        packed["mpr"], packed["mqr"], packed["br"], packed["whhr"],
        packed["hw1"], packed["hb1"], packed["hw2"], packed["hb2"],
    )


# --------------------------------------------------------------------------------------
# Pure-JAX reference (mirrors the PyTorch module) used for a numerical self-check.
# --------------------------------------------------------------------------------------
def lstm_reference(X, params, *, d_hidden, nb_layers):
    H = d_hidden
    B, d_in, T = X.shape
    dot = functools.partial(jnp.dot, precision=jax.lax.Precision.HIGHEST)
    x = jnp.transpose(X, (0, 2, 1))          # (B, T, d_in)

    def run_dir(seq, w_ih_t, w_hh_t, b):
        h = jnp.zeros((B, H), jnp.float32)
        c = jnp.zeros((B, H), jnp.float32)
        outs = []
        for t in range(seq.shape[1]):
            g = dot(seq[:, t, :], w_ih_t) + dot(h, w_hh_t) + b
            i = jax.nn.sigmoid(g[:, :H])
            f = jax.nn.sigmoid(g[:, H:2 * H])
            gg = jnp.tanh(g[:, 2 * H:3 * H])
            o = jax.nn.sigmoid(g[:, 3 * H:])
            c = f * c + i * gg
            h = o * jnp.tanh(c)
            outs.append(h)
        return jnp.stack(outs, axis=1), h

    layer_in = x
    hf = hb = None
    for l in range(nb_layers):
        p = params["lstm"][l]
        out_f, hf = run_dir(layer_in, p["w_ih_f"], p["w_hh_f"], p["b_f"])
        out_b_rev, hb = run_dir(layer_in[:, ::-1, :], p["w_ih_b"], p["w_hh_b"], p["b_b"])
        out_b = out_b_rev[:, ::-1, :]
        layer_in = jnp.concatenate([out_f, out_b], axis=-1)

    h_last = jnp.stack([hf, hb], axis=0)     # (2, B, H) = last layer of h_n
    feat = h_last.reshape(-1, 2 * H)
    pp = params["pred"]
    hid = dot(feat, pp["w1"]) + pp["b1"]
    hid = jnp.where(hid > 0, hid, 0.01 * hid)
    return dot(hid, pp["w2"]) + pp["b2"]


# --------------------------------------------------------------------------------------
# Deterministic parameter init (PyTorch-style uniform(-1/sqrt(fan), 1/sqrt(fan)))
# --------------------------------------------------------------------------------------
def init_params(key, d_in, d_hidden, nb_layers, d_out):
    def uniform(k, shape, bound):
        return jax.random.uniform(k, shape, jnp.float32, -bound, bound)

    params = {"lstm": [], "pred": {}}
    k = key
    bound_lstm = 1.0 / (d_hidden ** 0.5)
    for l in range(nb_layers):
        in_size = d_in if l == 0 else 2 * d_hidden
        layer = {}
        for tag in ("f", "b"):
            k, k1, k2, k3, k4 = jax.random.split(k, 5)
            w_ih = uniform(k1, (4 * d_hidden, in_size), bound_lstm)   # torch layout
            w_hh = uniform(k2, (4 * d_hidden, d_hidden), bound_lstm)
            b_ih = uniform(k3, (4 * d_hidden,), bound_lstm)
            b_hh = uniform(k4, (4 * d_hidden,), bound_lstm)
            layer[f"w_ih_{tag}"] = w_ih.T    # (in_size, 4H), gate order (i, f, g, o)
            layer[f"w_hh_{tag}"] = w_hh.T    # (H, 4H)
            layer[f"b_{tag}"] = b_ih + b_hh
        params["lstm"].append(layer)

    d_feat = d_in * d_hidden
    d_mid = d_feat // 2
    k, k1, k2, k3, k4 = jax.random.split(k, 5)
    b1 = 1.0 / (d_feat ** 0.5)
    b2 = 1.0 / (d_mid ** 0.5)
    params["pred"]["w1"] = uniform(k1, (d_mid, d_feat), b1).T        # (d_feat, d_mid)
    params["pred"]["b1"] = uniform(k2, (d_mid,), b1)
    params["pred"]["w2"] = uniform(k3, (d_out, d_mid), b2).T         # (d_mid, d_out)
    params["pred"]["b2"] = uniform(k4, (d_out,), b2)
    return params


# --------------------------------------------------------------------------------------
if __name__ == "__main__":
    d_in, d_hidden, nb_layers, T, d_out = 2, 32, 2, 8, 4   # pred head requires d_in == 2
    B = 2

    key = jax.random.PRNGKey(0)
    kx, kp = jax.random.split(key)
    X = jax.random.normal(kx, (B, d_in, T), jnp.float32)   # (B, d_in, T) as in PyTorch
    params = init_params(kp, d_in, d_hidden, nb_layers, d_out)
    packed = pack_params(params, d_hidden)

    fwd = jax.jit(functools.partial(lstm_model_forward, d_hidden=d_hidden, nb_layers=nb_layers))
    out = fwd(X, packed)
    jax.block_until_ready(out)

    ref_fn = jax.jit(functools.partial(lstm_reference, d_hidden=d_hidden, nb_layers=nb_layers))
    ref = ref_fn(X, params)
    jax.block_until_ready(ref)

    assert out.shape == ref.shape == (B, d_out), (out.shape, ref.shape)
    assert jnp.all(jnp.isfinite(out))
    assert jnp.allclose(out, ref, atol=2e-2, rtol=2e-2), float(jnp.max(jnp.abs(out - ref)))
    print("KERNEL_OK")
</pallas_src>

<mosaic_0001>
module attributes {stable_mosaic.version = 11 : i64} {
  func.func @_fused_lstm_kernel(%arg0: memref<16x2xf32, #tpu.memory_space<vmem>>, %arg1: memref<2x256xf32, #tpu.memory_space<vmem>>, %arg2: memref<2x256xf32, #tpu.memory_space<vmem>>, %arg3: memref<1x256xf32, #tpu.memory_space<vmem>>, %arg4: memref<64x256xf32, #tpu.memory_space<vmem>>, %arg5: memref<1x64x256xf32, #tpu.memory_space<vmem>>, %arg6: memref<1x64x256xf32, #tpu.memory_space<vmem>>, %arg7: memref<1x1x256xf32, #tpu.memory_space<vmem>>, %arg8: memref<1x64x256xf32, #tpu.memory_space<vmem>>, %arg9: memref<64x32xf32, #tpu.memory_space<vmem>>, %arg10: memref<1x32xf32, #tpu.memory_space<vmem>>, %arg11: memref<32x4xf32, #tpu.memory_space<vmem>>, %arg12: memref<1x4xf32, #tpu.memory_space<vmem>>, %arg13: memref<2x4xf32, #tpu.memory_space<vmem>>, %arg14: memref<16x256xf32, #tpu.memory_space<vmem>>, %arg15: memref<16x256xf32, #tpu.memory_space<vmem>>, %arg16: memref<16x64xf32, #tpu.memory_space<vmem>>, %arg17: memref<2x64xf32, #tpu.memory_space<vmem>>) attributes {dimension_semantics = [], scalar_prefetch = 0 : i64, scratch_operands = 4 : i64, tpu.core_type = #tpu.core_type<tc>} {
    %c0 = arith.constant 0 : index
    %c0_0 = arith.constant 0 : index
    %0 = vector.load %arg0[%c0, %c0_0] : memref<16x2xf32, #tpu.memory_space<vmem>>, vector<16x2xf32>
    %c0_1 = arith.constant 0 : index
    %c0_2 = arith.constant 0 : index
    %1 = vector.load %arg1[%c0_1, %c0_2] : memref<2x256xf32, #tpu.memory_space<vmem>>, vector<2x256xf32>
    %cst = arith.constant dense<0.000000e+00> : vector<16x256xf32>
    %2 = tpu.matmul %0, %1, %cst {dimension_numbers = #tpu.dot_dimension_numbers<[1], [0], [0], [1], [0, 0, 1, 1], [], []>} : vector<16x2xf32>, vector<2x256xf32>, vector<16x256xf32> -> vector<16x256xf32>
    %c0_3 = arith.constant 0 : index
    %c0_4 = arith.constant 0 : index
    %3 = vector.load %arg3[%c0_3, %c0_4] : memref<1x256xf32, #tpu.memory_space<vmem>>, vector<1x256xf32>
    %4 = vector.broadcast %3 : vector<1x256xf32> to vector<16x256xf32>
    %5 = arith.addf %2, %4 : vector<16x256xf32>
    %c0_5 = arith.constant 0 : index
    %c0_6 = arith.constant 0 : index
    %6 = vector.load %arg14[%c0_5, %c0_6] : memref<16x256xf32, #tpu.memory_space<vmem>>, vector<16x256xf32>
    tpu.vector_store %arg14[%c0_5, %c0_6], %5 {strides = array<i32>} : memref<16x256xf32, #tpu.memory_space<vmem>>, vector<16x256xf32>,
    %c0_7 = arith.constant 0 : index
    %c0_8 = arith.constant 0 : index
    %7 = vector.load %arg2[%c0_7, %c0_8] : memref<2x256xf32, #tpu.memory_space<vmem>>, vector<2x256xf32>
    %cst_9 = arith.constant dense<0.000000e+00> : vector<16x256xf32>
    %8 = tpu.matmul %0, %7, %cst_9 {dimension_numbers = #tpu.dot_dimension_numbers<[1], [0], [0], [1], [0, 0, 1, 1], [], []>} : vector<16x2xf32>, vector<2x256xf32>, vector<16x256xf32> -> vector<16x256xf32>
    %c0_10 = arith.constant 0 : index
    %c0_11 = arith.constant 0 : index
    %9 = vector.load %arg15[%c0_10, %c0_11] : memref<16x256xf32, #tpu.memory_space<vmem>>, vector<16x256xf32>
    tpu.vector_store %arg15[%c0_10, %c0_11], %8 {strides = array<i32>} : memref<16x256xf32, #tpu.memory_space<vmem>>, vector<16x256xf32>,
    %c0_12 = arith.constant 0 : index
    %c0_13 = arith.constant 0 : index
    %10 = vector.load %arg4[%c0_12, %c0_13] : memref<64x256xf32, #tpu.memory_space<vmem>>, vector<64x256xf32>
    %cst_14 = arith.constant 0.000000e+00 : f32
    %11 = vector.broadcast %cst_14 : f32 to vector<2x64xf32>
    %cst_15 = arith.constant 0.000000e+00 : f32
    %12 = vector.broadcast %cst_15 : f32 to vector<2x64xf32>
    %c0_16 = arith.constant 0 : index
    %c0_17 = arith.constant 0 : index
    %13 = vector.load %arg14[%c0_16, %c0_17] : memref<16x256xf32, #tpu.memory_space<vmem>>, vector<2x256xf32>
    %c14 = arith.constant 14 : index
    %c0_18 = arith.constant 0 : index
    %14 = vector.load %arg15[%c14, %c0_18] : memref<16x256xf32, #tpu.memory_space<vmem>>, vector<2x256xf32>
    %15 = arith.addf %13, %14 : vector<2x256xf32>
    %cst_19 = arith.constant dense<0.000000e+00> : vector<2x256xf32>
    %16 = tpu.matmul %11, %10, %cst_19 {dimension_numbers = #tpu.dot_dimension_numbers<[1], [0], [0], [1], [0, 0, 1, 1], [], []>} : vector<2x64xf32>, vector<64x256xf32>, vector<2x256xf32> -> vector<2x256xf32>
    %17 = arith.addf %16, %15 : vector<2x256xf32>
    %18 = vector.extract_strided_slice %17 {offsets = [0, 0], sizes = [2, 64], strides = [1, 1]} : vector<2x256xf32> to vector<2x64xf32>
    %19 = arith.negf %18 : vector<2x64xf32>
    %20 = math.exp %19 : vector<2x64xf32>
    %cst_20 = arith.constant 1.000000e+00 : f32
    %21 = vector.broadcast %cst_20 : f32 to vector<2x64xf32>
    %22 = arith.addf %21, %20 : vector<2x64xf32>
    %23 = arith.divf %21, %22 : vector<2x64xf32>
    %24 = vector.extract_strided_slice %17 {offsets = [0, 64], sizes = [2, 64], strides = [1, 1]} : vector<2x256xf32> to vector<2x64xf32>
    %25 = arith.negf %24 : vector<2x64xf32>
    %26 = math.exp %25 : vector<2x64xf32>
    %cst_21 = arith.constant 1.000000e+00 : f32
    %27 = vector.broadcast %cst_21 : f32 to vector<2x64xf32>
    %28 = arith.addf %27, %26 : vector<2x64xf32>
    %29 = arith.divf %27, %28 : vector<2x64xf32>
    %30 = vector.extract_strided_slice %17 {offsets = [0, 128], sizes = [2, 64], strides = [1, 1]} : vector<2x256xf32> to vector<2x64xf32>
    %31 = math.tanh %30 : vector<2x64xf32>
    %32 = vector.extract_strided_slice %17 {offsets = [0, 192], sizes = [2, 64], strides = [1, 1]} : vector<2x256xf32> to vector<2x64xf32>
    %33 = arith.negf %32 : vector<2x64xf32>
    %34 = math.exp %33 : vector<2x64xf32>
    %cst_22 = arith.constant 1.000000e+00 : f32
    %35 = vector.broadcast %cst_22 : f32 to vector<2x64xf32>
    %36 = arith.addf %35, %34 : vector<2x64xf32>
    %37 = arith.divf %35, %36 : vector<2x64xf32>
    %38 = arith.mulf %29, %12 : vector<2x64xf32>
    %39 = arith.mulf %23, %31 : vector<2x64xf32>
    %40 = arith.addf %38, %39 : vector<2x64xf32>
    %41 = math.tanh %40 : vector<2x64xf32>
    %42 = arith.mulf %37, %41 : vector<2x64xf32>
    %c0_23 = arith.constant 0 : index
    %c0_24 = arith.constant 0 : index
    %43 = vector.load %arg16[%c0_23, %c0_24] : memref<16x64xf32, #tpu.memory_space<vmem>>, vector<2x64xf32>
    tpu.vector_store %arg16[%c0_23, %c0_24], %42 {strides = array<i32>} : memref<16x64xf32, #tpu.memory_space<vmem>>, vector<2x64xf32>,
    %c2 = arith.constant 2 : index
    %c0_25 = arith.constant 0 : index
    %44 = vector.load %arg14[%c2, %c0_25] : memref<16x256xf32, #tpu.memory_space<vmem>>, vector<2x256xf32>
    %c12 = arith.constant 12 : index
    %c0_26 = arith.constant 0 : index
    %45 = vector.load %arg15[%c12, %c0_26] : memref<16x256xf32, #tpu.memory_space<vmem>>, vector<2x256xf32>
    %46 = arith.addf %44, %45 : vector<2x256xf32>
    %cst_27 = arith.constant dense<0.000000e+00> : vector<2x256xf32>
    %47 = tpu.matmul %42, %10, %cst_27 {dimension_numbers = #tpu.dot_dimension_numbers<[1], [0], [0], [1], [0, 0, 1, 1], [], []>} : vector<2x64xf32>, vector<64x256xf32>, vector<2x256xf32> -> vector<2x256xf32>
    %48 = arith.addf %47, %46 : vector<2x256xf32>
    %49 = vector.extract_strided_slice %48 {offsets = [0, 0], sizes = [2, 64], strides = [1, 1]} : vector<2x256xf32> to vector<2x64xf32>
    %50 = arith.negf %49 : vector<2x64xf32>
    %51 = math.exp %50 : vector<2x64xf32>
    %cst_28 = arith.constant 1.000000e+00 : f32
    %52 = vector.broadcast %cst_28 : f32 to vector<2x64xf32>
    %53 = arith.addf %52, %51 : vector<2x64xf32>
    %54 = arith.divf %52, %53 : vector<2x64xf32>
    %55 = vector.extract_strided_slice %48 {offsets = [0, 64], sizes = [2, 64], strides = [1, 1]} : vector<2x256xf32> to vector<2x64xf32>
    %56 = arith.negf %55 : vector<2x64xf32>
    %57 = math.exp %56 : vector<2x64xf32>
    %cst_29 = arith.constant 1.000000e+00 : f32
    %58 = vector.broadcast %cst_29 : f32 to vector<2x64xf32>
    %59 = arith.addf %58, %57 : vector<2x64xf32>
    %60 = arith.divf %58, %59 : vector<2x64xf32>
    %61 = vector.extract_strided_slice %48 {offsets = [0, 128], sizes = [2, 64], strides = [1, 1]} : vector<2x256xf32> to vector<2x64xf32>
    %62 = math.tanh %61 : vector<2x64xf32>
    %63 = vector.extract_strided_slice %48 {offsets = [0, 192], sizes = [2, 64], strides = [1, 1]} : vector<2x256xf32> to vector<2x64xf32>
    %64 = arith.negf %63 : vector<2x64xf32>
    %65 = math.exp %64 : vector<2x64xf32>
    %cst_30 = arith.constant 1.000000e+00 : f32
    %66 = vector.broadcast %cst_30 : f32 to vector<2x64xf32>
    %67 = arith.addf %66, %65 : vector<2x64xf32>
    %68 = arith.divf %66, %67 : vector<2x64xf32>
    %69 = arith.mulf %60, %40 : vector<2x64xf32>
    %70 = arith.mulf %54, %62 : vector<2x64xf32>
    %71 = arith.addf %69, %70 : vector<2x64xf32>
    %72 = math.tanh %71 : vector<2x64xf32>
    %73 = arith.mulf %68, %72 : vector<2x64xf32>
    %c2_31 = arith.constant 2 : index
    %c0_32 = arith.constant 0 : index
    %74 = vector.load %arg16[%c2_31, %c0_32] : memref<16x64xf32, #tpu.memory_space<vmem>>, vector<2x64xf32>
    tpu.vector_store %arg16[%c2_31, %c0_32], %73 {strides = array<i32>} : memref<16x64xf32, #tpu.memory_space<vmem>>, vector<2x64xf32>,
    %c4 = arith.constant 4 : index
    %c0_33 = arith.constant 0 : index
    %75 = vector.load %arg14[%c4, %c0_33] : memref<16x256xf32, #tpu.memory_space<vmem>>, vector<2x256xf32>
    %c10 = arith.constant 10 : index
    %c0_34 = arith.constant 0 : index
    %76 = vector.load %arg15[%c10, %c0_34] : memref<16x256xf32, #tpu.memory_space<vmem>>, vector<2x256xf32>
    %77 = arith.addf %75, %76 : vector<2x256xf32>
    %cst_35 = arith.constant dense<0.000000e+00> : vector<2x256xf32>
    %78 = tpu.matmul %73, %10, %cst_35 {dimension_numbers = #tpu.dot_dimension_numbers<[1], [0], [0], [1], [0, 0, 1, 1], [], []>} : vector<2x64xf32>, vector<64x256xf32>, vector<2x256xf32> -> vector<2x256xf32>
    %79 = arith.addf %78, %77 : vector<2x256xf32>
    %80 = vector.extract_strided_slice %79 {offsets = [0, 0], sizes = [2, 64], strides = [1, 1]} : vector<2x256xf32> to vector<2x64xf32>
    %81 = arith.negf %80 : vector<2x64xf32>
    %82 = math.exp %81 : vector<2x64xf32>
    %cst_36 = arith.constant 1.000000e+00 : f32
    %83 = vector.broadcast %cst_36 : f32 to vector<2x64xf32>
    %84 = arith.addf %83, %82 : vector<2x64xf32>
    %85 = arith.divf %83, %84 : vector<2x64xf32>
    %86 = vector.extract_strided_slice %79 {offsets = [0, 64], sizes = [2, 64], strides = [1, 1]} : vector<2x256xf32> to vector<2x64xf32>
    %87 = arith.negf %86 : vector<2x64xf32>
    %88 = math.exp %87 : vector<2x64xf32>
    %cst_37 = arith.constant 1.000000e+00 : f32
    %89 = vector.broadcast %cst_37 : f32 to vector<2x64xf32>
    %90 = arith.addf %89, %88 : vector<2x64xf32>
    %91 = arith.divf %89, %90 : vector<2x64xf32>
    %92 = vector.extract_strided_slice %79 {offsets = [0, 128], sizes = [2, 64], strides = [1, 1]} : vector<2x256xf32> to vector<2x64xf32>
    %93 = math.tanh %92 : vector<2x64xf32>
    %94 = vector.extract_strided_slice %79 {offsets = [0, 192], sizes = [2, 64], strides = [1, 1]} : vector<2x256xf32> to vector<2x64xf32>
    %95 = arith.negf %94 : vector<2x64xf32>
    %96 = math.exp %95 : vector<2x64xf32>
    %cst_38 = arith.constant 1.000000e+00 : f32
    %97 = vector.broadcast %cst_38 : f32 to vector<2x64xf32>
    %98 = arith.addf %97, %96 : vector<2x64xf32>
    %99 = arith.divf %97, %98 : vector<2x64xf32>
    %100 = arith.mulf %91, %71 : vector<2x64xf32>
    %101 = arith.mulf %85, %93 : vector<2x64xf32>
    %102 = arith.addf %100, %101 : vector<2x64xf32>
    %103 = math.tanh %102 : vector<2x64xf32>
    %104 = arith.mulf %99, %103 : vector<2x64xf32>
    %c4_39 = arith.constant 4 : index
    %c0_40 = arith.constant 0 : index
    %105 = vector.load %arg16[%c4_39, %c0_40] : memref<16x64xf32, #tpu.memory_space<vmem>>, vector<2x64xf32>
    tpu.vector_store %arg16[%c4_39, %c0_40], %104 {strides = array<i32>} : memref<16x64xf32, #tpu.memory_space<vmem>>, vector<2x64xf32>,
    %c6 = arith.constant 6 : index
    %c0_41 = arith.constant 0 : index
    %106 = vector.load %arg14[%c6, %c0_41] : memref<16x256xf32, #tpu.memory_space<vmem>>, vector<2x256xf32>
    %c8 = arith.constant 8 : index
    %c0_42 = arith.constant 0 : index
    %107 = vector.load %arg15[%c8, %c0_42] : memref<16x256xf32, #tpu.memory_space<vmem>>, vector<2x256xf32>
    %108 = arith.addf %106, %107 : vector<2x256xf32>
    %cst_43 = arith.constant dense<0.000000e+00> : vector<2x256xf32>
    %109 = tpu.matmul %104, %10, %cst_43 {dimension_numbers = #tpu.dot_dimension_numbers<[1], [0], [0], [1], [0, 0, 1, 1], [], []>} : vector<2x64xf32>, vector<64x256xf32>, vector<2x256xf32> -> vector<2x256xf32>
    %110 = arith.addf %109, %108 : vector<2x256xf32>
    %111 = vector.extract_strided_slice %110 {offsets = [0, 0], sizes = [2, 64], strides = [1, 1]} : vector<2x256xf32> to vector<2x64xf32>
    %112 = arith.negf %111 : vector<2x64xf32>
    %113 = math.exp %112 : vector<2x64xf32>
    %cst_44 = arith.constant 1.000000e+00 : f32
    %114 = vector.broadcast %cst_44 : f32 to vector<2x64xf32>
    %115 = arith.addf %114, %113 : vector<2x64xf32>
    %116 = arith.divf %114, %115 : vector<2x64xf32>
    %117 = vector.extract_strided_slice %110 {offsets = [0, 64], sizes = [2, 64], strides = [1, 1]} : vector<2x256xf32> to vector<2x64xf32>
    %118 = arith.negf %117 : vector<2x64xf32>
    %119 = math.exp %118 : vector<2x64xf32>
    %cst_45 = arith.constant 1.000000e+00 : f32
    %120 = vector.broadcast %cst_45 : f32 to vector<2x64xf32>
    %121 = arith.addf %120, %119 : vector<2x64xf32>
    %122 = arith.divf %120, %121 : vector<2x64xf32>
    %123 = vector.extract_strided_slice %110 {offsets = [0, 128], sizes = [2, 64], strides = [1, 1]} : vector<2x256xf32> to vector<2x64xf32>
    %124 = math.tanh %123 : vector<2x64xf32>
    %125 = vector.extract_strided_slice %110 {offsets = [0, 192], sizes = [2, 64], strides = [1, 1]} : vector<2x256xf32> to vector<2x64xf32>
    %126 = arith.negf %125 : vector<2x64xf32>
    %127 = math.exp %126 : vector<2x64xf32>
    %cst_46 = arith.constant 1.000000e+00 : f32
    %128 = vector.broadcast %cst_46 : f32 to vector<2x64xf32>
    %129 = arith.addf %128, %127 : vector<2x64xf32>
    %130 = arith.divf %128, %129 : vector<2x64xf32>
    %131 = arith.mulf %122, %102 : vector<2x64xf32>
    %132 = arith.mulf %116, %124 : vector<2x64xf32>
    %133 = arith.addf %131, %132 : vector<2x64xf32>
    %134 = math.tanh %133 : vector<2x64xf32>
    %135 = arith.mulf %130, %134 : vector<2x64xf32>
    %c6_47 = arith.constant 6 : index
    %c0_48 = arith.constant 0 : index
    %136 = vector.load %arg16[%c6_47, %c0_48] : memref<16x64xf32, #tpu.memory_space<vmem>>, vector<2x64xf32>
    tpu.vector_store %arg16[%c6_47, %c0_48], %135 {strides = array<i32>} : memref<16x64xf32, #tpu.memory_space<vmem>>, vector<2x64xf32>,
    %c8_49 = arith.constant 8 : index
    %c0_50 = arith.constant 0 : index
    %137 = vector.load %arg14[%c8_49, %c0_50] : memref<16x256xf32, #tpu.memory_space<vmem>>, vector<2x256xf32>
    %c6_51 = arith.constant 6 : index
    %c0_52 = arith.constant 0 : index
    %138 = vector.load %arg15[%c6_51, %c0_52] : memref<16x256xf32, #tpu.memory_space<vmem>>, vector<2x256xf32>
    %139 = arith.addf %137, %138 : vector<2x256xf32>
    %cst_53 = arith.constant dense<0.000000e+00> : vector<2x256xf32>
    %140 = tpu.matmul %135, %10, %cst_53 {dimension_numbers = #tpu.dot_dimension_numbers<[1], [0], [0], [1], [0, 0, 1, 1], [], []>} : vector<2x64xf32>, vector<64x256xf32>, vector<2x256xf32> -> vector<2x256xf32>
    %141 = arith.addf %140, %139 : vector<2x256xf32>
    %142 = vector.extract_strided_slice %141 {offsets = [0, 0], sizes = [2, 64], strides = [1, 1]} : vector<2x256xf32> to vector<2x64xf32>
    %143 = arith.negf %142 : vector<2x64xf32>
    %144 = math.exp %143 : vector<2x64xf32>
    %cst_54 = arith.constant 1.000000e+00 : f32
    %145 = vector.broadcast %cst_54 : f32 to vector<2x64xf32>
    %146 = arith.addf %145, %144 : vector<2x64xf32>
    %147 = arith.divf %145, %146 : vector<2x64xf32>
    %148 = vector.extract_strided_slice %141 {offsets = [0, 64], sizes = [2, 64], strides = [1, 1]} : vector<2x256xf32> to vector<2x64xf32>
    %149 = arith.negf %148 : vector<2x64xf32>
    %150 = math.exp %149 : vector<2x64xf32>
    %cst_55 = arith.constant 1.000000e+00 : f32
    %151 = vector.broadcast %cst_55 : f32 to vector<2x64xf32>
    %152 = arith.addf %151, %150 : vector<2x64xf32>
    %153 = arith.divf %151, %152 : vector<2x64xf32>
    %154 = vector.extract_strided_slice %141 {offsets = [0, 128], sizes = [2, 64], strides = [1, 1]} : vector<2x256xf32> to vector<2x64xf32>
    %155 = math.tanh %154 : vector<2x64xf32>
    %156 = vector.extract_strided_slice %141 {offsets = [0, 192], sizes = [2, 64], strides = [1, 1]} : vector<2x256xf32> to vector<2x64xf32>
    %157 = arith.negf %156 : vector<2x64xf32>
    %158 = math.exp %157 : vector<2x64xf32>
    %cst_56 = arith.constant 1.000000e+00 : f32
    %159 = vector.broadcast %cst_56 : f32 to vector<2x64xf32>
    %160 = arith.addf %159, %158 : vector<2x64xf32>
    %161 = arith.divf %159, %160 : vector<2x64xf32>
    %162 = arith.mulf %153, %133 : vector<2x64xf32>
    %163 = arith.mulf %147, %155 : vector<2x64xf32>
    %164 = arith.addf %162, %163 : vector<2x64xf32>
    %165 = math.tanh %164 : vector<2x64xf32>
    %166 = arith.mulf %161, %165 : vector<2x64xf32>
    %c8_57 = arith.constant 8 : index
    %c0_58 = arith.constant 0 : index
    %167 = vector.load %arg16[%c8_57, %c0_58] : memref<16x64xf32, #tpu.memory_space<vmem>>, vector<2x64xf32>
    tpu.vector_store %arg16[%c8_57, %c0_58], %166 {strides = array<i32>} : memref<16x64xf32, #tpu.memory_space<vmem>>, vector<2x64xf32>,
    %c10_59 = arith.constant 10 : index
    %c0_60 = arith.constant 0 : index
    %168 = vector.load %arg14[%c10_59, %c0_60] : memref<16x256xf32, #tpu.memory_space<vmem>>, vector<2x256xf32>
    %c4_61 = arith.constant 4 : index
    %c0_62 = arith.constant 0 : index
    %169 = vector.load %arg15[%c4_61, %c0_62] : memref<16x256xf32, #tpu.memory_space<vmem>>, vector<2x256xf32>
    %170 = arith.addf %168, %169 : vector<2x256xf32>
    %cst_63 = arith.constant dense<0.000000e+00> : vector<2x256xf32>
    %171 = tpu.matmul %166, %10, %cst_63 {dimension_numbers = #tpu.dot_dimension_numbers<[1], [0], [0], [1], [0, 0, 1, 1], [], []>} : vector<2x64xf32>, vector<64x256xf32>, vector<2x256xf32> -> vector<2x256xf32>
    %172 = arith.addf %171, %170 : vector<2x256xf32>
    %173 = vector.extract_strided_slice %172 {offsets = [0, 0], sizes = [2, 64], strides = [1, 1]} : vector<2x256xf32> to vector<2x64xf32>
    %174 = arith.negf %173 : vector<2x64xf32>
    %175 = math.exp %174 : vector<2x64xf32>
    %cst_64 = arith.constant 1.000000e+00 : f32
    %176 = vector.broadcast %cst_64 : f32 to vector<2x64xf32>
    %177 = arith.addf %176, %175 : vector<2x64xf32>
    %178 = arith.divf %176, %177 : vector<2x64xf32>
    %179 = vector.extract_strided_slice %172 {offsets = [0, 64], sizes = [2, 64], strides = [1, 1]} : vector<2x256xf32> to vector<2x64xf32>
    %180 = arith.negf %179 : vector<2x64xf32>
    %181 = math.exp %180 : vector<2x64xf32>
    %cst_65 = arith.constant 1.000000e+00 : f32
    %182 = vector.broadcast %cst_65 : f32 to vector<2x64xf32>
    %183 = arith.addf %182, %181 : vector<2x64xf32>
    %184 = arith.divf %182, %183 : vector<2x64xf32>
    %185 = vector.extract_strided_slice %172 {offsets = [0, 128], sizes = [2, 64], strides = [1, 1]} : vector<2x256xf32> to vector<2x64xf32>
    %186 = math.tanh %185 : vector<2x64xf32>
    %187 = vector.extract_strided_slice %172 {offsets = [0, 192], sizes = [2, 64], strides = [1, 1]} : vector<2x256xf32> to vector<2x64xf32>
    %188 = arith.negf %187 : vector<2x64xf32>
    %189 = math.exp %188 : vector<2x64xf32>
    %cst_66 = arith.constant 1.000000e+00 : f32
    %190 = vector.broadcast %cst_66 : f32 to vector<2x64xf32>
    %191 = arith.addf %190, %189 : vector<2x64xf32>
    %192 = arith.divf %190, %191 : vector<2x64xf32>
    %193 = arith.mulf %184, %164 : vector<2x64xf32>
    %194 = arith.mulf %178, %186 : vector<2x64xf32>
    %195 = arith.addf %193, %194 : vector<2x64xf32>
    %196 = math.tanh %195 : vector<2x64xf32>
    %197 = arith.mulf %192, %196 : vector<2x64xf32>
    %c10_67 = arith.constant 10 : index
    %c0_68 = arith.constant 0 : index
    %198 = vector.load %arg16[%c10_67, %c0_68] : memref<16x64xf32, #tpu.memory_space<vmem>>, vector<2x64xf32>
    tpu.vector_store %arg16[%c10_67, %c0_68], %197 {strides = array<i32>} : memref<16x64xf32, #tpu.memory_space<vmem>>, vector<2x64xf32>,
    %c12_69 = arith.constant 12 : index
    %c0_70 = arith.constant 0 : index
    %199 = vector.load %arg14[%c12_69, %c0_70] : memref<16x256xf32, #tpu.memory_space<vmem>>, vector<2x256xf32>
    %c2_71 = arith.constant 2 : index
    %c0_72 = arith.constant 0 : index
    %200 = vector.load %arg15[%c2_71, %c0_72] : memref<16x256xf32, #tpu.memory_space<vmem>>, vector<2x256xf32>
    %201 = arith.addf %199, %200 : vector<2x256xf32>
    %cst_73 = arith.constant dense<0.000000e+00> : vector<2x256xf32>
    %202 = tpu.matmul %197, %10, %cst_73 {dimension_numbers = #tpu.dot_dimension_numbers<[1], [0], [0], [1], [0, 0, 1, 1], [], []>} : vector<2x64xf32>, vector<64x256xf32>, vector<2x256xf32> -> vector<2x256xf32>
    %203 = arith.addf %202, %201 : vector<2x256xf32>
    %204 = vector.extract_strided_slice %203 {offsets = [0, 0], sizes = [2, 64], strides = [1, 1]} : vector<2x256xf32> to vector<2x64xf32>
    %205 = arith.negf %204 : vector<2x64xf32>
    %206 = math.exp %205 : vector<2x64xf32>
    %cst_74 = arith.constant 1.000000e+00 : f32
    %207 = vector.broadcast %cst_74 : f32 to vector<2x64xf32>
    %208 = arith.addf %207, %206 : vector<2x64xf32>
    %209 = arith.divf %207, %208 : vector<2x64xf32>
    %210 = vector.extract_strided_slice %203 {offsets = [0, 64], sizes = [2, 64], strides = [1, 1]} : vector<2x256xf32> to vector<2x64xf32>
    %211 = arith.negf %210 : vector<2x64xf32>
    %212 = math.exp %211 : vector<2x64xf32>
    %cst_75 = arith.constant 1.000000e+00 : f32
    %213 = vector.broadcast %cst_75 : f32 to vector<2x64xf32>
    %214 = arith.addf %213, %212 : vector<2x64xf32>
    %215 = arith.divf %213, %214 : vector<2x64xf32>
    %216 = vector.extract_strided_slice %203 {offsets = [0, 128], sizes = [2, 64], strides = [1, 1]} : vector<2x256xf32> to vector<2x64xf32>
    %217 = math.tanh %216 : vector<2x64xf32>
    %218 = vector.extract_strided_slice %203 {offsets = [0, 192], sizes = [2, 64], strides = [1, 1]} : vector<2x256xf32> to vector<2x64xf32>
    %219 = arith.negf %218 : vector<2x64xf32>
    %220 = math.exp %219 : vector<2x64xf32>
    %cst_76 = arith.constant 1.000000e+00 : f32
    %221 = vector.broadcast %cst_76 : f32 to vector<2x64xf32>
    %222 = arith.addf %221, %220 : vector<2x64xf32>
    %223 = arith.divf %221, %222 : vector<2x64xf32>
    %224 = arith.mulf %215, %195 : vector<2x64xf32>
    %225 = arith.mulf %209, %217 : vector<2x64xf32>
    %226 = arith.addf %224, %225 : vector<2x64xf32>
    %227 = math.tanh %226 : vector<2x64xf32>
    %228 = arith.mulf %223, %227 : vector<2x64xf32>
    %c12_77 = arith.constant 12 : index
    %c0_78 = arith.constant 0 : index
    %229 = vector.load %arg16[%c12_77, %c0_78] : memref<16x64xf32, #tpu.memory_space<vmem>>, vector<2x64xf32>
    tpu.vector_store %arg16[%c12_77, %c0_78], %228 {strides = array<i32>} : memref<16x64xf32, #tpu.memory_space<vmem>>, vector<2x64xf32>,
    %c14_79 = arith.constant 14 : index
    %c0_80 = arith.constant 0 : index
    %230 = vector.load %arg14[%c14_79, %c0_80] : memref<16x256xf32, #tpu.memory_space<vmem>>, vector<2x256xf32>
    %c0_81 = arith.constant 0 : index
    %c0_82 = arith.constant 0 : index
    %231 = vector.load %arg15[%c0_81, %c0_82] : memref<16x256xf32, #tpu.memory_space<vmem>>, vector<2x256xf32>
    %232 = arith.addf %230, %231 : vector<2x256xf32>
    %cst_83 = arith.constant dense<0.000000e+00> : vector<2x256xf32>
    %233 = tpu.matmul %228, %10, %cst_83 {dimension_numbers = #tpu.dot_dimension_numbers<[1], [0], [0], [1], [0, 0, 1, 1], [], []>} : vector<2x64xf32>, vector<64x256xf32>, vector<2x256xf32> -> vector<2x256xf32>
    %234 = arith.addf %233, %232 : vector<2x256xf32>
    %235 = vector.extract_strided_slice %234 {offsets = [0, 0], sizes = [2, 64], strides = [1, 1]} : vector<2x256xf32> to vector<2x64xf32>
    %236 = arith.negf %235 : vector<2x64xf32>
    %237 = math.exp %236 : vector<2x64xf32>
    %cst_84 = arith.constant 1.000000e+00 : f32
    %238 = vector.broadcast %cst_84 : f32 to vector<2x64xf32>
    %239 = arith.addf %238, %237 : vector<2x64xf32>
    %240 = arith.divf %238, %239 : vector<2x64xf32>
    %241 = vector.extract_strided_slice %234 {offsets = [0, 64], sizes = [2, 64], strides = [1, 1]} : vector<2x256xf32> to vector<2x64xf32>
    %242 = arith.negf %241 : vector<2x64xf32>
    %243 = math.exp %242 : vector<2x64xf32>
    %cst_85 = arith.constant 1.000000e+00 : f32
    %244 = vector.broadcast %cst_85 : f32 to vector<2x64xf32>
    %245 = arith.addf %244, %243 : vector<2x64xf32>
    %246 = arith.divf %244, %245 : vector<2x64xf32>
    %247 = vector.extract_strided_slice %234 {offsets = [0, 128], sizes = [2, 64], strides = [1, 1]} : vector<2x256xf32> to vector<2x64xf32>
    %248 = math.tanh %247 : vector<2x64xf32>
    %249 = vector.extract_strided_slice %234 {offsets = [0, 192], sizes = [2, 64], strides = [1, 1]} : vector<2x256xf32> to vector<2x64xf32>
    %250 = arith.negf %249 : vector<2x64xf32>
    %251 = math.exp %250 : vector<2x64xf32>
    %cst_86 = arith.constant 1.000000e+00 : f32
    %252 = vector.broadcast %cst_86 : f32 to vector<2x64xf32>
    %253 = arith.addf %252, %251 : vector<2x64xf32>
    %254 = arith.divf %252, %253 : vector<2x64xf32>
    %255 = arith.mulf %246, %226 : vector<2x64xf32>
    %256 = arith.mulf %240, %248 : vector<2x64xf32>
    %257 = arith.addf %255, %256 : vector<2x64xf32>
    %258 = math.tanh %257 : vector<2x64xf32>
    %259 = arith.mulf %254, %258 : vector<2x64xf32>
    %c14_87 = arith.constant 14 : index
    %c0_88 = arith.constant 0 : index
    %260 = vector.load %arg16[%c14_87, %c0_88] : memref<16x64xf32, #tpu.memory_space<vmem>>, vector<2x64xf32>
    tpu.vector_store %arg16[%c14_87, %c0_88], %259 {strides = array<i32>} : memref<16x64xf32, #tpu.memory_space<vmem>>, vector<2x64xf32>,
    %c0_89 = arith.constant 0 : index
    %c0_90 = arith.constant 0 : index
    %261 = vector.load %arg16[%c0_89, %c0_90] : memref<16x64xf32, #tpu.memory_space<vmem>>, vector<16x64xf32>
    %c0_91 = arith.constant 0 : index
    %c0_92 = arith.constant 0 : index
    %c0_93 = arith.constant 0 : index
    %262 = vector.load %arg5[%c0_91, %c0_92, %c0_93] : memref<1x64x256xf32, #tpu.memory_space<vmem>>, vector<1x64x256xf32>
    %263 = vector.shape_cast %262 : vector<1x64x256xf32> to vector<64x256xf32>
    %cst_94 = arith.constant dense<0.000000e+00> : vector<16x256xf32>
    %264 = tpu.matmul %261, %263, %cst_94 {dimension_numbers = #tpu.dot_dimension_numbers<[1], [0], [0], [1], [0, 0, 1, 1], [], []>} : vector<16x64xf32>, vector<64x256xf32>, vector<16x256xf32> -> vector<16x256xf32>
    %c0_95 = arith.constant 0 : index
    %c0_96 = arith.constant 0 : index
    %c0_97 = arith.constant 0 : index
    %265 = vector.load %arg7[%c0_95, %c0_96, %c0_97] : memref<1x1x256xf32, #tpu.memory_space<vmem>>, vector<1x1x256xf32>
    %266 = vector.shape_cast %265 : vector<1x1x256xf32> to vector<1x256xf32>
    %267 = vector.broadcast %266 : vector<1x256xf32> to vector<16x256xf32>
    %268 = arith.addf %264, %267 : vector<16x256xf32>
    %c0_98 = arith.constant 0 : index
    %c0_99 = arith.constant 0 : index
    %269 = vector.load %arg14[%c0_98, %c0_99] : memref<16x256xf32, #tpu.memory_space<vmem>>, vector<16x256xf32>
    tpu.vector_store %arg14[%c0_98, %c0_99], %268 {strides = array<i32>} : memref<16x256xf32, #tpu.memory_space<vmem>>, vector<16x256xf32>,
    %c0_100 = arith.constant 0 : index
    %c0_101 = arith.constant 0 : index
    %c0_102 = arith.constant 0 : index
    %270 = vector.load %arg6[%c0_100, %c0_101, %c0_102] : memref<1x64x256xf32, #tpu.memory_space<vmem>>, vector<1x64x256xf32>
    %271 = vector.shape_cast %270 : vector<1x64x256xf32> to vector<64x256xf32>
    %cst_103 = arith.constant dense<0.000000e+00> : vector<16x256xf32>
    %272 = tpu.matmul %261, %271, %cst_103 {dimension_numbers = #tpu.dot_dimension_numbers<[1], [0], [0], [1], [0, 0, 1, 1], [], []>} : vector<16x64xf32>, vector<64x256xf32>, vector<16x256xf32> -> vector<16x256xf32>
    %c0_104 = arith.constant 0 : index
    %c0_105 = arith.constant 0 : index
    %273 = vector.load %arg15[%c0_104, %c0_105] : memref<16x256xf32, #tpu.memory_space<vmem>>, vector<16x256xf32>
    tpu.vector_store %arg15[%c0_104, %c0_105], %272 {strides = array<i32>} : memref<16x256xf32, #tpu.memory_space<vmem>>, vector<16x256xf32>,
    %c0_106 = arith.constant 0 : index
    %c0_107 = arith.constant 0 : index
    %c0_108 = arith.constant 0 : index
    %274 = vector.load %arg8[%c0_106, %c0_107, %c0_108] : memref<1x64x256xf32, #tpu.memory_space<vmem>>, vector<1x64x256xf32>
    %275 = vector.shape_cast %274 : vector<1x64x256xf32> to vector<64x256xf32>
    %cst_109 = arith.constant 0.000000e+00 : f32
    %276 = vector.broadcast %cst_109 : f32 to vector<2x64xf32>
    %cst_110 = arith.constant 0.000000e+00 : f32
    %277 = vector.broadcast %cst_110 : f32 to vector<2x64xf32>
    %c0_111 = arith.constant 0 : index
    %c0_112 = arith.constant 0 : index
    %278 = vector.load %arg14[%c0_111, %c0_112] : memref<16x256xf32, #tpu.memory_space<vmem>>, vector<2x256xf32>
    %c14_113 = arith.constant 14 : index
    %c0_114 = arith.constant 0 : index
    %279 = vector.load %arg15[%c14_113, %c0_114] : memref<16x256xf32, #tpu.memory_space<vmem>>, vector<2x256xf32>
    %280 = arith.addf %278, %279 : vector<2x256xf32>
    %cst_115 = arith.constant dense<0.000000e+00> : vector<2x256xf32>
    %281 = tpu.matmul %276, %275, %cst_115 {dimension_numbers = #tpu.dot_dimension_numbers<[1], [0], [0], [1], [0, 0, 1, 1], [], []>} : vector<2x64xf32>, vector<64x256xf32>, vector<2x256xf32> -> vector<2x256xf32>
    %282 = arith.addf %281, %280 : vector<2x256xf32>
    %283 = vector.extract_strided_slice %282 {offsets = [0, 0], sizes = [2, 64], strides = [1, 1]} : vector<2x256xf32> to vector<2x64xf32>
    %284 = arith.negf %283 : vector<2x64xf32>
    %285 = math.exp %284 : vector<2x64xf32>
    %cst_116 = arith.constant 1.000000e+00 : f32
    %286 = vector.broadcast %cst_116 : f32 to vector<2x64xf32>
    %287 = arith.addf %286, %285 : vector<2x64xf32>
    %288 = arith.divf %286, %287 : vector<2x64xf32>
    %289 = vector.extract_strided_slice %282 {offsets = [0, 64], sizes = [2, 64], strides = [1, 1]} : vector<2x256xf32> to vector<2x64xf32>
    %290 = arith.negf %289 : vector<2x64xf32>
    %291 = math.exp %290 : vector<2x64xf32>
    %cst_117 = arith.constant 1.000000e+00 : f32
    %292 = vector.broadcast %cst_117 : f32 to vector<2x64xf32>
    %293 = arith.addf %292, %291 : vector<2x64xf32>
    %294 = arith.divf %292, %293 : vector<2x64xf32>
    %295 = vector.extract_strided_slice %282 {offsets = [0, 128], sizes = [2, 64], strides = [1, 1]} : vector<2x256xf32> to vector<2x64xf32>
    %296 = math.tanh %295 : vector<2x64xf32>
    %297 = vector.extract_strided_slice %282 {offsets = [0, 192], sizes = [2, 64], strides = [1, 1]} : vector<2x256xf32> to vector<2x64xf32>
    %298 = arith.negf %297 : vector<2x64xf32>
    %299 = math.exp %298 : vector<2x64xf32>
    %cst_118 = arith.constant 1.000000e+00 : f32
    %300 = vector.broadcast %cst_118 : f32 to vector<2x64xf32>
    %301 = arith.addf %300, %299 : vector<2x64xf32>
    %302 = arith.divf %300, %301 : vector<2x64xf32>
    %303 = arith.mulf %294, %277 : vector<2x64xf32>
    %304 = arith.mulf %288, %296 : vector<2x64xf32>
    %305 = arith.addf %303, %304 : vector<2x64xf32>
    %306 = math.tanh %305 : vector<2x64xf32>
    %307 = arith.mulf %302, %306 : vector<2x64xf32>
    %c2_119 = arith.constant 2 : index
    %c0_120 = arith.constant 0 : index
    %308 = vector.load %arg14[%c2_119, %c0_120] : memref<16x256xf32, #tpu.memory_space<vmem>>, vector<2x256xf32>
    %c12_121 = arith.constant 12 : index
    %c0_122 = arith.constant 0 : index
    %309 = vector.load %arg15[%c12_121, %c0_122] : memref<16x256xf32, #tpu.memory_space<vmem>>, vector<2x256xf32>
    %310 = arith.addf %308, %309 : vector<2x256xf32>
    %cst_123 = arith.constant dense<0.000000e+00> : vector<2x256xf32>
    %311 = tpu.matmul %307, %275, %cst_123 {dimension_numbers = #tpu.dot_dimension_numbers<[1], [0], [0], [1], [0, 0, 1, 1], [], []>} : vector<2x64xf32>, vector<64x256xf32>, vector<2x256xf32> -> vector<2x256xf32>
    %312 = arith.addf %311, %310 : vector<2x256xf32>
    %313 = vector.extract_strided_slice %312 {offsets = [0, 0], sizes = [2, 64], strides = [1, 1]} : vector<2x256xf32> to vector<2x64xf32>
    %314 = arith.negf %313 : vector<2x64xf32>
    %315 = math.exp %314 : vector<2x64xf32>
    %cst_124 = arith.constant 1.000000e+00 : f32
    %316 = vector.broadcast %cst_124 : f32 to vector<2x64xf32>
    %317 = arith.addf %316, %315 : vector<2x64xf32>
    %318 = arith.divf %316, %317 : vector<2x64xf32>
    %319 = vector.extract_strided_slice %312 {offsets = [0, 64], sizes = [2, 64], strides = [1, 1]} : vector<2x256xf32> to vector<2x64xf32>
    %320 = arith.negf %319 : vector<2x64xf32>
    %321 = math.exp %320 : vector<2x64xf32>
    %cst_125 = arith.constant 1.000000e+00 : f32
    %322 = vector.broadcast %cst_125 : f32 to vector<2x64xf32>
    %323 = arith.addf %322, %321 : vector<2x64xf32>
    %324 = arith.divf %322, %323 : vector<2x64xf32>
    %325 = vector.extract_strided_slice %312 {offsets = [0, 128], sizes = [2, 64], strides = [1, 1]} : vector<2x256xf32> to vector<2x64xf32>
    %326 = math.tanh %325 : vector<2x64xf32>
    %327 = vector.extract_strided_slice %312 {offsets = [0, 192], sizes = [2, 64], strides = [1, 1]} : vector<2x256xf32> to vector<2x64xf32>
    %328 = arith.negf %327 : vector<2x64xf32>
    %329 = math.exp %328 : vector<2x64xf32>
    %cst_126 = arith.constant 1.000000e+00 : f32
    %330 = vector.broadcast %cst_126 : f32 to vector<2x64xf32>
    %331 = arith.addf %330, %329 : vector<2x64xf32>
    %332 = arith.divf %330, %331 : vector<2x64xf32>
    %333 = arith.mulf %324, %305 : vector<2x64xf32>
    %334 = arith.mulf %318, %326 : vector<2x64xf32>
    %335 = arith.addf %333, %334 : vector<2x64xf32>
    %336 = math.tanh %335 : vector<2x64xf32>
    %337 = arith.mulf %332, %336 : vector<2x64xf32>
    %c4_127 = arith.constant 4 : index
    %c0_128 = arith.constant 0 : index
    %338 = vector.load %arg14[%c4_127, %c0_128] : memref<16x256xf32, #tpu.memory_space<vmem>>, vector<2x256xf32>
    %c10_129 = arith.constant 10 : index
    %c0_130 = arith.constant 0 : index
    %339 = vector.load %arg15[%c10_129, %c0_130] : memref<16x256xf32, #tpu.memory_space<vmem>>, vector<2x256xf32>
    %340 = arith.addf %338, %339 : vector<2x256xf32>
    %cst_131 = arith.constant dense<0.000000e+00> : vector<2x256xf32>
    %341 = tpu.matmul %337, %275, %cst_131 {dimension_numbers = #tpu.dot_dimension_numbers<[1], [0], [0], [1], [0, 0, 1, 1], [], []>} : vector<2x64xf32>, vector<64x256xf32>, vector<2x256xf32> -> vector<2x256xf32>
    %342 = arith.addf %341, %340 : vector<2x256xf32>
    %343 = vector.extract_strided_slice %342 {offsets = [0, 0], sizes = [2, 64], strides = [1, 1]} : vector<2x256xf32> to vector<2x64xf32>
    %344 = arith.negf %343 : vector<2x64xf32>
    %345 = math.exp %344 : vector<2x64xf32>
    %cst_132 = arith.constant 1.000000e+00 : f32
    %346 = vector.broadcast %cst_132 : f32 to vector<2x64xf32>
    %347 = arith.addf %346, %345 : vector<2x64xf32>
    %348 = arith.divf %346, %347 : vector<2x64xf32>
    %349 = vector.extract_strided_slice %342 {offsets = [0, 64], sizes = [2, 64], strides = [1, 1]} : vector<2x256xf32> to vector<2x64xf32>
    %350 = arith.negf %349 : vector<2x64xf32>
    %351 = math.exp %350 : vector<2x64xf32>
    %cst_133 = arith.constant 1.000000e+00 : f32
    %352 = vector.broadcast %cst_133 : f32 to vector<2x64xf32>
    %353 = arith.addf %352, %351 : vector<2x64xf32>
    %354 = arith.divf %352, %353 : vector<2x64xf32>
    %355 = vector.extract_strided_slice %342 {offsets = [0, 128], sizes = [2, 64], strides = [1, 1]} : vector<2x256xf32> to vector<2x64xf32>
    %356 = math.tanh %355 : vector<2x64xf32>
    %357 = vector.extract_strided_slice %342 {offsets = [0, 192], sizes = [2, 64], strides = [1, 1]} : vector<2x256xf32> to vector<2x64xf32>
    %358 = arith.negf %357 : vector<2x64xf32>
    %359 = math.exp %358 : vector<2x64xf32>
    %cst_134 = arith.constant 1.000000e+00 : f32
    %360 = vector.broadcast %cst_134 : f32 to vector<2x64xf32>
    %361 = arith.addf %360, %359 : vector<2x64xf32>
    %362 = arith.divf %360, %361 : vector<2x64xf32>
    %363 = arith.mulf %354, %335 : vector<2x64xf32>
    %364 = arith.mulf %348, %356 : vector<2x64xf32>
    %365 = arith.addf %363, %364 : vector<2x64xf32>
    %366 = math.tanh %365 : vector<2x64xf32>
    %367 = arith.mulf %362, %366 : vector<2x64xf32>
    %c6_135 = arith.constant 6 : index
    %c0_136 = arith.constant 0 : index
    %368 = vector.load %arg14[%c6_135, %c0_136] : memref<16x256xf32, #tpu.memory_space<vmem>>, vector<2x256xf32>
    %c8_137 = arith.constant 8 : index
    %c0_138 = arith.constant 0 : index
    %369 = vector.load %arg15[%c8_137, %c0_138] : memref<16x256xf32, #tpu.memory_space<vmem>>, vector<2x256xf32>
    %370 = arith.addf %368, %369 : vector<2x256xf32>
    %cst_139 = arith.constant dense<0.000000e+00> : vector<2x256xf32>
    %371 = tpu.matmul %367, %275, %cst_139 {dimension_numbers = #tpu.dot_dimension_numbers<[1], [0], [0], [1], [0, 0, 1, 1], [], []>} : vector<2x64xf32>, vector<64x256xf32>, vector<2x256xf32> -> vector<2x256xf32>
    %372 = arith.addf %371, %370 : vector<2x256xf32>
    %373 = vector.extract_strided_slice %372 {offsets = [0, 0], sizes = [2, 64], strides = [1, 1]} : vector<2x256xf32> to vector<2x64xf32>
    %374 = arith.negf %373 : vector<2x64xf32>
    %375 = math.exp %374 : vector<2x64xf32>
    %cst_140 = arith.constant 1.000000e+00 : f32
    %376 = vector.broadcast %cst_140 : f32 to vector<2x64xf32>
    %377 = arith.addf %376, %375 : vector<2x64xf32>
    %378 = arith.divf %376, %377 : vector<2x64xf32>
    %379 = vector.extract_strided_slice %372 {offsets = [0, 64], sizes = [2, 64], strides = [1, 1]} : vector<2x256xf32> to vector<2x64xf32>
    %380 = arith.negf %379 : vector<2x64xf32>
    %381 = math.exp %380 : vector<2x64xf32>
    %cst_141 = arith.constant 1.000000e+00 : f32
    %382 = vector.broadcast %cst_141 : f32 to vector<2x64xf32>
    %383 = arith.addf %382, %381 : vector<2x64xf32>
    %384 = arith.divf %382, %383 : vector<2x64xf32>
    %385 = vector.extract_strided_slice %372 {offsets = [0, 128], sizes = [2, 64], strides = [1, 1]} : vector<2x256xf32> to vector<2x64xf32>
    %386 = math.tanh %385 : vector<2x64xf32>
    %387 = vector.extract_strided_slice %372 {offsets = [0, 192], sizes = [2, 64], strides = [1, 1]} : vector<2x256xf32> to vector<2x64xf32>
    %388 = arith.negf %387 : vector<2x64xf32>
    %389 = math.exp %388 : vector<2x64xf32>
    %cst_142 = arith.constant 1.000000e+00 : f32
    %390 = vector.broadcast %cst_142 : f32 to vector<2x64xf32>
    %391 = arith.addf %390, %389 : vector<2x64xf32>
    %392 = arith.divf %390, %391 : vector<2x64xf32>
    %393 = arith.mulf %384, %365 : vector<2x64xf32>
    %394 = arith.mulf %378, %386 : vector<2x64xf32>
    %395 = arith.addf %393, %394 : vector<2x64xf32>
    %396 = math.tanh %395 : vector<2x64xf32>
    %397 = arith.mulf %392, %396 : vector<2x64xf32>
    %c8_143 = arith.constant 8 : index
    %c0_144 = arith.constant 0 : index
    %398 = vector.load %arg14[%c8_143, %c0_144] : memref<16x256xf32, #tpu.memory_space<vmem>>, vector<2x256xf32>
    %c6_145 = arith.constant 6 : index
    %c0_146 = arith.constant 0 : index
    %399 = vector.load %arg15[%c6_145, %c0_146] : memref<16x256xf32, #tpu.memory_space<vmem>>, vector<2x256xf32>
    %400 = arith.addf %398, %399 : vector<2x256xf32>
    %cst_147 = arith.constant dense<0.000000e+00> : vector<2x256xf32>
    %401 = tpu.matmul %397, %275, %cst_147 {dimension_numbers = #tpu.dot_dimension_numbers<[1], [0], [0], [1], [0, 0, 1, 1], [], []>} : vector<2x64xf32>, vector<64x256xf32>, vector<2x256xf32> -> vector<2x256xf32>
    %402 = arith.addf %401, %400 : vector<2x256xf32>
    %403 = vector.extract_strided_slice %402 {offsets = [0, 0], sizes = [2, 64], strides = [1, 1]} : vector<2x256xf32> to vector<2x64xf32>
    %404 = arith.negf %403 : vector<2x64xf32>
    %405 = math.exp %404 : vector<2x64xf32>
    %cst_148 = arith.constant 1.000000e+00 : f32
    %406 = vector.broadcast %cst_148 : f32 to vector<2x64xf32>
    %407 = arith.addf %406, %405 : vector<2x64xf32>
    %408 = arith.divf %406, %407 : vector<2x64xf32>
    %409 = vector.extract_strided_slice %402 {offsets = [0, 64], sizes = [2, 64], strides = [1, 1]} : vector<2x256xf32> to vector<2x64xf32>
    %410 = arith.negf %409 : vector<2x64xf32>
    %411 = math.exp %410 : vector<2x64xf32>
    %cst_149 = arith.constant 1.000000e+00 : f32
    %412 = vector.broadcast %cst_149 : f32 to vector<2x64xf32>
    %413 = arith.addf %412, %411 : vector<2x64xf32>
    %414 = arith.divf %412, %413 : vector<2x64xf32>
    %415 = vector.extract_strided_slice %402 {offsets = [0, 128], sizes = [2, 64], strides = [1, 1]} : vector<2x256xf32> to vector<2x64xf32>
    %416 = math.tanh %415 : vector<2x64xf32>
    %417 = vector.extract_strided_slice %402 {offsets = [0, 192], sizes = [2, 64], strides = [1, 1]} : vector<2x256xf32> to vector<2x64xf32>
    %418 = arith.negf %417 : vector<2x64xf32>
    %419 = math.exp %418 : vector<2x64xf32>
    %cst_150 = arith.constant 1.000000e+00 : f32
    %420 = vector.broadcast %cst_150 : f32 to vector<2x64xf32>
    %421 = arith.addf %420, %419 : vector<2x64xf32>
    %422 = arith.divf %420, %421 : vector<2x64xf32>
    %423 = arith.mulf %414, %395 : vector<2x64xf32>
    %424 = arith.mulf %408, %416 : vector<2x64xf32>
    %425 = arith.addf %423, %424 : vector<2x64xf32>
    %426 = math.tanh %425 : vector<2x64xf32>
    %427 = arith.mulf %422, %426 : vector<2x64xf32>
    %c10_151 = arith.constant 10 : index
    %c0_152 = arith.constant 0 : index
    %428 = vector.load %arg14[%c10_151, %c0_152] : memref<16x256xf32, #tpu.memory_space<vmem>>, vector<2x256xf32>
    %c4_153 = arith.constant 4 : index
    %c0_154 = arith.constant 0 : index
    %429 = vector.load %arg15[%c4_153, %c0_154] : memref<16x256xf32, #tpu.memory_space<vmem>>, vector<2x256xf32>
    %430 = arith.addf %428, %429 : vector<2x256xf32>
    %cst_155 = arith.constant dense<0.000000e+00> : vector<2x256xf32>
    %431 = tpu.matmul %427, %275, %cst_155 {dimension_numbers = #tpu.dot_dimension_numbers<[1], [0], [0], [1], [0, 0, 1, 1], [], []>} : vector<2x64xf32>, vector<64x256xf32>, vector<2x256xf32> -> vector<2x256xf32>
    %432 = arith.addf %431, %430 : vector<2x256xf32>
    %433 = vector.extract_strided_slice %432 {offsets = [0, 0], sizes = [2, 64], strides = [1, 1]} : vector<2x256xf32> to vector<2x64xf32>
    %434 = arith.negf %433 : vector<2x64xf32>
    %435 = math.exp %434 : vector<2x64xf32>
    %cst_156 = arith.constant 1.000000e+00 : f32
    %436 = vector.broadcast %cst_156 : f32 to vector<2x64xf32>
    %437 = arith.addf %436, %435 : vector<2x64xf32>
    %438 = arith.divf %436, %437 : vector<2x64xf32>
    %439 = vector.extract_strided_slice %432 {offsets = [0, 64], sizes = [2, 64], strides = [1, 1]} : vector<2x256xf32> to vector<2x64xf32>
    %440 = arith.negf %439 : vector<2x64xf32>
    %441 = math.exp %440 : vector<2x64xf32>
    %cst_157 = arith.constant 1.000000e+00 : f32
    %442 = vector.broadcast %cst_157 : f32 to vector<2x64xf32>
    %443 = arith.addf %442, %441 : vector<2x64xf32>
    %444 = arith.divf %442, %443 : vector<2x64xf32>
    %445 = vector.extract_strided_slice %432 {offsets = [0, 128], sizes = [2, 64], strides = [1, 1]} : vector<2x256xf32> to vector<2x64xf32>
    %446 = math.tanh %445 : vector<2x64xf32>
    %447 = vector.extract_strided_slice %432 {offsets = [0, 192], sizes = [2, 64], strides = [1, 1]} : vector<2x256xf32> to vector<2x64xf32>
    %448 = arith.negf %447 : vector<2x64xf32>
    %449 = math.exp %448 : vector<2x64xf32>
    %cst_158 = arith.constant 1.000000e+00 : f32
    %450 = vector.broadcast %cst_158 : f32 to vector<2x64xf32>
    %451 = arith.addf %450, %449 : vector<2x64xf32>
    %452 = arith.divf %450, %451 : vector<2x64xf32>
    %453 = arith.mulf %444, %425 : vector<2x64xf32>
    %454 = arith.mulf %438, %446 : vector<2x64xf32>
    %455 = arith.addf %453, %454 : vector<2x64xf32>
    %456 = math.tanh %455 : vector<2x64xf32>
    %457 = arith.mulf %452, %456 : vector<2x64xf32>
    %c12_159 = arith.constant 12 : index
    %c0_160 = arith.constant 0 : index
    %458 = vector.load %arg14[%c12_159, %c0_160] : memref<16x256xf32, #tpu.memory_space<vmem>>, vector<2x256xf32>
    %c2_161 = arith.constant 2 : index
    %c0_162 = arith.constant 0 : index
    %459 = vector.load %arg15[%c2_161, %c0_162] : memref<16x256xf32, #tpu.memory_space<vmem>>, vector<2x256xf32>
    %460 = arith.addf %458, %459 : vector<2x256xf32>
    %cst_163 = arith.constant dense<0.000000e+00> : vector<2x256xf32>
    %461 = tpu.matmul %457, %275, %cst_163 {dimension_numbers = #tpu.dot_dimension_numbers<[1], [0], [0], [1], [0, 0, 1, 1], [], []>} : vector<2x64xf32>, vector<64x256xf32>, vector<2x256xf32> -> vector<2x256xf32>
    %462 = arith.addf %461, %460 : vector<2x256xf32>
    %463 = vector.extract_strided_slice %462 {offsets = [0, 0], sizes = [2, 64], strides = [1, 1]} : vector<2x256xf32> to vector<2x64xf32>
    %464 = arith.negf %463 : vector<2x64xf32>
    %465 = math.exp %464 : vector<2x64xf32>
    %cst_164 = arith.constant 1.000000e+00 : f32
    %466 = vector.broadcast %cst_164 : f32 to vector<2x64xf32>
    %467 = arith.addf %466, %465 : vector<2x64xf32>
    %468 = arith.divf %466, %467 : vector<2x64xf32>
    %469 = vector.extract_strided_slice %462 {offsets = [0, 64], sizes = [2, 64], strides = [1, 1]} : vector<2x256xf32> to vector<2x64xf32>
    %470 = arith.negf %469 : vector<2x64xf32>
    %471 = math.exp %470 : vector<2x64xf32>
    %cst_165 = arith.constant 1.000000e+00 : f32
    %472 = vector.broadcast %cst_165 : f32 to vector<2x64xf32>
    %473 = arith.addf %472, %471 : vector<2x64xf32>
    %474 = arith.divf %472, %473 : vector<2x64xf32>
    %475 = vector.extract_strided_slice %462 {offsets = [0, 128], sizes = [2, 64], strides = [1, 1]} : vector<2x256xf32> to vector<2x64xf32>
    %476 = math.tanh %475 : vector<2x64xf32>
    %477 = vector.extract_strided_slice %462 {offsets = [0, 192], sizes = [2, 64], strides = [1, 1]} : vector<2x256xf32> to vector<2x64xf32>
    %478 = arith.negf %477 : vector<2x64xf32>
    %479 = math.exp %478 : vector<2x64xf32>
    %cst_166 = arith.constant 1.000000e+00 : f32
    %480 = vector.broadcast %cst_166 : f32 to vector<2x64xf32>
    %481 = arith.addf %480, %479 : vector<2x64xf32>
    %482 = arith.divf %480, %481 : vector<2x64xf32>
    %483 = arith.mulf %474, %455 : vector<2x64xf32>
    %484 = arith.mulf %468, %476 : vector<2x64xf32>
    %485 = arith.addf %483, %484 : vector<2x64xf32>
    %486 = math.tanh %485 : vector<2x64xf32>
    %487 = arith.mulf %482, %486 : vector<2x64xf32>
    %c14_167 = arith.constant 14 : index
    %c0_168 = arith.constant 0 : index
    %488 = vector.load %arg14[%c14_167, %c0_168] : memref<16x256xf32, #tpu.memory_space<vmem>>, vector<2x256xf32>
    %c0_169 = arith.constant 0 : index
    %c0_170 = arith.constant 0 : index
    %489 = vector.load %arg15[%c0_169, %c0_170] : memref<16x256xf32, #tpu.memory_space<vmem>>, vector<2x256xf32>
    %490 = arith.addf %488, %489 : vector<2x256xf32>
    %cst_171 = arith.constant dense<0.000000e+00> : vector<2x256xf32>
    %491 = tpu.matmul %487, %275, %cst_171 {dimension_numbers = #tpu.dot_dimension_numbers<[1], [0], [0], [1], [0, 0, 1, 1], [], []>} : vector<2x64xf32>, vector<64x256xf32>, vector<2x256xf32> -> vector<2x256xf32>
    %492 = arith.addf %491, %490 : vector<2x256xf32>
    %493 = vector.extract_strided_slice %492 {offsets = [0, 0], sizes = [2, 64], strides = [1, 1]} : vector<2x256xf32> to vector<2x64xf32>
    %494 = arith.negf %493 : vector<2x64xf32>
    %495 = math.exp %494 : vector<2x64xf32>
    %cst_172 = arith.constant 1.000000e+00 : f32
    %496 = vector.broadcast %cst_172 : f32 to vector<2x64xf32>
    %497 = arith.addf %496, %495 : vector<2x64xf32>
    %498 = arith.divf %496, %497 : vector<2x64xf32>
    %499 = vector.extract_strided_slice %492 {offsets = [0, 64], sizes = [2, 64], strides = [1, 1]} : vector<2x256xf32> to vector<2x64xf32>
    %500 = arith.negf %499 : vector<2x64xf32>
    %501 = math.exp %500 : vector<2x64xf32>
    %cst_173 = arith.constant 1.000000e+00 : f32
    %502 = vector.broadcast %cst_173 : f32 to vector<2x64xf32>
    %503 = arith.addf %502, %501 : vector<2x64xf32>
    %504 = arith.divf %502, %503 : vector<2x64xf32>
    %505 = vector.extract_strided_slice %492 {offsets = [0, 128], sizes = [2, 64], strides = [1, 1]} : vector<2x256xf32> to vector<2x64xf32>
    %506 = math.tanh %505 : vector<2x64xf32>
    %507 = vector.extract_strided_slice %492 {offsets = [0, 192], sizes = [2, 64], strides = [1, 1]} : vector<2x256xf32> to vector<2x64xf32>
    %508 = arith.negf %507 : vector<2x64xf32>
    %509 = math.exp %508 : vector<2x64xf32>
    %cst_174 = arith.constant 1.000000e+00 : f32
    %510 = vector.broadcast %cst_174 : f32 to vector<2x64xf32>
    %511 = arith.addf %510, %509 : vector<2x64xf32>
    %512 = arith.divf %510, %511 : vector<2x64xf32>
    %513 = arith.mulf %504, %485 : vector<2x64xf32>
    %514 = arith.mulf %498, %506 : vector<2x64xf32>
    %515 = arith.addf %513, %514 : vector<2x64xf32>
    %516 = math.tanh %515 : vector<2x64xf32>
    %517 = arith.mulf %512, %516 : vector<2x64xf32>
    %c0_175 = arith.constant 0 : index
    %c0_176 = arith.constant 0 : index
    %518 = vector.load %arg16[%c0_175, %c0_176] : memref<16x64xf32, #tpu.memory_space<vmem>>, vector<2x64xf32>
    tpu.vector_store %arg16[%c0_175, %c0_176], %517 {strides = array<i32>} : memref<16x64xf32, #tpu.memory_space<vmem>>, vector<2x64xf32>,
    %c0_177 = arith.constant 0 : index
    %c0_178 = arith.constant 0 : index
    %519 = vector.load %arg16[%c0_177, %c0_178] : memref<16x64xf32, #tpu.memory_space<vmem>>, vector<1x32xf32>
    %c0_179 = arith.constant 0 : index
    %c0_180 = arith.constant 0 : index
    %520 = vector.load %arg17[%c0_179, %c0_180] : memref<2x64xf32, #tpu.memory_space<vmem>>, vector<1x32xf32>
    tpu.vector_store %arg17[%c0_179, %c0_180], %519 {strides = array<i32>} : memref<2x64xf32, #tpu.memory_space<vmem>>, vector<1x32xf32>,
    %c1 = arith.constant 1 : index
    %c0_181 = arith.constant 0 : index
    %521 = vector.load %arg16[%c1, %c0_181] : memref<16x64xf32, #tpu.memory_space<vmem>>, vector<1x32xf32>
    %c0_182 = arith.constant 0 : index
    %c32 = arith.constant 32 : index
    %522 = vector.load %arg17[%c0_182, %c32] : memref<2x64xf32, #tpu.memory_space<vmem>>, vector<1x32xf32>
    tpu.vector_store %arg17[%c0_182, %c32], %521 {strides = array<i32>} : memref<2x64xf32, #tpu.memory_space<vmem>>, vector<1x32xf32>,
    %c0_183 = arith.constant 0 : index
    %c32_184 = arith.constant 32 : index
    %523 = vector.load %arg16[%c0_183, %c32_184] : memref<16x64xf32, #tpu.memory_space<vmem>>, vector<1x32xf32>
    %c1_185 = arith.constant 1 : index
    %c0_186 = arith.constant 0 : index
    %524 = vector.load %arg17[%c1_185, %c0_186] : memref<2x64xf32, #tpu.memory_space<vmem>>, vector<1x32xf32>
    tpu.vector_store %arg17[%c1_185, %c0_186], %523 {strides = array<i32>} : memref<2x64xf32, #tpu.memory_space<vmem>>, vector<1x32xf32>,
    %c1_187 = arith.constant 1 : index
    %c32_188 = arith.constant 32 : index
    %525 = vector.load %arg16[%c1_187, %c32_188] : memref<16x64xf32, #tpu.memory_space<vmem>>, vector<1x32xf32>
    %c1_189 = arith.constant 1 : index
    %c32_190 = arith.constant 32 : index
    %526 = vector.load %arg17[%c1_189, %c32_190] : memref<2x64xf32, #tpu.memory_space<vmem>>, vector<1x32xf32>
    tpu.vector_store %arg17[%c1_189, %c32_190], %525 {strides = array<i32>} : memref<2x64xf32, #tpu.memory_space<vmem>>, vector<1x32xf32>,
    %c0_191 = arith.constant 0 : index
    %c0_192 = arith.constant 0 : index
    %527 = vector.load %arg17[%c0_191, %c0_192] : memref<2x64xf32, #tpu.memory_space<vmem>>, vector<2x64xf32>
    %c0_193 = arith.constant 0 : index
    %c0_194 = arith.constant 0 : index
    %528 = vector.load %arg9[%c0_193, %c0_194] : memref<64x32xf32, #tpu.memory_space<vmem>>, vector<64x32xf32>
    %cst_195 = arith.constant dense<0.000000e+00> : vector<2x32xf32>
    %529 = tpu.matmul %527, %528, %cst_195 {dimension_numbers = #tpu.dot_dimension_numbers<[1], [0], [0], [1], [0, 0, 1, 1], [], []>} : vector<2x64xf32>, vector<64x32xf32>, vector<2x32xf32> -> vector<2x32xf32>
    %c0_196 = arith.constant 0 : index
    %c0_197 = arith.constant 0 : index
    %530 = vector.load %arg10[%c0_196, %c0_197] : memref<1x32xf32, #tpu.memory_space<vmem>>, vector<1x32xf32>
    %531 = vector.broadcast %530 : vector<1x32xf32> to vector<2x32xf32>
    %532 = arith.addf %529, %531 : vector<2x32xf32>
    %cst_198 = arith.constant 0.000000e+00 : f32
    %533 = vector.broadcast %cst_198 : f32 to vector<2x32xf32>
    %534 = arith.cmpf ogt, %532, %533 : vector<2x32xf32>
    %cst_199 = arith.constant 0.00999999977 : f32
    %535 = vector.broadcast %cst_199 : f32 to vector<2x32xf32>
    %536 = arith.mulf %535, %532 : vector<2x32xf32>
    %537 = arith.select %534, %532, %536 : vector<2x32xi1>, vector<2x32xf32>
    %c0_200 = arith.constant 0 : index
    %c0_201 = arith.constant 0 : index
    %538 = vector.load %arg11[%c0_200, %c0_201] : memref<32x4xf32, #tpu.memory_space<vmem>>, vector<32x4xf32>
    %cst_202 = arith.constant dense<0.000000e+00> : vector<2x4xf32>
    %539 = tpu.matmul %537, %538, %cst_202 {dimension_numbers = #tpu.dot_dimension_numbers<[1], [0], [0], [1], [0, 0, 1, 1], [], []>} : vector<2x32xf32>, vector<32x4xf32>, vector<2x4xf32> -> vector<2x4xf32>
    %c0_203 = arith.constant 0 : index
    %c0_204 = arith.constant 0 : index
    %540 = vector.load %arg12[%c0_203, %c0_204] : memref<1x4xf32, #tpu.memory_space<vmem>>, vector<1x4xf32>
    %541 = vector.broadcast %540 : vector<1x4xf32> to vector<2x4xf32>
    %542 = arith.addf %539, %541 : vector<2x4xf32>
    %c0_205 = arith.constant 0 : index
    %c0_206 = arith.constant 0 : index
    %543 = vector.load %arg13[%c0_205, %c0_206] : memref<2x4xf32, #tpu.memory_space<vmem>>, vector<2x4xf32>
    tpu.vector_store %arg13[%c0_205, %c0_206], %542 {strides = array<i32>} : memref<2x4xf32, #tpu.memory_space<vmem>>, vector<2x4xf32>,
    return
  }
}

</mosaic_0001>

<llo_original>
// kernel: lstm_model_forward.1
$region0: #{lstm_model_forward.1}
  #allocation0 [shape = 'u32[]', space=smem, size = 0x4, offset = 0x4, fixed_abs, tag = 'smem constant byte address 0x4 - core index']
  #allocation1 [shape = 'u32[72,128]{1,0:T(1,128)}', space=vmem, size = 0x9000, scoped, tag = 'internal scratch']
  #allocation2 [shape = 'f32[16,256]{1,0:T(8,128)}', space=vmem, size = 0x4000, scoped, tag = 'scratch operand']
  #allocation3 [shape = 'f32[16,256]{1,0:T(8,128)}', space=vmem, size = 0x4000, scoped, tag = 'scratch operand']
  #allocation4 [shape = 'f32[16,64]{1,0:T(8,128)}', space=vmem, size = 0x2000, scoped, tag = 'scratch operand']
  #allocation5 [shape = 'f32[2,64]{1,0:T(2,128)}', space=vmem, size = 0x400, scoped, tag = 'scratch operand']
  %s0 = inlined_call_operand.vmem [shape: f32[16,2], index: 0, kind: input, shape index: {}]
  %s1 = inlined_call_operand.vmem [shape: f32[2,256], index: 1, kind: input, shape index: {}]
  %s2 = inlined_call_operand.vmem [shape: f32[2,256], index: 2, kind: input, shape index: {}]
  %s3 = inlined_call_operand.vmem [shape: f32[1,256], index: 3, kind: input, shape index: {}]
  %s4 = inlined_call_operand.hbm [shape: f32[64,256], index: 4, kind: input, shape index: {}]
  %s5 = inlined_call_operand.hbm [shape: f32[1,64,256], index: 5, kind: input, shape index: {}]
  %s6 = inlined_call_operand.hbm [shape: f32[1,64,256], index: 6, kind: input, shape index: {}]
  %s7 = inlined_call_operand.vmem [shape: f32[1,1,256], index: 7, kind: input, shape index: {}]
  %s8 = inlined_call_operand.hbm [shape: f32[1,64,256], index: 8, kind: input, shape index: {}]
  %s9 = inlined_call_operand.vmem [shape: f32[64,32], index: 9, kind: input, shape index: {}]
  %s10 = inlined_call_operand.vmem [shape: f32[1,32], index: 10, kind: input, shape index: {}]
  %s11 = inlined_call_operand.vmem [shape: f32[32,4], index: 11, kind: input, shape index: {}]
  %s12 = inlined_call_operand.vmem [shape: f32[1,4], index: 12, kind: input, shape index: {}]
  %s13 = inlined_call_operand.hbm [shape: f32[2,4], index: 13, kind: output, shape index: {}]
  %s14 = sld [smem:[#allocation0]]
  $region78: #{lstm_model_forward.1} parent=0
    _
  %s16 = ssub.s32 1, %s14
  %s17 = scalar_select 0, %s16, %s14
  $region1: #{lstm_model_forward.1} parent=0
    #allocation6 [shape = 'u8[65536]{0}', space=vmem, size = 0x10000, scoped, tag = 'input window, operand 4, single buffered']
    #allocation7 [shape = 's32[1]{0}', space=sflag, size = 0x4, scoped, tag = 'scoped memory for lstm_model_forward.1']
    #allocation8 [shape = 's32[1]{0}', space=sflag, size = 0x4, scoped, tag = 'scoped memory for lstm_model_forward.1']
    #allocation9 [shape = 'u8[65536]{0}', space=vmem, size = 0x10000, scoped, tag = 'input window, operand 5, single buffered']
    #allocation10 [shape = 's32[1]{0}', space=sflag, size = 0x4, scoped, tag = 'scoped memory for lstm_model_forward.1']
    #allocation11 [shape = 'u8[65536]{0}', space=vmem, size = 0x10000, scoped, tag = 'input window, operand 6, single buffered']
    #allocation12 [shape = 'u8[65536]{0}', space=vmem, size = 0x10000, scoped, tag = 'input window, operand 8, single buffered']
    #allocation13 [shape = 's32[1]{0}', space=sflag, size = 0x4, scoped, tag = 'scoped memory for lstm_model_forward.1']
    #allocation14 [shape = 'u8[1024]{0}', space=vmem, size = 0x400, scoped, tag = 'output window, operand 0, single buffered']
    %18 = vsyncpa [#allocation7], 0
    %19 = vsyncpa [#allocation10], 0
    %20 = vsyncpa [#allocation13], 0
    %21 = vsyncpa [#allocation8], 0
    // Predicated region
    $region2: #{lstm_model_forward.1} parent=1 // pred_check
      _
    $region3: #{lstm_model_forward.1} parent=1 // pred_check_branch
      %23 = sbr.rel (0) target = $region5
    $region4: #{lstm_model_forward.1} parent=1 // pred_region
      _
    $region5: #{lstm_model_forward.1} parent=1 // pred_fallthru
      _
    // Predicated region
    $region6: #{lstm_model_forward.1} parent=1 // pred_check
      _
    $region7: #{lstm_model_forward.1} parent=1 // pred_check_branch
      %25 = sbr.rel (0) target = $region9
    $region8: #{lstm_model_forward.1} parent=1 // pred_region
      _
    $region9: #{lstm_model_forward.1} parent=1 // pred_fallthru
      _
    // Predicated region
    $region10: #{lstm_model_forward.1} parent=1 // pred_check
      _
    $region11: #{lstm_model_forward.1} parent=1 // pred_check_branch
      %27 = sbr.rel (0) target = $region13
    $region12: #{lstm_model_forward.1} parent=1 // pred_region
      _
    $region13: #{lstm_model_forward.1} parent=1 // pred_fallthru
      _
    // Predicated region
    $region14: #{lstm_model_forward.1} parent=1 // pred_check
      _
    $region15: #{lstm_model_forward.1} parent=1 // pred_check_branch
      %29 = sbr.rel (0) target = $region17
    $region16: #{lstm_model_forward.1} parent=1 // pred_region
      _
    $region17: #{lstm_model_forward.1} parent=1 // pred_fallthru
      _
    // Predicated region
    $region18: #{lstm_model_forward.1} parent=1 // pred_check
      _
    $region19: #{lstm_model_forward.1} parent=1 // pred_check_branch
      %31 = sbr.rel (0) target = $region21
    $region20: #{lstm_model_forward.1} parent=1 // pred_region
      %33 = vsyncadd [#allocation7], 0
      %s34 = sshll.u32 %s4, 4
      %s35 = int_to_ptr.hbm [resolvable:$true] %s34
      %s36 = sshll.u32 [#allocation6], 4
      %s37 = int_to_ptr.vmem [resolvable:$true] %s36
      %42 = dma.hbm_to_vmem [thread:$0]  %s35, 2048, %s37, [#allocation7], 256, 256, 16
    $region21: #{lstm_model_forward.1} parent=1 // pred_fallthru
      _
    // Predicated region
    $region22: #{lstm_model_forward.1} parent=1 // pred_check
      _
    $region23: #{lstm_model_forward.1} parent=1 // pred_check_branch
      %44 = sbr.rel (0) target = $region25
    $region24: #{lstm_model_forward.1} parent=1 // pred_region
      %46 = vsyncadd [#allocation10], 0
      %s47 = sshll.u32 %s5, 4
      %s48 = int_to_ptr.hbm [resolvable:$true] %s47
      %s49 = sshll.u32 [#allocation9], 4
      %s50 = int_to_ptr.vmem [resolvable:$true] %s49
      %55 = dma.hbm_to_vmem [thread:$0]  %s48, 2048, %s50, [#allocation10], 256, 256, 16
    $region25: #{lstm_model_forward.1} parent=1 // pred_fallthru
      _
    // Predicated region
    $region26: #{lstm_model_forward.1} parent=1 // pred_check
      _
    $region27: #{lstm_model_forward.1} parent=1 // pred_check_branch
      %57 = sbr.rel (0) target = $region29
    $region28: #{lstm_model_forward.1} parent=1 // pred_region
      %59 = vsyncadd [#allocation10], 0
      %s60 = sshll.u32 %s6, 4
      %s61 = int_to_ptr.hbm [resolvable:$true] %s60
      %s62 = sshll.u32 [#allocation11], 4
      %s63 = int_to_ptr.vmem [resolvable:$true] %s62
      %68 = dma.hbm_to_vmem [thread:$0]  %s61, 2048, %s63, [#allocation10], 256, 256, 16
    $region29: #{lstm_model_forward.1} parent=1 // pred_fallthru
      _
    // Predicated region
    $region30: #{lstm_model_forward.1} parent=1 // pred_check
      _
    $region31: #{lstm_model_forward.1} parent=1 // pred_check_branch
      %70 = sbr.rel (0) target = $region33
    $region32: #{lstm_model_forward.1} parent=1 // pred_region
      _
    $region33: #{lstm_model_forward.1} parent=1 // pred_fallthru
      _
    // Predicated region
    $region34: #{lstm_model_forward.1} parent=1 // pred_check
      _
    $region35: #{lstm_model_forward.1} parent=1 // pred_check_branch
      %72 = sbr.rel (0) target = $region37
    $region36: #{lstm_model_forward.1} parent=1 // pred_region
      %74 = vsyncadd [#allocation13], 0
      %s75 = sshll.u32 %s8, 4
      %s76 = int_to_ptr.hbm [resolvable:$true] %s75
      %s77 = sshll.u32 [#allocation12], 4
      %s78 = int_to_ptr.vmem [resolvable:$true] %s77
      %83 = dma.hbm_to_vmem [thread:$0]  %s76, 2048, %s78, [#allocation13], 256, 256, 16
    $region37: #{lstm_model_forward.1} parent=1 // pred_fallthru
      _
    // Predicated region
    $region38: #{lstm_model_forward.1} parent=1 // pred_check
      _
    $region39: #{lstm_model_forward.1} parent=1 // pred_check_branch
      %85 = sbr.rel (0) target = $region41
    $region40: #{lstm_model_forward.1} parent=1 // pred_region
      _
    $region41: #{lstm_model_forward.1} parent=1 // pred_fallthru
      _
    // Predicated region
    $region42: #{lstm_model_forward.1} parent=1 // pred_check
      _
    $region43: #{lstm_model_forward.1} parent=1 // pred_check_branch
      %87 = sbr.rel (0) target = $region45
    $region44: #{lstm_model_forward.1} parent=1 // pred_region
      _
    $region45: #{lstm_model_forward.1} parent=1 // pred_fallthru
      _
    // Predicated region
    $region46: #{lstm_model_forward.1} parent=1 // pred_check
      _
    $region47: #{lstm_model_forward.1} parent=1 // pred_check_branch
      %89 = sbr.rel (0) target = $region49
    $region48: #{lstm_model_forward.1} parent=1 // pred_region
      _
    $region49: #{lstm_model_forward.1} parent=1 // pred_fallthru
      _
    // Predicated region
    $region50: #{lstm_model_forward.1} parent=1 // pred_check
      _
    $region51: #{lstm_model_forward.1} parent=1 // pred_check_branch
      %91 = sbr.rel (0) target = $region53
    $region52: #{lstm_model_forward.1} parent=1 // pred_region
      _
    $region53: #{lstm_model_forward.1} parent=1 // pred_fallthru
      _
    // Predicated region
    $region54: #{lstm_model_forward.1} parent=1 // pred_check
      _
    $region55: #{lstm_model_forward.1} parent=1 // pred_check_branch
      %93 = sbr.rel (0) target = $region57
    $region56: #{lstm_model_forward.1} parent=1 // pred_region
      %95 = dma.done [#allocation7], 2048
    $region57: #{lstm_model_forward.1} parent=1 // pred_fallthru
      _
    // Predicated region
    $region58: #{lstm_model_forward.1} parent=1 // pred_check
      _
    $region59: #{lstm_model_forward.1} parent=1 // pred_check_branch
      %97 = sbr.rel (0) target = $region61
    $region60: #{lstm_model_forward.1} parent=1 // pred_region
      %99 = dma.done [#allocation10], 2048
    $region61: #{lstm_model_forward.1} parent=1 // pred_fallthru
      _
    // Predicated region
    $region62: #{lstm_model_forward.1} parent=1 // pred_check
      _
    $region63: #{lstm_model_forward.1} parent=1 // pred_check_branch
      %101 = sbr.rel (0) target = $region65
    $region64: #{lstm_model_forward.1} parent=1 // pred_region
      %103 = dma.done [#allocation10], 2048
    $region65: #{lstm_model_forward.1} parent=1 // pred_fallthru
      _
    // Predicated region
    $region66: #{lstm_model_forward.1} parent=1 // pred_check
      _
    $region67: #{lstm_model_forward.1} parent=1 // pred_check_branch
      %105 = sbr.rel (0) target = $region69
    $region68: #{lstm_model_forward.1} parent=1 // pred_region
      %107 = dma.done [#allocation13], 2048
    $region69: #{lstm_model_forward.1} parent=1 // pred_fallthru
      _
    %v108 = vld [vmem:[%s0] sm:$0xff]
    %v109 = vld [vmem:[%s0 + $0x8] sm:$0xff]
    %v110 = vld [vmem:[%s1] sm:$0xf]
    %v111 = vld [vmem:[%s3] sm:$0x3]
    %v113 = vperm.slane %v111, 0
    %v114 = vperm.slane %v111, 1
    %118 = vst [vmem:[#allocation1] ss:$4 sm:$0xff] %v110
    %v119 = vld.sshfl [vmem:[#allocation1] sm:$0xff pattern:$0x73625140]
    %v120 = vld.sshfl [vmem:[#allocation1 + $0x8] sm:$0xff pattern:$0x73625140]
    %vm121 = vcmask 15360
    %v123 = vsel %vm121, %v108, 0
    %v126 = vsel %vm121, %v109, 0
    %vm128 = vcmask 1041408
    %v129 = vsel %vm128, %v119, 0
    %v131 = vsel %vm128, %v120, 0
    %133 = vmatpush.msra.mxu0 0.0
    %134 = vmatpush.msra.mxu0 0.0
    %135 = vmatpush.msra.mxu0 0.0
    %136 = vmatpush.msra.mxu0 0.0
    %137 = vmatpush.msra.mxu0 0.0
    %138 = vmatpush.msra.mxu0 0.0
    %139 = vmatpush.msra.mxu0 0.0
    %140 = vmatpush.msra.mxu0 0.0
    %141 = vmatpush.msra.mxu0 0.0
    %142 = vmatpush.msra.mxu0 0.0
    %143 = vmatpush.msra.mxu0 0.0
    %144 = vmatpush.msra.mxu0 0.0
    %145 = vmatpush.msra.mxu0 0.0
    %146 = vmatpush.msra.mxu0 0.0
    %147 = vmatpush.msra.mxu0 0.0
    %148 = vmatpush.msra.mxu0 %v129
    %149 = vmatmul.f32.gmra.mxu0 %v123
    %v150 = vpop.f32.mrf.mxu0
    %v151 = vadd.f32 %v113, %v150
    %152 = vmatmul.f32.gmra.mxu0 %v126
    %v153 = vpop.f32.mrf.mxu0
    %v154 = vadd.f32 %v113, %v153
    %155 = vdwg.mxu0
    %156 = vmatpush.msra.mxu0 0.0
    %157 = vmatpush.msra.mxu0 0.0
    %158 = vmatpush.msra.mxu0 0.0
    %159 = vmatpush.msra.mxu0 0.0
    %160 = vmatpush.msra.mxu0 0.0
    %161 = vmatpush.msra.mxu0 0.0
    %162 = vmatpush.msra.mxu0 0.0
    %163 = vmatpush.msra.mxu0 0.0
    %164 = vmatpush.msra.mxu0 0.0
    %165 = vmatpush.msra.mxu0 0.0
    %166 = vmatpush.msra.mxu0 0.0
    %167 = vmatpush.msra.mxu0 0.0
    %168 = vmatpush.msra.mxu0 0.0
    %169 = vmatpush.msra.mxu0 0.0
    %170 = vmatpush.msra.mxu0 0.0
    %171 = vmatpush.msra.mxu0 %v131
    %172 = vmatmul.f32.gmra.mxu0 %v123
    %v173 = vpop.f32.mrf.mxu0
    %v174 = vadd.f32 %v114, %v173
    %175 = vmatmul.f32.gmra.mxu0 %v126
    %v176 = vpop.f32.mrf.mxu0
    %v177 = vadd.f32 %v114, %v176
    %178 = vdwg.mxu0
    %179 = vst [vmem:[#allocation2] sm:$0xff] %v151
    %180 = vst [vmem:[#allocation2 + $0x8] sm:$0xff] %v174
    %181 = vst [vmem:[#allocation2 + $0x10] sm:$0xff] %v154
    %182 = vst [vmem:[#allocation2 + $0x18] sm:$0xff] %v177
    %v183 = vld [vmem:[%s2] sm:$0xf]
    %185 = vst [vmem:[#allocation1] ss:$4 sm:$0xff] %v183
    %v186 = vld.sshfl [vmem:[#allocation1] sm:$0xff pattern:$0x73625140]
    %v187 = vld.sshfl [vmem:[#allocation1 + $0x8] sm:$0xff pattern:$0x73625140]
    %v188 = vsel %vm128, %v186, 0
    %v190 = vsel %vm128, %v187, 0
    %192 = vmatpush.msra.mxu0 0.0
    %193 = vmatpush.msra.mxu0 0.0
    %194 = vmatpush.msra.mxu0 0.0
    %195 = vmatpush.msra.mxu0 0.0
    %196 = vmatpush.msra.mxu0 0.0
    %197 = vmatpush.msra.mxu0 0.0
    %198 = vmatpush.msra.mxu0 0.0
    %199 = vmatpush.msra.mxu0 0.0
    %200 = vmatpush.msra.mxu0 0.0
    %201 = vmatpush.msra.mxu0 0.0
    %202 = vmatpush.msra.mxu0 0.0
    %203 = vmatpush.msra.mxu0 0.0
    %204 = vmatpush.msra.mxu0 0.0
    %205 = vmatpush.msra.mxu0 0.0
    %206 = vmatpush.msra.mxu0 0.0
    %207 = vmatpush.msra.mxu0 %v188
    %208 = vmatmul.f32.gmra.mxu0 %v123
    %v209 = vpop.f32.mrf.mxu0
    %v210 = vadd.f32 0.0, %v209
    %211 = vmatmul.f32.gmra.mxu0 %v126
    %v212 = vpop.f32.mrf.mxu0
    %v213 = vadd.f32 0.0, %v212
    %214 = vdwg.mxu0
    %215 = vmatpush.msra.mxu0 0.0
    %216 = vmatpush.msra.mxu0 0.0
    %217 = vmatpush.msra.mxu0 0.0
    %218 = vmatpush.msra.mxu0 0.0
    %219 = vmatpush.msra.mxu0 0.0
    %220 = vmatpush.msra.mxu0 0.0
    %221 = vmatpush.msra.mxu0 0.0
    %222 = vmatpush.msra.mxu0 0.0
    %223 = vmatpush.msra.mxu0 0.0
    %224 = vmatpush.msra.mxu0 0.0
    %225 = vmatpush.msra.mxu0 0.0
    %226 = vmatpush.msra.mxu0 0.0
    %227 = vmatpush.msra.mxu0 0.0
    %228 = vmatpush.msra.mxu0 0.0
    %229 = vmatpush.msra.mxu0 0.0
    %230 = vmatpush.msra.mxu0 %v190
    %231 = vmatmul.f32.gmra.mxu0 %v123
    %v232 = vpop.f32.mrf.mxu0
    %v233 = vadd.f32 0.0, %v232
    %234 = vmatmul.f32.gmra.mxu0 %v126
    %v235 = vpop.f32.mrf.mxu0
    %v236 = vadd.f32 0.0, %v235
    %237 = vdwg.mxu0
    %238 = vst [vmem:[#allocation3] sm:$0xff] %v210
    %239 = vst [vmem:[#allocation3 + $0x8] sm:$0xff] %v233
    %240 = vst [vmem:[#allocation3 + $0x10] sm:$0xff] %v213
    %241 = vst [vmem:[#allocation3 + $0x18] sm:$0xff] %v236
    %v242 = vld [vmem:[#allocation6] sm:$0xff]
    %v243 = vld [vmem:[#allocation6 + $0x8] sm:$0xff]
    %v244 = vld [vmem:[#allocation6 + $0x10] sm:$0xff]
    %v245 = vld [vmem:[#allocation6 + $0x18] sm:$0xff]
    %v246 = vld [vmem:[#allocation6 + $0x20] sm:$0xff]
    %v247 = vld [vmem:[#allocation6 + $0x28] sm:$0xff]
    %v248 = vld [vmem:[#allocation6 + $0x30] sm:$0xff]
    %v249 = vld [vmem:[#allocation6 + $0x38] sm:$0xff]
    %v250 = vld [vmem:[#allocation6 + $0x40] sm:$0xff]
    %v251 = vld [vmem:[#allocation6 + $0x48] sm:$0xff]
    %v252 = vld [vmem:[#allocation6 + $0x50] sm:$0xff]
    %v253 = vld [vmem:[#allocation6 + $0x58] sm:$0xff]
    %v254 = vld [vmem:[#allocation6 + $0x60] sm:$0xff]
    %v255 = vld [vmem:[#allocation6 + $0x68] sm:$0xff]
    %v256 = vld [vmem:[#allocation6 + $0x70] sm:$0xff]
    %v257 = vld [vmem:[#allocation6 + $0x78] sm:$0xff]
    %v258 = vld [vmem:[#allocation2] sm:$0x3]
    %v259 = vld [vmem:[#allocation2 + $0x8] sm:$0x3]
    %v260 = vld [vmem:[#allocation3 + $0x10] sm:$0xc0]
    %v261 = vld [vmem:[#allocation3 + $0x18] sm:$0xc0]
    %v264 = vrot.slane %v260, 6
    %v265 = vrot.slane %v261, 6
    %v268 = vadd.f32 %v258, %v264
    %v269 = vadd.f32 %v259, %v265
    %vm270 = vcmask 523264
    %v272 = vsel %vm270, 0.0, 0
    %274 = vmatpush.msra.mxu0 0.0
    %275 = vmatpush.msra.mxu0 0.0
    %276 = vmatpush.msra.mxu0 0.0
    %277 = vmatpush.msra.mxu0 0.0
    %278 = vmatpush.msra.mxu0 0.0
    %279 = vmatpush.msra.mxu0 0.0
    %280 = vmatpush.msra.mxu0 0.0
    %281 = vmatpush.msra.mxu0 0.0
    %282 = vmatpush.msra.mxu0 %v256
    %283 = vmatpush.msra.mxu0 %v254
    %284 = vmatpush.msra.mxu0 %v252
    %285 = vmatpush.msra.mxu0 %v250
    %286 = vmatpush.msra.mxu0 %v248
    %287 = vmatpush.msra.mxu0 %v246
    %288 = vmatpush.msra.mxu0 %v244
    %289 = vmatpush.msra.mxu0 %v242
    %290 = vmatmul.f32.gmra.mxu0 %v272
    %v291 = vpop.f32.mrf.mxu0
    %v292 = vadd.f32 %v268, %v291
    %293 = vdwg.mxu0
    %294 = vmatpush.msra.mxu0 0.0
    %295 = vmatpush.msra.mxu0 0.0
    %296 = vmatpush.msra.mxu0 0.0
    %297 = vmatpush.msra.mxu0 0.0
    %298 = vmatpush.msra.mxu0 0.0
    %299 = vmatpush.msra.mxu0 0.0
    %300 = vmatpush.msra.mxu0 0.0
    %301 = vmatpush.msra.mxu0 0.0
    %302 = vmatpush.msra.mxu0 %v257
    %303 = vmatpush.msra.mxu0 %v255
    %304 = vmatpush.msra.mxu0 %v253
    %305 = vmatpush.msra.mxu0 %v251
    %306 = vmatpush.msra.mxu0 %v249
    %307 = vmatpush.msra.mxu0 %v247
    %308 = vmatpush.msra.mxu0 %v245
    %309 = vmatpush.msra.mxu0 %v243
    %310 = vmatmul.f32.gmra.mxu0 %v272
    %v311 = vpop.f32.mrf.mxu0
    %v312 = vadd.f32 %v269, %v311
    %313 = vdwg.mxu0
    %v314 = vxor.u32 %v292, 2147483648
    %v315 = vmul.f32 %v314, 1.442695
    %v316 = vpow.pop %v315
    %v317 = vadd.f32 %v316, 1.0
    %v318 = vrcp.pop %v317
    %v319 = vmul.f32 %v317, %v318
    %v320 = vsub.f32 1.0, %v319
    %v321 = vmul.f32 %v318, %v320
    %v322 = vadd.f32 %v318, %v321
    %vm323 = vweird.f32 %v317
    %vm324 = vweird.f32 %v318
    %vm325 = vmor %vm323, %vm324
    %v326 = vsel %vm325, %v318, %v322
    %v327 = vand.u32 2147483647, %v317
    %vm328 = vcmp.eq.f32.partialorder %v327, 8.507059e+37
    %v329 = vand.u32 %v317, 2147483648
    %v330 = vor.u32 1.1754944e-38, %v329
    %v331 = vsel %vm328, %v330, %v326
    %v332 = vmul.f32 1.0, %v331
    %v333 = vtanh.pop %v312
    %v334 = vxor.u32 %v312, 2147483648
    %v335 = vmul.f32 %v334, 1.442695
    %v336 = vpow.pop %v335
    %v337 = vadd.f32 %v336, 1.0
    %v338 = vrcp.pop %v337
    %v339 = vmul.f32 %v337, %v338
    %v340 = vsub.f32 1.0, %v339
    %v341 = vmul.f32 %v338, %v340
    %v342 = vadd.f32 %v338, %v341
    %vm343 = vweird.f32 %v337
    %vm344 = vweird.f32 %v338
    %vm345 = vmor %vm343, %vm344
    %v346 = vsel %vm345, %v338, %v342
    %v347 = vand.u32 2147483647, %v337
    %vm348 = vcmp.eq.f32.partialorder %v347, 8.507059e+37
    %v349 = vand.u32 %v337, 2147483648
    %v350 = vor.u32 1.1754944e-38, %v349
    %v351 = vsel %vm348, %v350, %v346
    %v352 = vmul.f32 1.0, %v351
    %v353 = vmul.f32 %v332, 0.0
    %v354 = vmul.f32 %v332, %v333
    %356 = vrot.lane.b32.xlu0 %v354, 64
    %v357 = vpop.permute.xlu0 %356
    %v359 = vadd.f32 %v353, %v357
    %v360 = vtanh.pop %v359
    %v361 = vmul.f32 %v352, %v360
    %363 = vrot.lane.b32.xlu0 %v361, 64
    %v364 = vpop.permute.xlu0 %363
    %vm366 = vcmask 517120
    %367 = vst.msk [vmem:[#allocation4] sm:$0x3] %vm366, %v364
    %v368 = vld [vmem:[#allocation2] sm:$0xc]
    %v369 = vld [vmem:[#allocation2 + $0x8] sm:$0xc]
    %v370 = vld [vmem:[#allocation3 + $0x10] sm:$0x30]
    %v371 = vld [vmem:[#allocation3 + $0x18] sm:$0x30]
    %v374 = vrot.slane %v370, 2
    %v375 = vrot.slane %v371, 2
    %v378 = vadd.f32 %v368, %v374
    %v379 = vadd.f32 %v369, %v375
    %v382 = vrot.slane %v378, 2
    %v383 = vrot.slane %v379, 2
    %v386 = vsel %vm270, %v364, 0
    %388 = vmatpush.msra.mxu0 0.0
    %389 = vmatpush.msra.mxu0 0.0
    %390 = vmatpush.msra.mxu0 0.0
    %391 = vmatpush.msra.mxu0 0.0
    %392 = vmatpush.msra.mxu0 0.0
    %393 = vmatpush.msra.mxu0 0.0
    %394 = vmatpush.msra.mxu0 0.0
    %395 = vmatpush.msra.mxu0 0.0
    %396 = vmatpush.msra.mxu0 %v256
    %397 = vmatpush.msra.mxu0 %v254
    %398 = vmatpush.msra.mxu0 %v252
    %399 = vmatpush.msra.mxu0 %v250
    %400 = vmatpush.msra.mxu0 %v248
    %401 = vmatpush.msra.mxu0 %v246
    %402 = vmatpush.msra.mxu0 %v244
    %403 = vmatpush.msra.mxu0 %v242
    %404 = vmatmul.f32.gmra.mxu0 %v386
    %v405 = vpop.f32.mrf.mxu0
    %v406 = vadd.f32 %v382, %v405
    %407 = vdwg.mxu0
    %408 = vmatpush.msra.mxu0 0.0
    %409 = vmatpush.msra.mxu0 0.0
    %410 = vmatpush.msra.mxu0 0.0
    %411 = vmatpush.msra.mxu0 0.0
    %412 = vmatpush.msra.mxu0 0.0
    %413 = vmatpush.msra.mxu0 0.0
    %414 = vmatpush.msra.mxu0 0.0
    %415 = vmatpush.msra.mxu0 0.0
    %416 = vmatpush.msra.mxu0 %v257
    %417 = vmatpush.msra.mxu0 %v255
    %418 = vmatpush.msra.mxu0 %v253
    %419 = vmatpush.msra.mxu0 %v251
    %420 = vmatpush.msra.mxu0 %v249
    %421 = vmatpush.msra.mxu0 %v247
    %422 = vmatpush.msra.mxu0 %v245
    %423 = vmatpush.msra.mxu0 %v243
    %424 = vmatmul.f32.gmra.mxu0 %v386
    %v425 = vpop.f32.mrf.mxu0
    %v426 = vadd.f32 %v383, %v425
    %427 = vdwg.mxu0
    %v428 = vxor.u32 %v406, 2147483648
    %v429 = vmul.f32 %v428, 1.442695
    %v430 = vpow.pop %v429
    %v431 = vadd.f32 %v430, 1.0
    %v432 = vrcp.pop %v431
    %v433 = vmul.f32 %v431, %v432
    %v434 = vsub.f32 1.0, %v433
    %v435 = vmul.f32 %v432, %v434
    %v436 = vadd.f32 %v432, %v435
    %vm437 = vweird.f32 %v431
    %vm438 = vweird.f32 %v432
    %vm439 = vmor %vm437, %vm438
    %v440 = vsel %vm439, %v432, %v436
    %v441 = vand.u32 2147483647, %v431
    %vm442 = vcmp.eq.f32.partialorder %v441, 8.507059e+37
    %v443 = vand.u32 %v431, 2147483648
    %v444 = vor.u32 1.1754944e-38, %v443
    %v445 = vsel %vm442, %v444, %v440
    %v446 = vmul.f32 1.0, %v445
    %v447 = vtanh.pop %v426
    %v448 = vxor.u32 %v426, 2147483648
    %v449 = vmul.f32 %v448, 1.442695
    %v450 = vpow.pop %v449
    %v451 = vadd.f32 %v450, 1.0
    %v452 = vrcp.pop %v451
    %v453 = vmul.f32 %v451, %v452
    %v454 = vsub.f32 1.0, %v453
    %v455 = vmul.f32 %v452, %v454
    %v456 = vadd.f32 %v452, %v455
    %vm457 = vweird.f32 %v451
    %vm458 = vweird.f32 %v452
    %vm459 = vmor %vm457, %vm458
    %v460 = vsel %vm459, %v452, %v456
    %v461 = vand.u32 2147483647, %v451
    %vm462 = vcmp.eq.f32.partialorder %v461, 8.507059e+37
    %v463 = vand.u32 %v451, 2147483648
    %v464 = vor.u32 1.1754944e-38, %v463
    %v465 = vsel %vm462, %v464, %v460
    %v466 = vmul.f32 1.0, %v465
    %v467 = vmul.f32 %v446, %v359
    %v468 = vmul.f32 %v446, %v447
    %470 = vrot.lane.b32.xlu0 %v468, 64
    %v471 = vpop.permute.xlu0 %470
    %v473 = vadd.f32 %v467, %v471
    %v474 = vtanh.pop %v473
    %v475 = vmul.f32 %v466, %v474
    %477 = vrot.lane.b32.xlu0 %v475, 64
    %v478 = vpop.permute.xlu0 %477
    %480 = vst.msk [vmem:[#allocation4 + $0x2] sm:$0x3] %vm366, %v478
    %v481 = vld [vmem:[#allocation2] sm:$0x30]
    %v482 = vld [vmem:[#allocation2 + $0x8] sm:$0x30]
    %v483 = vld [vmem:[#allocation3 + $0x10] sm:$0xc]
    %v484 = vld [vmem:[#allocation3 + $0x18] sm:$0xc]
    %v487 = vrot.slane %v483, 6
    %v488 = vrot.slane %v484, 6
    %v491 = vadd.f32 %v481, %v487
    %v492 = vadd.f32 %v482, %v488
    %v495 = vrot.slane %v491, 4
    %v496 = vrot.slane %v492, 4
    %v499 = vsel %vm270, %v478, 0
    %501 = vmatpush.msra.mxu0 0.0
    %502 = vmatpush.msra.mxu0 0.0
    %503 = vmatpush.msra.mxu0 0.0
    %504 = vmatpush.msra.mxu0 0.0
    %505 = vmatpush.msra.mxu0 0.0
    %506 = vmatpush.msra.mxu0 0.0
    %507 = vmatpush.msra.mxu0 0.0
    %508 = vmatpush.msra.mxu0 0.0
    %509 = vmatpush.msra.mxu0 %v256
    %510 = vmatpush.msra.mxu0 %v254
    %511 = vmatpush.msra.mxu0 %v252
    %512 = vmatpush.msra.mxu0 %v250
    %513 = vmatpush.msra.mxu0 %v248
    %514 = vmatpush.msra.mxu0 %v246
    %515 = vmatpush.msra.mxu0 %v244
    %516 = vmatpush.msra.mxu0 %v242
    %517 = vmatmul.f32.gmra.mxu0 %v499
    %v518 = vpop.f32.mrf.mxu0
    %v519 = vadd.f32 %v495, %v518
    %520 = vdwg.mxu0
    %521 = vmatpush.msra.mxu0 0.0
    %522 = vmatpush.msra.mxu0 0.0
    %523 = vmatpush.msra.mxu0 0.0
    %524 = vmatpush.msra.mxu0 0.0
    %525 = vmatpush.msra.mxu0 0.0
    %526 = vmatpush.msra.mxu0 0.0
    %527 = vmatpush.msra.mxu0 0.0
    %528 = vmatpush.msra.mxu0 0.0
    %529 = vmatpush.msra.mxu0 %v257
    %530 = vmatpush.msra.mxu0 %v255
    %531 = vmatpush.msra.mxu0 %v253
    %532 = vmatpush.msra.mxu0 %v251
    %533 = vmatpush.msra.mxu0 %v249
    %534 = vmatpush.msra.mxu0 %v247
    %535 = vmatpush.msra.mxu0 %v245
    %536 = vmatpush.msra.mxu0 %v243
    %537 = vmatmul.f32.gmra.mxu0 %v499
    %v538 = vpop.f32.mrf.mxu0
    %v539 = vadd.f32 %v496, %v538
    %540 = vdwg.mxu0
    %v541 = vxor.u32 %v519, 2147483648
    %v542 = vmul.f32 %v541, 1.442695
    %v543 = vpow.pop %v542
    %v544 = vadd.f32 %v543, 1.0
    %v545 = vrcp.pop %v544
    %v546 = vmul.f32 %v544, %v545
    %v547 = vsub.f32 1.0, %v546
    %v548 = vmul.f32 %v545, %v547
    %v549 = vadd.f32 %v545, %v548
    %vm550 = vweird.f32 %v544
    %vm551 = vweird.f32 %v545
    %vm552 = vmor %vm550, %vm551
    %v553 = vsel %vm552, %v545, %v549
    %v554 = vand.u32 2147483647, %v544
    %vm555 = vcmp.eq.f32.partialorder %v554, 8.507059e+37
    %v556 = vand.u32 %v544, 2147483648
    %v557 = vor.u32 1.1754944e-38, %v556
    %v558 = vsel %vm555, %v557, %v553
    %v559 = vmul.f32 1.0, %v558
    %v560 = vtanh.pop %v539
    %v561 = vxor.u32 %v539, 2147483648
    %v562 = vmul.f32 %v561, 1.442695
    %v563 = vpow.pop %v562
    %v564 = vadd.f32 %v563, 1.0
    %v565 = vrcp.pop %v564
    %v566 = vmul.f32 %v564, %v565
    %v567 = vsub.f32 1.0, %v566
    %v568 = vmul.f32 %v565, %v567
    %v569 = vadd.f32 %v565, %v568
    %vm570 = vweird.f32 %v564
    %vm571 = vweird.f32 %v565
    %vm572 = vmor %vm570, %vm571
    %v573 = vsel %vm572, %v565, %v569
    %v574 = vand.u32 2147483647, %v564
    %vm575 = vcmp.eq.f32.partialorder %v574, 8.507059e+37
    %v576 = vand.u32 %v564, 2147483648
    %v577 = vor.u32 1.1754944e-38, %v576
    %v578 = vsel %vm575, %v577, %v573
    %v579 = vmul.f32 1.0, %v578
    %v580 = vmul.f32 %v559, %v473
    %v581 = vmul.f32 %v559, %v560
    %583 = vrot.lane.b32.xlu0 %v581, 64
    %v584 = vpop.permute.xlu0 %583
    %v586 = vadd.f32 %v580, %v584
    %v587 = vtanh.pop %v586
    %v588 = vmul.f32 %v579, %v587
    %590 = vrot.lane.b32.xlu0 %v588, 64
    %v591 = vpop.permute.xlu0 %590
    %593 = vst.msk [vmem:[#allocation4 + $0x4] sm:$0x3] %vm366, %v591
    %v594 = vld [vmem:[#allocation2] sm:$0xc0]
    %v595 = vld [vmem:[#allocation2 + $0x8] sm:$0xc0]
    %v596 = vld [vmem:[#allocation3 + $0x10] sm:$0x3]
    %v597 = vld [vmem:[#allocation3 + $0x18] sm:$0x3]
    %v600 = vrot.slane %v596, 2
    %v601 = vrot.slane %v597, 2
    %v604 = vadd.f32 %v594, %v600
    %v605 = vadd.f32 %v595, %v601
    %v608 = vrot.slane %v604, 6
    %v609 = vrot.slane %v605, 6
    %v612 = vsel %vm270, %v591, 0
    %614 = vmatpush.msra.mxu0 0.0
    %615 = vmatpush.msra.mxu0 0.0
    %616 = vmatpush.msra.mxu0 0.0
    %617 = vmatpush.msra.mxu0 0.0
    %618 = vmatpush.msra.mxu0 0.0
    %619 = vmatpush.msra.mxu0 0.0
    %620 = vmatpush.msra.mxu0 0.0
    %621 = vmatpush.msra.mxu0 0.0
    %622 = vmatpush.msra.mxu0 %v256
    %623 = vmatpush.msra.mxu0 %v254
    %624 = vmatpush.msra.mxu0 %v252
    %625 = vmatpush.msra.mxu0 %v250
    %626 = vmatpush.msra.mxu0 %v248
    %627 = vmatpush.msra.mxu0 %v246
    %628 = vmatpush.msra.mxu0 %v244
    %629 = vmatpush.msra.mxu0 %v242
    %630 = vmatmul.f32.gmra.mxu0 %v612
    %v631 = vpop.f32.mrf.mxu0
    %v632 = vadd.f32 %v608, %v631
    %633 = vdwg.mxu0
    %634 = vmatpush.msra.mxu0 0.0
    %635 = vmatpush.msra.mxu0 0.0
    %636 = vmatpush.msra.mxu0 0.0
    %637 = vmatpush.msra.mxu0 0.0
    %638 = vmatpush.msra.mxu0 0.0
    %639 = vmatpush.msra.mxu0 0.0
    %640 = vmatpush.msra.mxu0 0.0
    %641 = vmatpush.msra.mxu0 0.0
    %642 = vmatpush.msra.mxu0 %v257
    %643 = vmatpush.msra.mxu0 %v255
    %644 = vmatpush.msra.mxu0 %v253
    %645 = vmatpush.msra.mxu0 %v251
    %646 = vmatpush.msra.mxu0 %v249
    %647 = vmatpush.msra.mxu0 %v247
    %648 = vmatpush.msra.mxu0 %v245
    %649 = vmatpush.msra.mxu0 %v243
    %650 = vmatmul.f32.gmra.mxu0 %v612
    %v651 = vpop.f32.mrf.mxu0
    %v652 = vadd.f32 %v609, %v651
    %653 = vdwg.mxu0
    %v654 = vxor.u32 %v632, 2147483648
    %v655 = vmul.f32 %v654, 1.442695
    %v656 = vpow.pop %v655
    %v657 = vadd.f32 %v656, 1.0
    %v658 = vrcp.pop %v657
    %v659 = vmul.f32 %v657, %v658
    %v660 = vsub.f32 1.0, %v659
    %v661 = vmul.f32 %v658, %v660
    %v662 = vadd.f32 %v658, %v661
    %vm663 = vweird.f32 %v657
    %vm664 = vweird.f32 %v658
    %vm665 = vmor %vm663, %vm664
    %v666 = vsel %vm665, %v658, %v662
    %v667 = vand.u32 2147483647, %v657
    %vm668 = vcmp.eq.f32.partialorder %v667, 8.507059e+37
    %v669 = vand.u32 %v657, 2147483648
    %v670 = vor.u32 1.1754944e-38, %v669
    %v671 = vsel %vm668, %v670, %v666
    %v672 = vmul.f32 1.0, %v671
    %v673 = vtanh.pop %v652
    %v674 = vxor.u32 %v652, 2147483648
    %v675 = vmul.f32 %v674, 1.442695
    %v676 = vpow.pop %v675
    %v677 = vadd.f32 %v676, 1.0
    %v678 = vrcp.pop %v677
    %v679 = vmul.f32 %v677, %v678
    %v680 = vsub.f32 1.0, %v679
    %v681 = vmul.f32 %v678, %v680
    %v682 = vadd.f32 %v678, %v681
    %vm683 = vweird.f32 %v677
    %vm684 = vweird.f32 %v678
    %vm685 = vmor %vm683, %vm684
    %v686 = vsel %vm685, %v678, %v682
    %v687 = vand.u32 2147483647, %v677
    %vm688 = vcmp.eq.f32.partialorder %v687, 8.507059e+37
    %v689 = vand.u32 %v677, 2147483648
    %v690 = vor.u32 1.1754944e-38, %v689
    %v691 = vsel %vm688, %v690, %v686
    %v692 = vmul.f32 1.0, %v691
    %v693 = vmul.f32 %v672, %v586
    %v694 = vmul.f32 %v672, %v673
    %696 = vrot.lane.b32.xlu0 %v694, 64
    %v697 = vpop.permute.xlu0 %696
    %v699 = vadd.f32 %v693, %v697
    %v700 = vtanh.pop %v699
    %v701 = vmul.f32 %v692, %v700
    %703 = vrot.lane.b32.xlu0 %v701, 64
    %v704 = vpop.permute.xlu0 %703
    %706 = vst.msk [vmem:[#allocation4 + $0x6] sm:$0x3] %vm366, %v704
    %v707 = vld [vmem:[#allocation2 + $0x10] sm:$0x3]
    %v708 = vld [vmem:[#allocation2 + $0x18] sm:$0x3]
    %v709 = vld [vmem:[#allocation3] sm:$0xc0]
    %v710 = vld [vmem:[#allocation3 + $0x8] sm:$0xc0]
    %v713 = vrot.slane %v709, 6
    %v714 = vrot.slane %v710, 6
    %v717 = vadd.f32 %v707, %v713
    %v718 = vadd.f32 %v708, %v714
    %v719 = vsel %vm270, %v704, 0
    %721 = vmatpush.msra.mxu0 0.0
    %722 = vmatpush.msra.mxu0 0.0
    %723 = vmatpush.msra.mxu0 0.0
    %724 = vmatpush.msra.mxu0 0.0
    %725 = vmatpush.msra.mxu0 0.0
    %726 = vmatpush.msra.mxu0 0.0
    %727 = vmatpush.msra.mxu0 0.0
    %728 = vmatpush.msra.mxu0 0.0
    %729 = vmatpush.msra.mxu0 %v256
    %730 = vmatpush.msra.mxu0 %v254
    %731 = vmatpush.msra.mxu0 %v252
    %732 = vmatpush.msra.mxu0 %v250
    %733 = vmatpush.msra.mxu0 %v248
    %734 = vmatpush.msra.mxu0 %v246
    %735 = vmatpush.msra.mxu0 %v244
    %736 = vmatpush.msra.mxu0 %v242
    %737 = vmatmul.f32.gmra.mxu0 %v719
    %v738 = vpop.f32.mrf.mxu0
    %v739 = vadd.f32 %v717, %v738
    %740 = vdwg.mxu0
    %741 = vmatpush.msra.mxu0 0.0
    %742 = vmatpush.msra.mxu0 0.0
    %743 = vmatpush.msra.mxu0 0.0
    %744 = vmatpush.msra.mxu0 0.0
    %745 = vmatpush.msra.mxu0 0.0
    %746 = vmatpush.msra.mxu0 0.0
    %747 = vmatpush.msra.mxu0 0.0
    %748 = vmatpush.msra.mxu0 0.0
    %749 = vmatpush.msra.mxu0 %v257
    %750 = vmatpush.msra.mxu0 %v255
    %751 = vmatpush.msra.mxu0 %v253
    %752 = vmatpush.msra.mxu0 %v251
    %753 = vmatpush.msra.mxu0 %v249
    %754 = vmatpush.msra.mxu0 %v247
    %755 = vmatpush.msra.mxu0 %v245
    %756 = vmatpush.msra.mxu0 %v243
    %757 = vmatmul.f32.gmra.mxu0 %v719
    %v758 = vpop.f32.mrf.mxu0
    %v759 = vadd.f32 %v718, %v758
    %760 = vdwg.mxu0
    %v761 = vxor.u32 %v739, 2147483648
    %v762 = vmul.f32 %v761, 1.442695
    %v763 = vpow.pop %v762
    %v764 = vadd.f32 %v763, 1.0
    %v765 = vrcp.pop %v764
    %v766 = vmul.f32 %v764, %v765
    %v767 = vsub.f32 1.0, %v766
    %v768 = vmul.f32 %v765, %v767
    %v769 = vadd.f32 %v765, %v768
    %vm770 = vweird.f32 %v764
    %vm771 = vweird.f32 %v765
    %vm772 = vmor %vm770, %vm771
    %v773 = vsel %vm772, %v765, %v769
    %v774 = vand.u32 2147483647, %v764
    %vm775 = vcmp.eq.f32.partialorder %v774, 8.507059e+37
    %v776 = vand.u32 %v764, 2147483648
    %v777 = vor.u32 1.1754944e-38, %v776
    %v778 = vsel %vm775, %v777, %v773
    %v779 = vmul.f32 1.0, %v778
    %v780 = vtanh.pop %v759
    %v781 = vxor.u32 %v759, 2147483648
    %v782 = vmul.f32 %v781, 1.442695
    %v783 = vpow.pop %v782
    %v784 = vadd.f32 %v783, 1.0
    %v785 = vrcp.pop %v784
    %v786 = vmul.f32 %v784, %v785
    %v787 = vsub.f32 1.0, %v786
    %v788 = vmul.f32 %v785, %v787
    %v789 = vadd.f32 %v785, %v788
    %vm790 = vweird.f32 %v784
    %vm791 = vweird.f32 %v785
    %vm792 = vmor %vm790, %vm791
    %v793 = vsel %vm792, %v785, %v789
    %v794 = vand.u32 2147483647, %v784
    %vm795 = vcmp.eq.f32.partialorder %v794, 8.507059e+37
    %v796 = vand.u32 %v784, 2147483648
    %v797 = vor.u32 1.1754944e-38, %v796
    %v798 = vsel %vm795, %v797, %v793
    %v799 = vmul.f32 1.0, %v798
    %v800 = vmul.f32 %v779, %v699
    %v801 = vmul.f32 %v779, %v780
    %803 = vrot.lane.b32.xlu0 %v801, 64
    %v804 = vpop.permute.xlu0 %803
    %v806 = vadd.f32 %v800, %v804
    %v807 = vtanh.pop %v806
    %v808 = vmul.f32 %v799, %v807
    %810 = vrot.lane.b32.xlu0 %v808, 64
    %v811 = vpop.permute.xlu0 %810
    %813 = vst.msk [vmem:[#allocation4 + $0x8] sm:$0x3] %vm366, %v811
    %v814 = vld [vmem:[#allocation2 + $0x10] sm:$0xc]
    %v815 = vld [vmem:[#allocation2 + $0x18] sm:$0xc]
    %v816 = vld [vmem:[#allocation3] sm:$0x30]
    %v817 = vld [vmem:[#allocation3 + $0x8] sm:$0x30]
    %v820 = vrot.slane %v816, 2
    %v821 = vrot.slane %v817, 2
    %v824 = vadd.f32 %v814, %v820
    %v825 = vadd.f32 %v815, %v821
    %v828 = vrot.slane %v824, 2
    %v829 = vrot.slane %v825, 2
    %v832 = vsel %vm270, %v811, 0
    %834 = vmatpush.msra.mxu0 0.0
    %835 = vmatpush.msra.mxu0 0.0
    %836 = vmatpush.msra.mxu0 0.0
    %837 = vmatpush.msra.mxu0 0.0
    %838 = vmatpush.msra.mxu0 0.0
    %839 = vmatpush.msra.mxu0 0.0
    %840 = vmatpush.msra.mxu0 0.0
    %841 = vmatpush.msra.mxu0 0.0
    %842 = vmatpush.msra.mxu0 %v256
    %843 = vmatpush.msra.mxu0 %v254
    %844 = vmatpush.msra.mxu0 %v252
    %845 = vmatpush.msra.mxu0 %v250
    %846 = vmatpush.msra.mxu0 %v248
    %847 = vmatpush.msra.mxu0 %v246
    %848 = vmatpush.msra.mxu0 %v244
    %849 = vmatpush.msra.mxu0 %v242
    %850 = vmatmul.f32.gmra.mxu0 %v832
    %v851 = vpop.f32.mrf.mxu0
    %v852 = vadd.f32 %v828, %v851
    %853 = vdwg.mxu0
    %854 = vmatpush.msra.mxu0 0.0
    %855 = vmatpush.msra.mxu0 0.0
    %856 = vmatpush.msra.mxu0 0.0
    %857 = vmatpush.msra.mxu0 0.0
    %858 = vmatpush.msra.mxu0 0.0
    %859 = vmatpush.msra.mxu0 0.0
    %860 = vmatpush.msra.mxu0 0.0
    %861 = vmatpush.msra.mxu0 0.0
    %862 = vmatpush.msra.mxu0 %v257
    %863 = vmatpush.msra.mxu0 %v255
    %864 = vmatpush.msra.mxu0 %v253
    %865 = vmatpush.msra.mxu0 %v251
    %866 = vmatpush.msra.mxu0 %v249
    %867 = vmatpush.msra.mxu0 %v247
    %868 = vmatpush.msra.mxu0 %v245
    %869 = vmatpush.msra.mxu0 %v243
    %870 = vmatmul.f32.gmra.mxu0 %v832
    %v871 = vpop.f32.mrf.mxu0
    %v872 = vadd.f32 %v829, %v871
    %873 = vdwg.mxu0
    %v874 = vxor.u32 %v852, 2147483648
    %v875 = vmul.f32 %v874, 1.442695
    %v876 = vpow.pop %v875
    %v877 = vadd.f32 %v876, 1.0
    %v878 = vrcp.pop %v877
    %v879 = vmul.f32 %v877, %v878
    %v880 = vsub.f32 1.0, %v879
    %v881 = vmul.f32 %v878, %v880
    %v882 = vadd.f32 %v878, %v881
    %vm883 = vweird.f32 %v877
    %vm884 = vweird.f32 %v878
    %vm885 = vmor %vm883, %vm884
    %v886 = vsel %vm885, %v878, %v882
    %v887 = vand.u32 2147483647, %v877
    %vm888 = vcmp.eq.f32.partialorder %v887, 8.507059e+37
    %v889 = vand.u32 %v877, 2147483648
    %v890 = vor.u32 1.1754944e-38, %v889
    %v891 = vsel %vm888, %v890, %v886
    %v892 = vmul.f32 1.0, %v891
    %v893 = vtanh.pop %v872
    %v894 = vxor.u32 %v872, 2147483648
    %v895 = vmul.f32 %v894, 1.442695
    %v896 = vpow.pop %v895
    %v897 = vadd.f32 %v896, 1.0
    %v898 = vrcp.pop %v897
    %v899 = vmul.f32 %v897, %v898
    %v900 = vsub.f32 1.0, %v899
    %v901 = vmul.f32 %v898, %v900
    %v902 = vadd.f32 %v898, %v901
    %vm903 = vweird.f32 %v897
    %vm904 = vweird.f32 %v898
    %vm905 = vmor %vm903, %vm904
    %v906 = vsel %vm905, %v898, %v902
    %v907 = vand.u32 2147483647, %v897
    %vm908 = vcmp.eq.f32.partialorder %v907, 8.507059e+37
    %v909 = vand.u32 %v897, 2147483648
    %v910 = vor.u32 1.1754944e-38, %v909
    %v911 = vsel %vm908, %v910, %v906
    %v912 = vmul.f32 1.0, %v911
    %v913 = vmul.f32 %v892, %v806
    %v914 = vmul.f32 %v892, %v893
    %916 = vrot.lane.b32.xlu0 %v914, 64
    %v917 = vpop.permute.xlu0 %916
    %v919 = vadd.f32 %v913, %v917
    %v920 = vtanh.pop %v919
    %v921 = vmul.f32 %v912, %v920
    %923 = vrot.lane.b32.xlu0 %v921, 64
    %v924 = vpop.permute.xlu0 %923
    %926 = vst.msk [vmem:[#allocation4 + $0xa] sm:$0x3] %vm366, %v924
    %v927 = vld [vmem:[#allocation2 + $0x10] sm:$0x30]
    %v928 = vld [vmem:[#allocation2 + $0x18] sm:$0x30]
    %v929 = vld [vmem:[#allocation3] sm:$0xc]
    %v930 = vld [vmem:[#allocation3 + $0x8] sm:$0xc]
    %v933 = vrot.slane %v929, 6
    %v934 = vrot.slane %v930, 6
    %v937 = vadd.f32 %v927, %v933
    %v938 = vadd.f32 %v928, %v934
    %v941 = vrot.slane %v937, 4
    %v942 = vrot.slane %v938, 4
    %v945 = vsel %vm270, %v924, 0
    %947 = vmatpush.msra.mxu0 0.0
    %948 = vmatpush.msra.mxu0 0.0
    %949 = vmatpush.msra.mxu0 0.0
    %950 = vmatpush.msra.mxu0 0.0
    %951 = vmatpush.msra.mxu0 0.0
    %952 = vmatpush.msra.mxu0 0.0
    %953 = vmatpush.msra.mxu0 0.0
    %954 = vmatpush.msra.mxu0 0.0
    %955 = vmatpush.msra.mxu0 %v256
    %956 = vmatpush.msra.mxu0 %v254
    %957 = vmatpush.msra.mxu0 %v252
    %958 = vmatpush.msra.mxu0 %v250
    %959 = vmatpush.msra.mxu0 %v248
    %960 = vmatpush.msra.mxu0 %v246
    %961 = vmatpush.msra.mxu0 %v244
    %962 = vmatpush.msra.mxu0 %v242
    %963 = vmatmul.f32.gmra.mxu0 %v945
    %v964 = vpop.f32.mrf.mxu0
    %v965 = vadd.f32 %v941, %v964
    %966 = vdwg.mxu0
    %967 = vmatpush.msra.mxu0 0.0
    %968 = vmatpush.msra.mxu0 0.0
    %969 = vmatpush.msra.mxu0 0.0
    %970 = vmatpush.msra.mxu0 0.0
    %971 = vmatpush.msra.mxu0 0.0
    %972 = vmatpush.msra.mxu0 0.0
    %973 = vmatpush.msra.mxu0 0.0
    %974 = vmatpush.msra.mxu0 0.0
    %975 = vmatpush.msra.mxu0 %v257
    %976 = vmatpush.msra.mxu0 %v255
    %977 = vmatpush.msra.mxu0 %v253
    %978 = vmatpush.msra.mxu0 %v251
    %979 = vmatpush.msra.mxu0 %v249
    %980 = vmatpush.msra.mxu0 %v247
    %981 = vmatpush.msra.mxu0 %v245
    %982 = vmatpush.msra.mxu0 %v243
    %983 = vmatmul.f32.gmra.mxu0 %v945
    %v984 = vpop.f32.mrf.mxu0
    %v985 = vadd.f32 %v942, %v984
    %986 = vdwg.mxu0
    %v987 = vxor.u32 %v965, 2147483648
    %v988 = vmul.f32 %v987, 1.442695
    %v989 = vpow.pop %v988
    %v990 = vadd.f32 %v989, 1.0
    %v991 = vrcp.pop %v990
    %v992 = vmul.f32 %v990, %v991
    %v993 = vsub.f32 1.0, %v992
    %v994 = vmul.f32 %v991, %v993
    %v995 = vadd.f32 %v991, %v994
    %vm996 = vweird.f32 %v990
    %vm997 = vweird.f32 %v991
    %vm998 = vmor %vm996, %vm997
    %v999 = vsel %vm998, %v991, %v995
    %v1000 = vand.u32 2147483647, %v990
    %vm1001 = vcmp.eq.f32.partialorder %v1000, 8.507059e+37
    %v1002 = vand.u32 %v990, 2147483648
    %v1003 = vor.u32 1.1754944e-38, %v1002
    %v1004 = vsel %vm1001, %v1003, %v999
    %v1005 = vmul.f32 1.0, %v1004
    %v1006 = vtanh.pop %v985
    %v1007 = vxor.u32 %v985, 2147483648
    %v1008 = vmul.f32 %v1007, 1.442695
    %v1009 = vpow.pop %v1008
    %v1010 = vadd.f32 %v1009, 1.0
    %v1011 = vrcp.pop %v1010
    %v1012 = vmul.f32 %v1010, %v1011
    %v1013 = vsub.f32 1.0, %v1012
    %v1014 = vmul.f32 %v1011, %v1013
    %v1015 = vadd.f32 %v1011, %v1014
    %vm1016 = vweird.f32 %v1010
    %vm1017 = vweird.f32 %v1011
    %vm1018 = vmor %vm1016, %vm1017
    %v1019 = vsel %vm1018, %v1011, %v1015
    %v1020 = vand.u32 2147483647, %v1010
    %vm1021 = vcmp.eq.f32.partialorder %v1020, 8.507059e+37
    %v1022 = vand.u32 %v1010, 2147483648
    %v1023 = vor.u32 1.1754944e-38, %v1022
    %v1024 = vsel %vm1021, %v1023, %v1019
    %v1025 = vmul.f32 1.0, %v1024
    %v1026 = vmul.f32 %v1005, %v919
    %v1027 = vmul.f32 %v1005, %v1006
    %1029 = vrot.lane.b32.xlu0 %v1027, 64
    %v1030 = vpop.permute.xlu0 %1029
    %v1032 = vadd.f32 %v1026, %v1030
    %v1033 = vtanh.pop %v1032
    %v1034 = vmul.f32 %v1025, %v1033
    %1036 = vrot.lane.b32.xlu0 %v1034, 64
    %v1037 = vpop.permute.xlu0 %1036
    %1039 = vst.msk [vmem:[#allocation4 + $0xc] sm:$0x3] %vm366, %v1037
    %v1040 = vld [vmem:[#allocation2 + $0x10] sm:$0xc0]
    %v1041 = vld [vmem:[#allocation2 + $0x18] sm:$0xc0]
    %v1042 = vld [vmem:[#allocation3] sm:$0x3]
    %v1043 = vld [vmem:[#allocation3 + $0x8] sm:$0x3]
    %v1046 = vrot.slane %v1042, 2
    %v1047 = vrot.slane %v1043, 2
    %v1050 = vadd.f32 %v1040, %v1046
    %v1051 = vadd.f32 %v1041, %v1047
    %v1054 = vrot.slane %v1050, 6
    %v1055 = vrot.slane %v1051, 6
    %v1058 = vsel %vm270, %v1037, 0
    %1060 = vmatpush.msra.mxu0 0.0
    %1061 = vmatpush.msra.mxu0 0.0
    %1062 = vmatpush.msra.mxu0 0.0
    %1063 = vmatpush.msra.mxu0 0.0
    %1064 = vmatpush.msra.mxu0 0.0
    %1065 = vmatpush.msra.mxu0 0.0
    %1066 = vmatpush.msra.mxu0 0.0
    %1067 = vmatpush.msra.mxu0 0.0
    %1068 = vmatpush.msra.mxu0 %v256
    %1069 = vmatpush.msra.mxu0 %v254
    %1070 = vmatpush.msra.mxu0 %v252
    %1071 = vmatpush.msra.mxu0 %v250
    %1072 = vmatpush.msra.mxu0 %v248
    %1073 = vmatpush.msra.mxu0 %v246
    %1074 = vmatpush.msra.mxu0 %v244
    %1075 = vmatpush.msra.mxu0 %v242
    %1076 = vmatmul.f32.gmra.mxu0 %v1058
    %v1077 = vpop.f32.mrf.mxu0
    %v1078 = vadd.f32 %v1054, %v1077
    %1079 = vdwg.mxu0
    %1080 = vmatpush.msra.mxu0 0.0
    %1081 = vmatpush.msra.mxu0 0.0
    %1082 = vmatpush.msra.mxu0 0.0
    %1083 = vmatpush.msra.mxu0 0.0
    %1084 = vmatpush.msra.mxu0 0.0
    %1085 = vmatpush.msra.mxu0 0.0
    %1086 = vmatpush.msra.mxu0 0.0
    %1087 = vmatpush.msra.mxu0 0.0
    %1088 = vmatpush.msra.mxu0 %v257
    %1089 = vmatpush.msra.mxu0 %v255
    %1090 = vmatpush.msra.mxu0 %v253
    %1091 = vmatpush.msra.mxu0 %v251
    %1092 = vmatpush.msra.mxu0 %v249
    %1093 = vmatpush.msra.mxu0 %v247
    %1094 = vmatpush.msra.mxu0 %v245
    %1095 = vmatpush.msra.mxu0 %v243
    %1096 = vmatmul.f32.gmra.mxu0 %v1058
    %v1097 = vpop.f32.mrf.mxu0
    %v1098 = vadd.f32 %v1055, %v1097
    %1099 = vdwg.mxu0
    %v1100 = vxor.u32 %v1078, 2147483648
    %v1101 = vmul.f32 %v1100, 1.442695
    %v1102 = vpow.pop %v1101
    %v1103 = vadd.f32 %v1102, 1.0
    %v1104 = vrcp.pop %v1103
    %v1105 = vmul.f32 %v1103, %v1104
    %v1106 = vsub.f32 1.0, %v1105
    %v1107 = vmul.f32 %v1104, %v1106
    %v1108 = vadd.f32 %v1104, %v1107
    %vm1109 = vweird.f32 %v1103
    %vm1110 = vweird.f32 %v1104
    %vm1111 = vmor %vm1109, %vm1110
    %v1112 = vsel %vm1111, %v1104, %v1108
    %v1113 = vand.u32 2147483647, %v1103
    %vm1114 = vcmp.eq.f32.partialorder %v1113, 8.507059e+37
    %v1115 = vand.u32 %v1103, 2147483648
    %v1116 = vor.u32 1.1754944e-38, %v1115
    %v1117 = vsel %vm1114, %v1116, %v1112
    %v1118 = vmul.f32 1.0, %v1117
    %v1119 = vtanh.pop %v1098
    %v1120 = vxor.u32 %v1098, 2147483648
    %v1121 = vmul.f32 %v1120, 1.442695
    %v1122 = vpow.pop %v1121
    %v1123 = vadd.f32 %v1122, 1.0
    %v1124 = vrcp.pop %v1123
    %v1125 = vmul.f32 %v1123, %v1124
    %v1126 = vsub.f32 1.0, %v1125
    %v1127 = vmul.f32 %v1124, %v1126
    %v1128 = vadd.f32 %v1124, %v1127
    %vm1129 = vweird.f32 %v1123
    %vm1130 = vweird.f32 %v1124
    %vm1131 = vmor %vm1129, %vm1130
    %v1132 = vsel %vm1131, %v1124, %v1128
    %v1133 = vand.u32 2147483647, %v1123
    %vm1134 = vcmp.eq.f32.partialorder %v1133, 8.507059e+37
    %v1135 = vand.u32 %v1123, 2147483648
    %v1136 = vor.u32 1.1754944e-38, %v1135
    %v1137 = vsel %vm1134, %v1136, %v1132
    %v1138 = vmul.f32 1.0, %v1137
    %v1139 = vmul.f32 %v1118, %v1032
    %v1140 = vmul.f32 %v1118, %v1119
    %1142 = vrot.lane.b32.xlu0 %v1140, 64
    %v1143 = vpop.permute.xlu0 %1142
    %v1145 = vadd.f32 %v1139, %v1143
    %v1146 = vtanh.pop %v1145
    %v1147 = vmul.f32 %v1138, %v1146
    %1149 = vrot.lane.b32.xlu0 %v1147, 64
    %v1150 = vpop.permute.xlu0 %1149
    %1152 = vst.msk [vmem:[#allocation4 + $0xe] sm:$0x3] %vm366, %v1150
    %v1153 = vld [vmem:[#allocation4] sm:$0xff]
    %v1154 = vld [vmem:[#allocation4 + $0x8] sm:$0xff]
    %v1155 = vld [vmem:[#allocation9] sm:$0xff]
    %v1156 = vld [vmem:[#allocation9 + $0x8] sm:$0xff]
    %v1157 = vld [vmem:[#allocation9 + $0x10] sm:$0xff]
    %v1158 = vld [vmem:[#allocation9 + $0x18] sm:$0xff]
    %v1159 = vld [vmem:[#allocation9 + $0x20] sm:$0xff]
    %v1160 = vld [vmem:[#allocation9 + $0x28] sm:$0xff]
    %v1161 = vld [vmem:[#allocation9 + $0x30] sm:$0xff]
    %v1162 = vld [vmem:[#allocation9 + $0x38] sm:$0xff]
    %v1163 = vld [vmem:[#allocation9 + $0x40] sm:$0xff]
    %v1164 = vld [vmem:[#allocation9 + $0x48] sm:$0xff]
    %v1165 = vld [vmem:[#allocation9 + $0x50] sm:$0xff]
    %v1166 = vld [vmem:[#allocation9 + $0x58] sm:$0xff]
    %v1167 = vld [vmem:[#allocation9 + $0x60] sm:$0xff]
    %v1168 = vld [vmem:[#allocation9 + $0x68] sm:$0xff]
    %v1169 = vld [vmem:[#allocation9 + $0x70] sm:$0xff]
    %v1170 = vld [vmem:[#allocation9 + $0x78] sm:$0xff]
    %v1171 = vld [vmem:[%s7] sm:$0x3]
    %v1173 = vperm.slane %v1171, 0
    %v1174 = vperm.slane %v1171, 1
    %v1178 = vsel %vm270, %v1153, 0
    %v1181 = vsel %vm270, %v1154, 0
    %1183 = vmatpush.msra.mxu0 0.0
    %1184 = vmatpush.msra.mxu0 0.0
    %1185 = vmatpush.msra.mxu0 0.0
    %1186 = vmatpush.msra.mxu0 0.0
    %1187 = vmatpush.msra.mxu0 0.0
    %1188 = vmatpush.msra.mxu0 0.0
    %1189 = vmatpush.msra.mxu0 0.0
    %1190 = vmatpush.msra.mxu0 0.0
    %1191 = vmatpush.msra.mxu0 %v1169
    %1192 = vmatpush.msra.mxu0 %v1167
    %1193 = vmatpush.msra.mxu0 %v1165
    %1194 = vmatpush.msra.mxu0 %v1163
    %1195 = vmatpush.msra.mxu0 %v1161
    %1196 = vmatpush.msra.mxu0 %v1159
    %1197 = vmatpush.msra.mxu0 %v1157
    %1198 = vmatpush.msra.mxu0 %v1155
    %1199 = vmatmul.f32.gmra.mxu0 %v1178
    %v1200 = vpop.f32.mrf.mxu0
    %v1201 = vadd.f32 %v1173, %v1200
    %1202 = vmatmul.f32.gmra.mxu0 %v1181
    %v1203 = vpop.f32.mrf.mxu0
    %v1204 = vadd.f32 %v1173, %v1203
    %1205 = vdwg.mxu0
    %1206 = vmatpush.msra.mxu0 0.0
    %1207 = vmatpush.msra.mxu0 0.0
    %1208 = vmatpush.msra.mxu0 0.0
    %1209 = vmatpush.msra.mxu0 0.0
    %1210 = vmatpush.msra.mxu0 0.0
    %1211 = vmatpush.msra.mxu0 0.0
    %1212 = vmatpush.msra.mxu0 0.0
    %1213 = vmatpush.msra.mxu0 0.0
    %1214 = vmatpush.msra.mxu0 %v1170
    %1215 = vmatpush.msra.mxu0 %v1168
    %1216 = vmatpush.msra.mxu0 %v1166
    %1217 = vmatpush.msra.mxu0 %v1164
    %1218 = vmatpush.msra.mxu0 %v1162
    %1219 = vmatpush.msra.mxu0 %v1160
    %1220 = vmatpush.msra.mxu0 %v1158
    %1221 = vmatpush.msra.mxu0 %v1156
    %1222 = vmatmul.f32.gmra.mxu0 %v1178
    %v1223 = vpop.f32.mrf.mxu0
    %v1224 = vadd.f32 %v1174, %v1223
    %1225 = vmatmul.f32.gmra.mxu0 %v1181
    %v1226 = vpop.f32.mrf.mxu0
    %v1227 = vadd.f32 %v1174, %v1226
    %1228 = vdwg.mxu0
    %1229 = vst [vmem:[#allocation2] sm:$0xff] %v1201
    %1230 = vst [vmem:[#allocation2 + $0x8] sm:$0xff] %v1224
    %1231 = vst [vmem:[#allocation2 + $0x10] sm:$0xff] %v1204
    %1232 = vst [vmem:[#allocation2 + $0x18] sm:$0xff] %v1227
    %v1233 = vld [vmem:[#allocation11] sm:$0xff]
    %v1234 = vld [vmem:[#allocation11 + $0x8] sm:$0xff]
    %v1235 = vld [vmem:[#allocation11 + $0x10] sm:$0xff]
    %v1236 = vld [vmem:[#allocation11 + $0x18] sm:$0xff]
    %v1237 = vld [vmem:[#allocation11 + $0x20] sm:$0xff]
    %v1238 = vld [vmem:[#allocation11 + $0x28] sm:$0xff]
    %v1239 = vld [vmem:[#allocation11 + $0x30] sm:$0xff]
    %v1240 = vld [vmem:[#allocation11 + $0x38] sm:$0xff]
    %v1241 = vld [vmem:[#allocation11 + $0x40] sm:$0xff]
    %v1242 = vld [vmem:[#allocation11 + $0x48] sm:$0xff]
    %v1243 = vld [vmem:[#allocation11 + $0x50] sm:$0xff]
    %v1244 = vld [vmem:[#allocation11 + $0x58] sm:$0xff]
    %v1245 = vld [vmem:[#allocation11 + $0x60] sm:$0xff]
    %v1246 = vld [vmem:[#allocation11 + $0x68] sm:$0xff]
    %v1247 = vld [vmem:[#allocation11 + $0x70] sm:$0xff]
    %v1248 = vld [vmem:[#allocation11 + $0x78] sm:$0xff]
    %1249 = vmatpush.msra.mxu0 0.0
    %1250 = vmatpush.msra.mxu0 0.0
    %1251 = vmatpush.msra.mxu0 0.0
    %1252 = vmatpush.msra.mxu0 0.0
    %1253 = vmatpush.msra.mxu0 0.0
    %1254 = vmatpush.msra.mxu0 0.0
    %1255 = vmatpush.msra.mxu0 0.0
    %1256 = vmatpush.msra.mxu0 0.0
    %1257 = vmatpush.msra.mxu0 %v1247
    %1258 = vmatpush.msra.mxu0 %v1245
    %1259 = vmatpush.msra.mxu0 %v1243
    %1260 = vmatpush.msra.mxu0 %v1241
    %1261 = vmatpush.msra.mxu0 %v1239
    %1262 = vmatpush.msra.mxu0 %v1237
    %1263 = vmatpush.msra.mxu0 %v1235
    %1264 = vmatpush.msra.mxu0 %v1233
    %1265 = vmatmul.f32.gmra.mxu0 %v1178
    %v1266 = vpop.f32.mrf.mxu0
    %v1267 = vadd.f32 0.0, %v1266
    %1268 = vmatmul.f32.gmra.mxu0 %v1181
    %v1269 = vpop.f32.mrf.mxu0
    %v1270 = vadd.f32 0.0, %v1269
    %1271 = vdwg.mxu0
    %1272 = vmatpush.msra.mxu0 0.0
    %1273 = vmatpush.msra.mxu0 0.0
    %1274 = vmatpush.msra.mxu0 0.0
    %1275 = vmatpush.msra.mxu0 0.0
    %1276 = vmatpush.msra.mxu0 0.0
    %1277 = vmatpush.msra.mxu0 0.0
    %1278 = vmatpush.msra.mxu0 0.0
    %1279 = vmatpush.msra.mxu0 0.0
    %1280 = vmatpush.msra.mxu0 %v1248
    %1281 = vmatpush.msra.mxu0 %v1246
    %1282 = vmatpush.msra.mxu0 %v1244
    %1283 = vmatpush.msra.mxu0 %v1242
    %1284 = vmatpush.msra.mxu0 %v1240
    %1285 = vmatpush.msra.mxu0 %v1238
    %1286 = vmatpush.msra.mxu0 %v1236
    %1287 = vmatpush.msra.mxu0 %v1234
    %1288 = vmatmul.f32.gmra.mxu0 %v1178
    %v1289 = vpop.f32.mrf.mxu0
    %v1290 = vadd.f32 0.0, %v1289
    %1291 = vmatmul.f32.gmra.mxu0 %v1181
    %v1292 = vpop.f32.mrf.mxu0
    %v1293 = vadd.f32 0.0, %v1292
    %1294 = vdwg.mxu0
    %1295 = vst [vmem:[#allocation3] sm:$0xff] %v1267
    %1296 = vst [vmem:[#allocation3 + $0x8] sm:$0xff] %v1290
    %1297 = vst [vmem:[#allocation3 + $0x10] sm:$0xff] %v1270
    %1298 = vst [vmem:[#allocation3 + $0x18] sm:$0xff] %v1293
    %v1299 = vld [vmem:[#allocation12] sm:$0xff]
    %v1300 = vld [vmem:[#allocation12 + $0x8] sm:$0xff]
    %v1301 = vld [vmem:[#allocation12 + $0x10] sm:$0xff]
    %v1302 = vld [vmem:[#allocation12 + $0x18] sm:$0xff]
    %v1303 = vld [vmem:[#allocation12 + $0x20] sm:$0xff]
    %v1304 = vld [vmem:[#allocation12 + $0x28] sm:$0xff]
    %v1305 = vld [vmem:[#allocation12 + $0x30] sm:$0xff]
    %v1306 = vld [vmem:[#allocation12 + $0x38] sm:$0xff]
    %v1307 = vld [vmem:[#allocation12 + $0x40] sm:$0xff]
    %v1308 = vld [vmem:[#allocation12 + $0x48] sm:$0xff]
    %v1309 = vld [vmem:[#allocation12 + $0x50] sm:$0xff]
    %v1310 = vld [vmem:[#allocation12 + $0x58] sm:$0xff]
    %v1311 = vld [vmem:[#allocation12 + $0x60] sm:$0xff]
    %v1312 = vld [vmem:[#allocation12 + $0x68] sm:$0xff]
    %v1313 = vld [vmem:[#allocation12 + $0x70] sm:$0xff]
    %v1314 = vld [vmem:[#allocation12 + $0x78] sm:$0xff]
    %v1315 = vld [vmem:[#allocation2] sm:$0x3]
    %v1316 = vld [vmem:[#allocation2 + $0x8] sm:$0x3]
    %v1317 = vld [vmem:[#allocation3 + $0x10] sm:$0xc0]
    %v1318 = vld [vmem:[#allocation3 + $0x18] sm:$0xc0]
    %v1321 = vrot.slane %v1317, 6
    %v1322 = vrot.slane %v1318, 6
    %v1325 = vadd.f32 %v1315, %v1321
    %v1326 = vadd.f32 %v1316, %v1322
    %1327 = vmatpush.msra.mxu0 0.0
    %1328 = vmatpush.msra.mxu0 0.0
    %1329 = vmatpush.msra.mxu0 0.0
    %1330 = vmatpush.msra.mxu0 0.0
    %1331 = vmatpush.msra.mxu0 0.0
    %1332 = vmatpush.msra.mxu0 0.0
    %1333 = vmatpush.msra.mxu0 0.0
    %1334 = vmatpush.msra.mxu0 0.0
    %1335 = vmatpush.msra.mxu0 %v1313
    %1336 = vmatpush.msra.mxu0 %v1311
    %1337 = vmatpush.msra.mxu0 %v1309
    %1338 = vmatpush.msra.mxu0 %v1307
    %1339 = vmatpush.msra.mxu0 %v1305
    %1340 = vmatpush.msra.mxu0 %v1303
    %1341 = vmatpush.msra.mxu0 %v1301
    %1342 = vmatpush.msra.mxu0 %v1299
    %1343 = vmatmul.f32.gmra.mxu0 %v272
    %v1344 = vpop.f32.mrf.mxu0
    %v1345 = vadd.f32 %v1325, %v1344
    %1346 = vdwg.mxu0
    %1347 = vmatpush.msra.mxu0 0.0
    %1348 = vmatpush.msra.mxu0 0.0
    %1349 = vmatpush.msra.mxu0 0.0
    %1350 = vmatpush.msra.mxu0 0.0
    %1351 = vmatpush.msra.mxu0 0.0
    %1352 = vmatpush.msra.mxu0 0.0
    %1353 = vmatpush.msra.mxu0 0.0
    %1354 = vmatpush.msra.mxu0 0.0
    %1355 = vmatpush.msra.mxu0 %v1314
    %1356 = vmatpush.msra.mxu0 %v1312
    %1357 = vmatpush.msra.mxu0 %v1310
    %1358 = vmatpush.msra.mxu0 %v1308
    %1359 = vmatpush.msra.mxu0 %v1306
    %1360 = vmatpush.msra.mxu0 %v1304
    %1361 = vmatpush.msra.mxu0 %v1302
    %1362 = vmatpush.msra.mxu0 %v1300
    %1363 = vmatmul.f32.gmra.mxu0 %v272
    %v1364 = vpop.f32.mrf.mxu0
    %v1365 = vadd.f32 %v1326, %v1364
    %1366 = vdwg.mxu0
    %v1367 = vxor.u32 %v1345, 2147483648
    %v1368 = vmul.f32 %v1367, 1.442695
    %v1369 = vpow.pop %v1368
    %v1370 = vadd.f32 %v1369, 1.0
    %v1371 = vrcp.pop %v1370
    %v1372 = vmul.f32 %v1370, %v1371
    %v1373 = vsub.f32 1.0, %v1372
    %v1374 = vmul.f32 %v1371, %v1373
    %v1375 = vadd.f32 %v1371, %v1374
    %vm1376 = vweird.f32 %v1370
    %vm1377 = vweird.f32 %v1371
    %vm1378 = vmor %vm1376, %vm1377
    %v1379 = vsel %vm1378, %v1371, %v1375
    %v1380 = vand.u32 2147483647, %v1370
    %vm1381 = vcmp.eq.f32.partialorder %v1380, 8.507059e+37
    %v1382 = vand.u32 %v1370, 2147483648
    %v1383 = vor.u32 1.1754944e-38, %v1382
    %v1384 = vsel %vm1381, %v1383, %v1379
    %v1385 = vmul.f32 1.0, %v1384
    %v1386 = vtanh.pop %v1365
    %v1387 = vxor.u32 %v1365, 2147483648
    %v1388 = vmul.f32 %v1387, 1.442695
    %v1389 = vpow.pop %v1388
    %v1390 = vadd.f32 %v1389, 1.0
    %v1391 = vrcp.pop %v1390
    %v1392 = vmul.f32 %v1390, %v1391
    %v1393 = vsub.f32 1.0, %v1392
    %v1394 = vmul.f32 %v1391, %v1393
    %v1395 = vadd.f32 %v1391, %v1394
    %vm1396 = vweird.f32 %v1390
    %vm1397 = vweird.f32 %v1391
    %vm1398 = vmor %vm1396, %vm1397
    %v1399 = vsel %vm1398, %v1391, %v1395
    %v1400 = vand.u32 2147483647, %v1390
    %vm1401 = vcmp.eq.f32.partialorder %v1400, 8.507059e+37
    %v1402 = vand.u32 %v1390, 2147483648
    %v1403 = vor.u32 1.1754944e-38, %v1402
    %v1404 = vsel %vm1401, %v1403, %v1399
    %v1405 = vmul.f32 1.0, %v1404
    %v1406 = vmul.f32 %v1385, 0.0
    %v1407 = vmul.f32 %v1385, %v1386
    %1409 = vrot.lane.b32.xlu0 %v1407, 64
    %v1410 = vpop.permute.xlu0 %1409
    %v1412 = vadd.f32 %v1406, %v1410
    %v1413 = vtanh.pop %v1412
    %v1414 = vmul.f32 %v1405, %v1413
    %v1415 = vld [vmem:[#allocation2] sm:$0xc]
    %v1416 = vld [vmem:[#allocation2 + $0x8] sm:$0xc]
    %v1417 = vld [vmem:[#allocation3 + $0x10] sm:$0x30]
    %v1418 = vld [vmem:[#allocation3 + $0x18] sm:$0x30]
    %v1421 = vrot.slane %v1417, 2
    %v1422 = vrot.slane %v1418, 2
    %v1425 = vadd.f32 %v1415, %v1421
    %v1426 = vadd.f32 %v1416, %v1422
    %1428 = vrot.lane.b32.xlu0 %v1414, 64
    %v1429 = vpop.permute.xlu0 %1428
    %v1432 = vrot.slane %v1425, 2
    %v1433 = vrot.slane %v1426, 2
    %v1436 = vsel %vm270, %v1429, 0
    %1438 = vmatpush.msra.mxu0 0.0
    %1439 = vmatpush.msra.mxu0 0.0
    %1440 = vmatpush.msra.mxu0 0.0
    %1441 = vmatpush.msra.mxu0 0.0
    %1442 = vmatpush.msra.mxu0 0.0
    %1443 = vmatpush.msra.mxu0 0.0
    %1444 = vmatpush.msra.mxu0 0.0
    %1445 = vmatpush.msra.mxu0 0.0
    %1446 = vmatpush.msra.mxu0 %v1313
    %1447 = vmatpush.msra.mxu0 %v1311
    %1448 = vmatpush.msra.mxu0 %v1309
    %1449 = vmatpush.msra.mxu0 %v1307
    %1450 = vmatpush.msra.mxu0 %v1305
    %1451 = vmatpush.msra.mxu0 %v1303
    %1452 = vmatpush.msra.mxu0 %v1301
    %1453 = vmatpush.msra.mxu0 %v1299
    %1454 = vmatmul.f32.gmra.mxu0 %v1436
    %v1455 = vpop.f32.mrf.mxu0
    %v1456 = vadd.f32 %v1432, %v1455
    %1457 = vdwg.mxu0
    %1458 = vmatpush.msra.mxu0 0.0
    %1459 = vmatpush.msra.mxu0 0.0
    %1460 = vmatpush.msra.mxu0 0.0
    %1461 = vmatpush.msra.mxu0 0.0
    %1462 = vmatpush.msra.mxu0 0.0
    %1463 = vmatpush.msra.mxu0 0.0
    %1464 = vmatpush.msra.mxu0 0.0
    %1465 = vmatpush.msra.mxu0 0.0
    %1466 = vmatpush.msra.mxu0 %v1314
    %1467 = vmatpush.msra.mxu0 %v1312
    %1468 = vmatpush.msra.mxu0 %v1310
    %1469 = vmatpush.msra.mxu0 %v1308
    %1470 = vmatpush.msra.mxu0 %v1306
    %1471 = vmatpush.msra.mxu0 %v1304
    %1472 = vmatpush.msra.mxu0 %v1302
    %1473 = vmatpush.msra.mxu0 %v1300
    %1474 = vmatmul.f32.gmra.mxu0 %v1436
    %v1475 = vpop.f32.mrf.mxu0
    %v1476 = vadd.f32 %v1433, %v1475
    %1477 = vdwg.mxu0
    %v1478 = vxor.u32 %v1456, 2147483648
    %v1479 = vmul.f32 %v1478, 1.442695
    %v1480 = vpow.pop %v1479
    %v1481 = vadd.f32 %v1480, 1.0
    %v1482 = vrcp.pop %v1481
    %v1483 = vmul.f32 %v1481, %v1482
    %v1484 = vsub.f32 1.0, %v1483
    %v1485 = vmul.f32 %v1482, %v1484
    %v1486 = vadd.f32 %v1482, %v1485
    %vm1487 = vweird.f32 %v1481
    %vm1488 = vweird.f32 %v1482
    %vm1489 = vmor %vm1487, %vm1488
    %v1490 = vsel %vm1489, %v1482, %v1486
    %v1491 = vand.u32 2147483647, %v1481
    %vm1492 = vcmp.eq.f32.partialorder %v1491, 8.507059e+37
    %v1493 = vand.u32 %v1481, 2147483648
    %v1494 = vor.u32 1.1754944e-38, %v1493
    %v1495 = vsel %vm1492, %v1494, %v1490
    %v1496 = vmul.f32 1.0, %v1495
    %v1497 = vtanh.pop %v1476
    %v1498 = vxor.u32 %v1476, 2147483648
    %v1499 = vmul.f32 %v1498, 1.442695
    %v1500 = vpow.pop %v1499
    %v1501 = vadd.f32 %v1500, 1.0
    %v1502 = vrcp.pop %v1501
    %v1503 = vmul.f32 %v1501, %v1502
    %v1504 = vsub.f32 1.0, %v1503
    %v1505 = vmul.f32 %v1502, %v1504
    %v1506 = vadd.f32 %v1502, %v1505
    %vm1507 = vweird.f32 %v1501
    %vm1508 = vweird.f32 %v1502
    %vm1509 = vmor %vm1507, %vm1508
    %v1510 = vsel %vm1509, %v1502, %v1506
    %v1511 = vand.u32 2147483647, %v1501
    %vm1512 = vcmp.eq.f32.partialorder %v1511, 8.507059e+37
    %v1513 = vand.u32 %v1501, 2147483648
    %v1514 = vor.u32 1.1754944e-38, %v1513
    %v1515 = vsel %vm1512, %v1514, %v1510
    %v1516 = vmul.f32 1.0, %v1515
    %v1517 = vmul.f32 %v1496, %v1412
    %v1518 = vmul.f32 %v1496, %v1497
    %1520 = vrot.lane.b32.xlu0 %v1518, 64
    %v1521 = vpop.permute.xlu0 %1520
    %v1523 = vadd.f32 %v1517, %v1521
    %v1524 = vtanh.pop %v1523
    %v1525 = vmul.f32 %v1516, %v1524
    %v1526 = vld [vmem:[#allocation2] sm:$0x30]
    %v1527 = vld [vmem:[#allocation2 + $0x8] sm:$0x30]
    %v1528 = vld [vmem:[#allocation3 + $0x10] sm:$0xc]
    %v1529 = vld [vmem:[#allocation3 + $0x18] sm:$0xc]
    %v1532 = vrot.slane %v1528, 6
    %v1533 = vrot.slane %v1529, 6
    %v1536 = vadd.f32 %v1526, %v1532
    %v1537 = vadd.f32 %v1527, %v1533
    %1539 = vrot.lane.b32.xlu0 %v1525, 64
    %v1540 = vpop.permute.xlu0 %1539
    %v1543 = vrot.slane %v1536, 4
    %v1544 = vrot.slane %v1537, 4
    %v1547 = vsel %vm270, %v1540, 0
    %1549 = vmatpush.msra.mxu0 0.0
    %1550 = vmatpush.msra.mxu0 0.0
    %1551 = vmatpush.msra.mxu0 0.0
    %1552 = vmatpush.msra.mxu0 0.0
    %1553 = vmatpush.msra.mxu0 0.0
    %1554 = vmatpush.msra.mxu0 0.0
    %1555 = vmatpush.msra.mxu0 0.0
    %1556 = vmatpush.msra.mxu0 0.0
    %1557 = vmatpush.msra.mxu0 %v1313
    %1558 = vmatpush.msra.mxu0 %v1311
    %1559 = vmatpush.msra.mxu0 %v1309
    %1560 = vmatpush.msra.mxu0 %v1307
    %1561 = vmatpush.msra.mxu0 %v1305
    %1562 = vmatpush.msra.mxu0 %v1303
    %1563 = vmatpush.msra.mxu0 %v1301
    %1564 = vmatpush.msra.mxu0 %v1299
    %1565 = vmatmul.f32.gmra.mxu0 %v1547
    %v1566 = vpop.f32.mrf.mxu0
    %v1567 = vadd.f32 %v1543, %v1566
    %1568 = vdwg.mxu0
    %1569 = vmatpush.msra.mxu0 0.0
    %1570 = vmatpush.msra.mxu0 0.0
    %1571 = vmatpush.msra.mxu0 0.0
    %1572 = vmatpush.msra.mxu0 0.0
    %1573 = vmatpush.msra.mxu0 0.0
    %1574 = vmatpush.msra.mxu0 0.0
    %1575 = vmatpush.msra.mxu0 0.0
    %1576 = vmatpush.msra.mxu0 0.0
    %1577 = vmatpush.msra.mxu0 %v1314
    %1578 = vmatpush.msra.mxu0 %v1312
    %1579 = vmatpush.msra.mxu0 %v1310
    %1580 = vmatpush.msra.mxu0 %v1308
    %1581 = vmatpush.msra.mxu0 %v1306
    %1582 = vmatpush.msra.mxu0 %v1304
    %1583 = vmatpush.msra.mxu0 %v1302
    %1584 = vmatpush.msra.mxu0 %v1300
    %1585 = vmatmul.f32.gmra.mxu0 %v1547
    %v1586 = vpop.f32.mrf.mxu0
    %v1587 = vadd.f32 %v1544, %v1586
    %1588 = vdwg.mxu0
    %v1589 = vxor.u32 %v1567, 2147483648
    %v1590 = vmul.f32 %v1589, 1.442695
    %v1591 = vpow.pop %v1590
    %v1592 = vadd.f32 %v1591, 1.0
    %v1593 = vrcp.pop %v1592
    %v1594 = vmul.f32 %v1592, %v1593
    %v1595 = vsub.f32 1.0, %v1594
    %v1596 = vmul.f32 %v1593, %v1595
    %v1597 = vadd.f32 %v1593, %v1596
    %vm1598 = vweird.f32 %v1592
    %vm1599 = vweird.f32 %v1593
    %vm1600 = vmor %vm1598, %vm1599
    %v1601 = vsel %vm1600, %v1593, %v1597
    %v1602 = vand.u32 2147483647, %v1592
    %vm1603 = vcmp.eq.f32.partialorder %v1602, 8.507059e+37
    %v1604 = vand.u32 %v1592, 2147483648
    %v1605 = vor.u32 1.1754944e-38, %v1604
    %v1606 = vsel %vm1603, %v1605, %v1601
    %v1607 = vmul.f32 1.0, %v1606
    %v1608 = vtanh.pop %v1587
    %v1609 = vxor.u32 %v1587, 2147483648
    %v1610 = vmul.f32 %v1609, 1.442695
    %v1611 = vpow.pop %v1610
    %v1612 = vadd.f32 %v1611, 1.0
    %v1613 = vrcp.pop %v1612
    %v1614 = vmul.f32 %v1612, %v1613
    %v1615 = vsub.f32 1.0, %v1614
    %v1616 = vmul.f32 %v1613, %v1615
    %v1617 = vadd.f32 %v1613, %v1616
    %vm1618 = vweird.f32 %v1612
    %vm1619 = vweird.f32 %v1613
    %vm1620 = vmor %vm1618, %vm1619
    %v1621 = vsel %vm1620, %v1613, %v1617
    %v1622 = vand.u32 2147483647, %v1612
    %vm1623 = vcmp.eq.f32.partialorder %v1622, 8.507059e+37
    %v1624 = vand.u32 %v1612, 2147483648
    %v1625 = vor.u32 1.1754944e-38, %v1624
    %v1626 = vsel %vm1623, %v1625, %v1621
    %v1627 = vmul.f32 1.0, %v1626
    %v1628 = vmul.f32 %v1607, %v1523
    %v1629 = vmul.f32 %v1607, %v1608
    %1631 = vrot.lane.b32.xlu0 %v1629, 64
    %v1632 = vpop.permute.xlu0 %1631
    %v1634 = vadd.f32 %v1628, %v1632
    %v1635 = vtanh.pop %v1634
    %v1636 = vmul.f32 %v1627, %v1635
    %v1637 = vld [vmem:[#allocation2] sm:$0xc0]
    %v1638 = vld [vmem:[#allocation2 + $0x8] sm:$0xc0]
    %v1639 = vld [vmem:[#allocation3 + $0x10] sm:$0x3]
    %v1640 = vld [vmem:[#allocation3 + $0x18] sm:$0x3]
    %v1643 = vrot.slane %v1639, 2
    %v1644 = vrot.slane %v1640, 2
    %v1647 = vadd.f32 %v1637, %v1643
    %v1648 = vadd.f32 %v1638, %v1644
    %1650 = vrot.lane.b32.xlu0 %v1636, 64
    %v1651 = vpop.permute.xlu0 %1650
    %v1654 = vrot.slane %v1647, 6
    %v1655 = vrot.slane %v1648, 6
    %v1658 = vsel %vm270, %v1651, 0
    %1660 = vmatpush.msra.mxu0 0.0
    %1661 = vmatpush.msra.mxu0 0.0
    %1662 = vmatpush.msra.mxu0 0.0
    %1663 = vmatpush.msra.mxu0 0.0
    %1664 = vmatpush.msra.mxu0 0.0
    %1665 = vmatpush.msra.mxu0 0.0
    %1666 = vmatpush.msra.mxu0 0.0
    %1667 = vmatpush.msra.mxu0 0.0
    %1668 = vmatpush.msra.mxu0 %v1313
    %1669 = vmatpush.msra.mxu0 %v1311
    %1670 = vmatpush.msra.mxu0 %v1309
    %1671 = vmatpush.msra.mxu0 %v1307
    %1672 = vmatpush.msra.mxu0 %v1305
    %1673 = vmatpush.msra.mxu0 %v1303
    %1674 = vmatpush.msra.mxu0 %v1301
    %1675 = vmatpush.msra.mxu0 %v1299
    %1676 = vmatmul.f32.gmra.mxu0 %v1658
    %v1677 = vpop.f32.mrf.mxu0
    %v1678 = vadd.f32 %v1654, %v1677
    %1679 = vdwg.mxu0
    %1680 = vmatpush.msra.mxu0 0.0
    %1681 = vmatpush.msra.mxu0 0.0
    %1682 = vmatpush.msra.mxu0 0.0
    %1683 = vmatpush.msra.mxu0 0.0
    %1684 = vmatpush.msra.mxu0 0.0
    %1685 = vmatpush.msra.mxu0 0.0
    %1686 = vmatpush.msra.mxu0 0.0
    %1687 = vmatpush.msra.mxu0 0.0
    %1688 = vmatpush.msra.mxu0 %v1314
    %1689 = vmatpush.msra.mxu0 %v1312
    %1690 = vmatpush.msra.mxu0 %v1310
    %1691 = vmatpush.msra.mxu0 %v1308
    %1692 = vmatpush.msra.mxu0 %v1306
    %1693 = vmatpush.msra.mxu0 %v1304
    %1694 = vmatpush.msra.mxu0 %v1302
    %1695 = vmatpush.msra.mxu0 %v1300
    %1696 = vmatmul.f32.gmra.mxu0 %v1658
    %v1697 = vpop.f32.mrf.mxu0
    %v1698 = vadd.f32 %v1655, %v1697
    %1699 = vdwg.mxu0
    %v1700 = vxor.u32 %v1678, 2147483648
    %v1701 = vmul.f32 %v1700, 1.442695
    %v1702 = vpow.pop %v1701
    %v1703 = vadd.f32 %v1702, 1.0
    %v1704 = vrcp.pop %v1703
    %v1705 = vmul.f32 %v1703, %v1704
    %v1706 = vsub.f32 1.0, %v1705
    %v1707 = vmul.f32 %v1704, %v1706
    %v1708 = vadd.f32 %v1704, %v1707
    %vm1709 = vweird.f32 %v1703
    %vm1710 = vweird.f32 %v1704
    %vm1711 = vmor %vm1709, %vm1710
    %v1712 = vsel %vm1711, %v1704, %v1708
    %v1713 = vand.u32 2147483647, %v1703
    %vm1714 = vcmp.eq.f32.partialorder %v1713, 8.507059e+37
    %v1715 = vand.u32 %v1703, 2147483648
    %v1716 = vor.u32 1.1754944e-38, %v1715
    %v1717 = vsel %vm1714, %v1716, %v1712
    %v1718 = vmul.f32 1.0, %v1717
    %v1719 = vtanh.pop %v1698
    %v1720 = vxor.u32 %v1698, 2147483648
    %v1721 = vmul.f32 %v1720, 1.442695
    %v1722 = vpow.pop %v1721
    %v1723 = vadd.f32 %v1722, 1.0
    %v1724 = vrcp.pop %v1723
    %v1725 = vmul.f32 %v1723, %v1724
    %v1726 = vsub.f32 1.0, %v1725
    %v1727 = vmul.f32 %v1724, %v1726
    %v1728 = vadd.f32 %v1724, %v1727
    %vm1729 = vweird.f32 %v1723
    %vm1730 = vweird.f32 %v1724
    %vm1731 = vmor %vm1729, %vm1730
    %v1732 = vsel %vm1731, %v1724, %v1728
    %v1733 = vand.u32 2147483647, %v1723
    %vm1734 = vcmp.eq.f32.partialorder %v1733, 8.507059e+37
    %v1735 = vand.u32 %v1723, 2147483648
    %v1736 = vor.u32 1.1754944e-38, %v1735
    %v1737 = vsel %vm1734, %v1736, %v1732
    %v1738 = vmul.f32 1.0, %v1737
    %v1739 = vmul.f32 %v1718, %v1634
    %v1740 = vmul.f32 %v1718, %v1719
    %1742 = vrot.lane.b32.xlu0 %v1740, 64
    %v1743 = vpop.permute.xlu0 %1742
    %v1745 = vadd.f32 %v1739, %v1743
    %v1746 = vtanh.pop %v1745
    %v1747 = vmul.f32 %v1738, %v1746
    %v1748 = vld [vmem:[#allocation2 + $0x10] sm:$0x3]
    %v1749 = vld [vmem:[#allocation2 + $0x18] sm:$0x3]
    %v1750 = vld [vmem:[#allocation3] sm:$0xc0]
    %v1751 = vld [vmem:[#allocation3 + $0x8] sm:$0xc0]
    %v1754 = vrot.slane %v1750, 6
    %v1755 = vrot.slane %v1751, 6
    %v1758 = vadd.f32 %v1748, %v1754
    %v1759 = vadd.f32 %v1749, %v1755
    %1761 = vrot.lane.b32.xlu0 %v1747, 64
    %v1762 = vpop.permute.xlu0 %1761
    %v1763 = vsel %vm270, %v1762, 0
    %1765 = vmatpush.msra.mxu0 0.0
    %1766 = vmatpush.msra.mxu0 0.0
    %1767 = vmatpush.msra.mxu0 0.0
    %1768 = vmatpush.msra.mxu0 0.0
    %1769 = vmatpush.msra.mxu0 0.0
    %1770 = vmatpush.msra.mxu0 0.0
    %1771 = vmatpush.msra.mxu0 0.0
    %1772 = vmatpush.msra.mxu0 0.0
    %1773 = vmatpush.msra.mxu0 %v1313
    %1774 = vmatpush.msra.mxu0 %v1311
    %1775 = vmatpush.msra.mxu0 %v1309
    %1776 = vmatpush.msra.mxu0 %v1307
    %1777 = vmatpush.msra.mxu0 %v1305
    %1778 = vmatpush.msra.mxu0 %v1303
    %1779 = vmatpush.msra.mxu0 %v1301
    %1780 = vmatpush.msra.mxu0 %v1299
    %1781 = vmatmul.f32.gmra.mxu0 %v1763
    %v1782 = vpop.f32.mrf.mxu0
    %v1783 = vadd.f32 %v1758, %v1782
    %1784 = vdwg.mxu0
    %1785 = vmatpush.msra.mxu0 0.0
    %1786 = vmatpush.msra.mxu0 0.0
    %1787 = vmatpush.msra.mxu0 0.0
    %1788 = vmatpush.msra.mxu0 0.0
    %1789 = vmatpush.msra.mxu0 0.0
    %1790 = vmatpush.msra.mxu0 0.0
    %1791 = vmatpush.msra.mxu0 0.0
    %1792 = vmatpush.msra.mxu0 0.0
    %1793 = vmatpush.msra.mxu0 %v1314
    %1794 = vmatpush.msra.mxu0 %v1312
    %1795 = vmatpush.msra.mxu0 %v1310
    %1796 = vmatpush.msra.mxu0 %v1308
    %1797 = vmatpush.msra.mxu0 %v1306
    %1798 = vmatpush.msra.mxu0 %v1304
    %1799 = vmatpush.msra.mxu0 %v1302
    %1800 = vmatpush.msra.mxu0 %v1300
    %1801 = vmatmul.f32.gmra.mxu0 %v1763
    %v1802 = vpop.f32.mrf.mxu0
    %v1803 = vadd.f32 %v1759, %v1802
    %1804 = vdwg.mxu0
    %v1805 = vxor.u32 %v1783, 2147483648
    %v1806 = vmul.f32 %v1805, 1.442695
    %v1807 = vpow.pop %v1806
    %v1808 = vadd.f32 %v1807, 1.0
    %v1809 = vrcp.pop %v1808
    %v1810 = vmul.f32 %v1808, %v1809
    %v1811 = vsub.f32 1.0, %v1810
    %v1812 = vmul.f32 %v1809, %v1811
    %v1813 = vadd.f32 %v1809, %v1812
    %vm1814 = vweird.f32 %v1808
    %vm1815 = vweird.f32 %v1809
    %vm1816 = vmor %vm1814, %vm1815
    %v1817 = vsel %vm1816, %v1809, %v1813
    %v1818 = vand.u32 2147483647, %v1808
    %vm1819 = vcmp.eq.f32.partialorder %v1818, 8.507059e+37
    %v1820 = vand.u32 %v1808, 2147483648
    %v1821 = vor.u32 1.1754944e-38, %v1820
    %v1822 = vsel %vm1819, %v1821, %v1817
    %v1823 = vmul.f32 1.0, %v1822
    %v1824 = vtanh.pop %v1803
    %v1825 = vxor.u32 %v1803, 2147483648
    %v1826 = vmul.f32 %v1825, 1.442695
    %v1827 = vpow.pop %v1826
    %v1828 = vadd.f32 %v1827, 1.0
    %v1829 = vrcp.pop %v1828
    %v1830 = vmul.f32 %v1828, %v1829
    %v1831 = vsub.f32 1.0, %v1830
    %v1832 = vmul.f32 %v1829, %v1831
    %v1833 = vadd.f32 %v1829, %v1832
    %vm1834 = vweird.f32 %v1828
    %vm1835 = vweird.f32 %v1829
    %vm1836 = vmor %vm1834, %vm1835
    %v1837 = vsel %vm1836, %v1829, %v1833
    %v1838 = vand.u32 2147483647, %v1828
    %vm1839 = vcmp.eq.f32.partialorder %v1838, 8.507059e+37
    %v1840 = vand.u32 %v1828, 2147483648
    %v1841 = vor.u32 1.1754944e-38, %v1840
    %v1842 = vsel %vm1839, %v1841, %v1837
    %v1843 = vmul.f32 1.0, %v1842
    %v1844 = vmul.f32 %v1823, %v1745
    %v1845 = vmul.f32 %v1823, %v1824
    %1847 = vrot.lane.b32.xlu0 %v1845, 64
    %v1848 = vpop.permute.xlu0 %1847
    %v1850 = vadd.f32 %v1844, %v1848
    %v1851 = vtanh.pop %v1850
    %v1852 = vmul.f32 %v1843, %v1851
    %v1853 = vld [vmem:[#allocation2 + $0x10] sm:$0xc]
    %v1854 = vld [vmem:[#allocation2 + $0x18] sm:$0xc]
    %v1855 = vld [vmem:[#allocation3] sm:$0x30]
    %v1856 = vld [vmem:[#allocation3 + $0x8] sm:$0x30]
    %v1859 = vrot.slane %v1855, 2
    %v1860 = vrot.slane %v1856, 2
    %v1863 = vadd.f32 %v1853, %v1859
    %v1864 = vadd.f32 %v1854, %v1860
    %1866 = vrot.lane.b32.xlu0 %v1852, 64
    %v1867 = vpop.permute.xlu0 %1866
    %v1870 = vrot.slane %v1863, 2
    %v1871 = vrot.slane %v1864, 2
    %v1874 = vsel %vm270, %v1867, 0
    %1876 = vmatpush.msra.mxu0 0.0
    %1877 = vmatpush.msra.mxu0 0.0
    %1878 = vmatpush.msra.mxu0 0.0
    %1879 = vmatpush.msra.mxu0 0.0
    %1880 = vmatpush.msra.mxu0 0.0
    %1881 = vmatpush.msra.mxu0 0.0
    %1882 = vmatpush.msra.mxu0 0.0
    %1883 = vmatpush.msra.mxu0 0.0
    %1884 = vmatpush.msra.mxu0 %v1313
    %1885 = vmatpush.msra.mxu0 %v1311
    %1886 = vmatpush.msra.mxu0 %v1309
    %1887 = vmatpush.msra.mxu0 %v1307
    %1888 = vmatpush.msra.mxu0 %v1305
    %1889 = vmatpush.msra.mxu0 %v1303
    %1890 = vmatpush.msra.mxu0 %v1301
    %1891 = vmatpush.msra.mxu0 %v1299
    %1892 = vmatmul.f32.gmra.mxu0 %v1874
    %v1893 = vpop.f32.mrf.mxu0
    %v1894 = vadd.f32 %v1870, %v1893
    %1895 = vdwg.mxu0
    %1896 = vmatpush.msra.mxu0 0.0
    %1897 = vmatpush.msra.mxu0 0.0
    %1898 = vmatpush.msra.mxu0 0.0
    %1899 = vmatpush.msra.mxu0 0.0
    %1900 = vmatpush.msra.mxu0 0.0
    %1901 = vmatpush.msra.mxu0 0.0
    %1902 = vmatpush.msra.mxu0 0.0
    %1903 = vmatpush.msra.mxu0 0.0
    %1904 = vmatpush.msra.mxu0 %v1314
    %1905 = vmatpush.msra.mxu0 %v1312
    %1906 = vmatpush.msra.mxu0 %v1310
    %1907 = vmatpush.msra.mxu0 %v1308
    %1908 = vmatpush.msra.mxu0 %v1306
    %1909 = vmatpush.msra.mxu0 %v1304
    %1910 = vmatpush.msra.mxu0 %v1302
    %1911 = vmatpush.msra.mxu0 %v1300
    %1912 = vmatmul.f32.gmra.mxu0 %v1874
    %v1913 = vpop.f32.mrf.mxu0
    %v1914 = vadd.f32 %v1871, %v1913
    %1915 = vdwg.mxu0
    %v1916 = vxor.u32 %v1894, 2147483648
    %v1917 = vmul.f32 %v1916, 1.442695
    %v1918 = vpow.pop %v1917
    %v1919 = vadd.f32 %v1918, 1.0
    %v1920 = vrcp.pop %v1919
    %v1921 = vmul.f32 %v1919, %v1920
    %v1922 = vsub.f32 1.0, %v1921
    %v1923 = vmul.f32 %v1920, %v1922
    %v1924 = vadd.f32 %v1920, %v1923
    %vm1925 = vweird.f32 %v1919
    %vm1926 = vweird.f32 %v1920
    %vm1927 = vmor %vm1925, %vm1926
    %v1928 = vsel %vm1927, %v1920, %v1924
    %v1929 = vand.u32 2147483647, %v1919
    %vm1930 = vcmp.eq.f32.partialorder %v1929, 8.507059e+37
    %v1931 = vand.u32 %v1919, 2147483648
    %v1932 = vor.u32 1.1754944e-38, %v1931
    %v1933 = vsel %vm1930, %v1932, %v1928
    %v1934 = vmul.f32 1.0, %v1933
    %v1935 = vtanh.pop %v1914
    %v1936 = vxor.u32 %v1914, 2147483648
    %v1937 = vmul.f32 %v1936, 1.442695
    %v1938 = vpow.pop %v1937
    %v1939 = vadd.f32 %v1938, 1.0
    %v1940 = vrcp.pop %v1939
    %v1941 = vmul.f32 %v1939, %v1940
    %v1942 = vsub.f32 1.0, %v1941
    %v1943 = vmul.f32 %v1940, %v1942
    %v1944 = vadd.f32 %v1940, %v1943
    %vm1945 = vweird.f32 %v1939
    %vm1946 = vweird.f32 %v1940
    %vm1947 = vmor %vm1945, %vm1946
    %v1948 = vsel %vm1947, %v1940, %v1944
    %v1949 = vand.u32 2147483647, %v1939
    %vm1950 = vcmp.eq.f32.partialorder %v1949, 8.507059e+37
    %v1951 = vand.u32 %v1939, 2147483648
    %v1952 = vor.u32 1.1754944e-38, %v1951
    %v1953 = vsel %vm1950, %v1952, %v1948
    %v1954 = vmul.f32 1.0, %v1953
    %v1955 = vmul.f32 %v1934, %v1850
    %v1956 = vmul.f32 %v1934, %v1935
    %1958 = vrot.lane.b32.xlu0 %v1956, 64
    %v1959 = vpop.permute.xlu0 %1958
    %v1961 = vadd.f32 %v1955, %v1959
    %v1962 = vtanh.pop %v1961
    %v1963 = vmul.f32 %v1954, %v1962
    %v1964 = vld [vmem:[#allocation2 + $0x10] sm:$0x30]
    %v1965 = vld [vmem:[#allocation2 + $0x18] sm:$0x30]
    %v1966 = vld [vmem:[#allocation3] sm:$0xc]
    %v1967 = vld [vmem:[#allocation3 + $0x8] sm:$0xc]
    %v1970 = vrot.slane %v1966, 6
    %v1971 = vrot.slane %v1967, 6
    %v1974 = vadd.f32 %v1964, %v1970
    %v1975 = vadd.f32 %v1965, %v1971
    %1977 = vrot.lane.b32.xlu0 %v1963, 64
    %v1978 = vpop.permute.xlu0 %1977
    %v1981 = vrot.slane %v1974, 4
    %v1982 = vrot.slane %v1975, 4
    %v1985 = vsel %vm270, %v1978, 0
    %1987 = vmatpush.msra.mxu0 0.0
    %1988 = vmatpush.msra.mxu0 0.0
    %1989 = vmatpush.msra.mxu0 0.0
    %1990 = vmatpush.msra.mxu0 0.0
    %1991 = vmatpush.msra.mxu0 0.0
    %1992 = vmatpush.msra.mxu0 0.0
    %1993 = vmatpush.msra.mxu0 0.0
    %1994 = vmatpush.msra.mxu0 0.0
    %1995 = vmatpush.msra.mxu0 %v1313
    %1996 = vmatpush.msra.mxu0 %v1311
    %1997 = vmatpush.msra.mxu0 %v1309
    %1998 = vmatpush.msra.mxu0 %v1307
    %1999 = vmatpush.msra.mxu0 %v1305
    %2000 = vmatpush.msra.mxu0 %v1303
    %2001 = vmatpush.msra.mxu0 %v1301
    %2002 = vmatpush.msra.mxu0 %v1299
    %2003 = vmatmul.f32.gmra.mxu0 %v1985
    %v2004 = vpop.f32.mrf.mxu0
    %v2005 = vadd.f32 %v1981, %v2004
    %2006 = vdwg.mxu0
    %2007 = vmatpush.msra.mxu0 0.0
    %2008 = vmatpush.msra.mxu0 0.0
    %2009 = vmatpush.msra.mxu0 0.0
    %2010 = vmatpush.msra.mxu0 0.0
    %2011 = vmatpush.msra.mxu0 0.0
    %2012 = vmatpush.msra.mxu0 0.0
    %2013 = vmatpush.msra.mxu0 0.0
    %2014 = vmatpush.msra.mxu0 0.0
    %2015 = vmatpush.msra.mxu0 %v1314
    %2016 = vmatpush.msra.mxu0 %v1312
    %2017 = vmatpush.msra.mxu0 %v1310
    %2018 = vmatpush.msra.mxu0 %v1308
    %2019 = vmatpush.msra.mxu0 %v1306
    %2020 = vmatpush.msra.mxu0 %v1304
    %2021 = vmatpush.msra.mxu0 %v1302
    %2022 = vmatpush.msra.mxu0 %v1300
    %2023 = vmatmul.f32.gmra.mxu0 %v1985
    %v2024 = vpop.f32.mrf.mxu0
    %v2025 = vadd.f32 %v1982, %v2024
    %2026 = vdwg.mxu0
    %v2027 = vxor.u32 %v2005, 2147483648
    %v2028 = vmul.f32 %v2027, 1.442695
    %v2029 = vpow.pop %v2028
    %v2030 = vadd.f32 %v2029, 1.0
    %v2031 = vrcp.pop %v2030
    %v2032 = vmul.f32 %v2030, %v2031
    %v2033 = vsub.f32 1.0, %v2032
    %v2034 = vmul.f32 %v2031, %v2033
    %v2035 = vadd.f32 %v2031, %v2034
    %vm2036 = vweird.f32 %v2030
    %vm2037 = vweird.f32 %v2031
    %vm2038 = vmor %vm2036, %vm2037
    %v2039 = vsel %vm2038, %v2031, %v2035
    %v2040 = vand.u32 2147483647, %v2030
    %vm2041 = vcmp.eq.f32.partialorder %v2040, 8.507059e+37
    %v2042 = vand.u32 %v2030, 2147483648
    %v2043 = vor.u32 1.1754944e-38, %v2042
    %v2044 = vsel %vm2041, %v2043, %v2039
    %v2045 = vmul.f32 1.0, %v2044
    %v2046 = vtanh.pop %v2025
    %v2047 = vxor.u32 %v2025, 2147483648
    %v2048 = vmul.f32 %v2047, 1.442695
    %v2049 = vpow.pop %v2048
    %v2050 = vadd.f32 %v2049, 1.0
    %v2051 = vrcp.pop %v2050
    %v2052 = vmul.f32 %v2050, %v2051
    %v2053 = vsub.f32 1.0, %v2052
    %v2054 = vmul.f32 %v2051, %v2053
    %v2055 = vadd.f32 %v2051, %v2054
    %vm2056 = vweird.f32 %v2050
    %vm2057 = vweird.f32 %v2051
    %vm2058 = vmor %vm2056, %vm2057
    %v2059 = vsel %vm2058, %v2051, %v2055
    %v2060 = vand.u32 2147483647, %v2050
    %vm2061 = vcmp.eq.f32.partialorder %v2060, 8.507059e+37
    %v2062 = vand.u32 %v2050, 2147483648
    %v2063 = vor.u32 1.1754944e-38, %v2062
    %v2064 = vsel %vm2061, %v2063, %v2059
    %v2065 = vmul.f32 1.0, %v2064
    %v2066 = vmul.f32 %v2045, %v1961
    %v2067 = vmul.f32 %v2045, %v2046
    %2069 = vrot.lane.b32.xlu0 %v2067, 64
    %v2070 = vpop.permute.xlu0 %2069
    %v2072 = vadd.f32 %v2066, %v2070
    %v2073 = vtanh.pop %v2072
    %v2074 = vmul.f32 %v2065, %v2073
    %v2075 = vld [vmem:[#allocation2 + $0x10] sm:$0xc0]
    %v2076 = vld [vmem:[#allocation2 + $0x18] sm:$0xc0]
    %v2077 = vld [vmem:[#allocation3] sm:$0x3]
    %v2078 = vld [vmem:[#allocation3 + $0x8] sm:$0x3]
    %v2081 = vrot.slane %v2077, 2
    %v2082 = vrot.slane %v2078, 2
    %v2085 = vadd.f32 %v2075, %v2081
    %v2086 = vadd.f32 %v2076, %v2082
    %2088 = vrot.lane.b32.xlu0 %v2074, 64
    %v2089 = vpop.permute.xlu0 %2088
    %v2092 = vrot.slane %v2085, 6
    %v2093 = vrot.slane %v2086, 6
    %v2096 = vsel %vm270, %v2089, 0
    %2098 = vmatpush.msra.mxu0 0.0
    %2099 = vmatpush.msra.mxu0 0.0
    %2100 = vmatpush.msra.mxu0 0.0
    %2101 = vmatpush.msra.mxu0 0.0
    %2102 = vmatpush.msra.mxu0 0.0
    %2103 = vmatpush.msra.mxu0 0.0
    %2104 = vmatpush.msra.mxu0 0.0
    %2105 = vmatpush.msra.mxu0 0.0
    %2106 = vmatpush.msra.mxu0 %v1313
    %2107 = vmatpush.msra.mxu0 %v1311
    %2108 = vmatpush.msra.mxu0 %v1309
    %2109 = vmatpush.msra.mxu0 %v1307
    %2110 = vmatpush.msra.mxu0 %v1305
    %2111 = vmatpush.msra.mxu0 %v1303
    %2112 = vmatpush.msra.mxu0 %v1301
    %2113 = vmatpush.msra.mxu0 %v1299
    %2114 = vmatmul.f32.gmra.mxu0 %v2096
    %v2115 = vpop.f32.mrf.mxu0
    %v2116 = vadd.f32 %v2092, %v2115
    %2117 = vdwg.mxu0
    %2118 = vmatpush.msra.mxu0 0.0
    %2119 = vmatpush.msra.mxu0 0.0
    %2120 = vmatpush.msra.mxu0 0.0
    %2121 = vmatpush.msra.mxu0 0.0
    %2122 = vmatpush.msra.mxu0 0.0
    %2123 = vmatpush.msra.mxu0 0.0
    %2124 = vmatpush.msra.mxu0 0.0
    %2125 = vmatpush.msra.mxu0 0.0
    %2126 = vmatpush.msra.mxu0 %v1314
    %2127 = vmatpush.msra.mxu0 %v1312
    %2128 = vmatpush.msra.mxu0 %v1310
    %2129 = vmatpush.msra.mxu0 %v1308
    %2130 = vmatpush.msra.mxu0 %v1306
    %2131 = vmatpush.msra.mxu0 %v1304
    %2132 = vmatpush.msra.mxu0 %v1302
    %2133 = vmatpush.msra.mxu0 %v1300
    %2134 = vmatmul.f32.gmra.mxu0 %v2096
    %v2135 = vpop.f32.mrf.mxu0
    %v2136 = vadd.f32 %v2093, %v2135
    %2137 = vdwg.mxu0
    %v2138 = vxor.u32 %v2116, 2147483648
    %v2139 = vmul.f32 %v2138, 1.442695
    %v2140 = vpow.pop %v2139
    %v2141 = vadd.f32 %v2140, 1.0
    %v2142 = vrcp.pop %v2141
    %v2143 = vmul.f32 %v2141, %v2142
    %v2144 = vsub.f32 1.0, %v2143
    %v2145 = vmul.f32 %v2142, %v2144
    %v2146 = vadd.f32 %v2142, %v2145
    %vm2147 = vweird.f32 %v2141
    %vm2148 = vweird.f32 %v2142
    %vm2149 = vmor %vm2147, %vm2148
    %v2150 = vsel %vm2149, %v2142, %v2146
    %v2151 = vand.u32 2147483647, %v2141
    %vm2152 = vcmp.eq.f32.partialorder %v2151, 8.507059e+37
    %v2153 = vand.u32 %v2141, 2147483648
    %v2154 = vor.u32 1.1754944e-38, %v2153
    %v2155 = vsel %vm2152, %v2154, %v2150
    %v2156 = vmul.f32 1.0, %v2155
    %v2157 = vtanh.pop %v2136
    %v2158 = vxor.u32 %v2136, 2147483648
    %v2159 = vmul.f32 %v2158, 1.442695
    %v2160 = vpow.pop %v2159
    %v2161 = vadd.f32 %v2160, 1.0
    %v2162 = vrcp.pop %v2161
    %v2163 = vmul.f32 %v2161, %v2162
    %v2164 = vsub.f32 1.0, %v2163
    %v2165 = vmul.f32 %v2162, %v2164
    %v2166 = vadd.f32 %v2162, %v2165
    %vm2167 = vweird.f32 %v2161
    %vm2168 = vweird.f32 %v2162
    %vm2169 = vmor %vm2167, %vm2168
    %v2170 = vsel %vm2169, %v2162, %v2166
    %v2171 = vand.u32 2147483647, %v2161
    %vm2172 = vcmp.eq.f32.partialorder %v2171, 8.507059e+37
    %v2173 = vand.u32 %v2161, 2147483648
    %v2174 = vor.u32 1.1754944e-38, %v2173
    %v2175 = vsel %vm2172, %v2174, %v2170
    %v2176 = vmul.f32 1.0, %v2175
    %v2177 = vmul.f32 %v2156, %v2072
    %v2178 = vmul.f32 %v2156, %v2157
    %2180 = vrot.lane.b32.xlu0 %v2178, 64
    %v2181 = vpop.permute.xlu0 %2180
    %v2183 = vadd.f32 %v2177, %v2181
    %v2184 = vtanh.pop %v2183
    %v2185 = vmul.f32 %v2176, %v2184
    %2187 = vrot.lane.b32.xlu0 %v2185, 64
    %v2188 = vpop.permute.xlu0 %2187
    %2190 = vst.msk [vmem:[#allocation4] sm:$0x3] %vm366, %v2188
    %v2191 = vld [vmem:[#allocation4] sm:$0x1]
    %vm2192 = vcmask 253952
    %2193 = vst.msk [vmem:[#allocation5] sm:$0x1] %vm2192, %v2191
    %v2194 = vld [vmem:[#allocation4 + $0x1] sm:$0x1]
    %2196 = vrot.lane.b32.xlu0 %v2194, 32
    %v2197 = vpop.permute.xlu0 %2196
    %vm2199 = vcmask 516352
    %2200 = vst.msk [vmem:[#allocation5] sm:$0x1] %vm2199, %v2197
    %v2201 = vld [vmem:[#allocation4] sm:$0x1]
    %2203 = vrot.lane.b32.xlu0 %v2201, 96
    %v2204 = vpop.permute.xlu0 %2203
    %2206 = vst.msk [vmem:[#allocation5 + $0x1] sm:$0x1] %vm2192, %v2204
    %v2207 = vld [vmem:[#allocation4 + $0x1] sm:$0x1]
    %2208 = vst.msk [vmem:[#allocation5 + $0x1] sm:$0x1] %vm2199, %v2207
    %v2209 = vld [vmem:[#allocation5] sm:$0x3]
    %v2210 = vld [vmem:[%s9] sm:$0xff]
    %v2211 = vld [vmem:[%s9 + $0x8] sm:$0xff]
    %v2212 = vld [vmem:[%s9 + $0x10] sm:$0xff]
    %v2213 = vld [vmem:[%s9 + $0x18] sm:$0xff]
    %v2214 = vld [vmem:[%s9 + $0x20] sm:$0xff]
    %v2215 = vld [vmem:[%s9 + $0x28] sm:$0xff]
    %v2216 = vld [vmem:[%s9 + $0x30] sm:$0xff]
    %v2217 = vld [vmem:[%s9 + $0x38] sm:$0xff]
    %v2218 = vld [vmem:[%s10] sm:$0x1]
    %v2220 = vperm.slane %v2218, 0
    %v2223 = vsel %vm270, %v2209, 0
    %2225 = vmatpush.msra.mxu0 0.0
    %2226 = vmatpush.msra.mxu0 0.0
    %2227 = vmatpush.msra.mxu0 0.0
    %2228 = vmatpush.msra.mxu0 0.0
    %2229 = vmatpush.msra.mxu0 0.0
    %2230 = vmatpush.msra.mxu0 0.0
    %2231 = vmatpush.msra.mxu0 0.0
    %2232 = vmatpush.msra.mxu0 0.0
    %2233 = vmatpush.msra.mxu0 %v2217
    %2234 = vmatpush.msra.mxu0 %v2216
    %2235 = vmatpush.msra.mxu0 %v2215
    %2236 = vmatpush.msra.mxu0 %v2214
    %2237 = vmatpush.msra.mxu0 %v2213
    %2238 = vmatpush.msra.mxu0 %v2212
    %2239 = vmatpush.msra.mxu0 %v2211
    %2240 = vmatpush.msra.mxu0 %v2210
    %2241 = vmatmul.f32.gmra.mxu0 %v2223
    %v2242 = vpop.f32.mrf.mxu0
    %v2243 = vadd.f32 %v2220, %v2242
    %2244 = vdwg.mxu0
    %vm2245 = vcmp.gt.f32.partialorder %v2243, 0.0
    %v2246 = vmul.f32 %v2243, 0.01
    %v2247 = vsel %vm2245, %v2243, %v2246
    %v2248 = vld [vmem:[%s11] sm:$0xff]
    %v2249 = vld [vmem:[%s11 + $0x8] sm:$0xff]
    %v2250 = vld [vmem:[%s11 + $0x10] sm:$0xff]
    %v2251 = vld [vmem:[%s11 + $0x18] sm:$0xff]
    %v2252 = vld [vmem:[%s12] sm:$0x1]
    %v2254 = vperm.slane %v2252, 0
    %vm2256 = vcmask 261120
    %v2258 = vsel %vm2256, %v2247, 0
    %2260 = vmatpush.msra.mxu0 0.0
    %2261 = vmatpush.msra.mxu0 0.0
    %2262 = vmatpush.msra.mxu0 0.0
    %2263 = vmatpush.msra.mxu0 0.0
    %2264 = vmatpush.msra.mxu0 0.0
    %2265 = vmatpush.msra.mxu0 0.0
    %2266 = vmatpush.msra.mxu0 0.0
    %2267 = vmatpush.msra.mxu0 0.0
    %2268 = vmatpush.msra.mxu0 0.0
    %2269 = vmatpush.msra.mxu0 0.0
    %2270 = vmatpush.msra.mxu0 0.0
    %2271 = vmatpush.msra.mxu0 0.0
    %2272 = vmatpush.msra.mxu0 %v2251
    %2273 = vmatpush.msra.mxu0 %v2250
    %2274 = vmatpush.msra.mxu0 %v2249
    %2275 = vmatpush.msra.mxu0 %v2248
    %2276 = vmatmul.f32.gmra.mxu0 %v2258
    %v2277 = vpop.f32.mrf.mxu0
    %v2278 = vadd.f32 %v2254, %v2277
    %2279 = vdwg.mxu0
    %vm2280 = vcmask 25600
    %2281 = vst.msk [vmem:[#allocation14] sm:$0x3] %vm2280, %v2278
    // Predicated region
    $region70: #{lstm_model_forward.1} parent=1 // pred_check
      _
    $region71: #{lstm_model_forward.1} parent=1 // pred_check_branch
      %2283 = sbr.rel (0) target = $region73
    $region72: #{lstm_model_forward.1} parent=1 // pred_region
      %2285 = vsyncadd [#allocation8], 0
      %s2287 = sshll.u32 [#allocation14], 4
      %s2288 = int_to_ptr.vmem [resolvable:$true] %s2287
      %s2289 = sshll.u32 %s13, 4
      %s2290 = int_to_ptr.hbm [resolvable:$true] %s2289
      %2292 = dma.vmem_to_hbm [thread:$0]  %s2288, 32, %s2290, [#allocation8]
    $region73: #{lstm_model_forward.1} parent=1 // pred_fallthru
      _
    // Predicated region
    $region74: #{lstm_model_forward.1} parent=1 // pred_check
      _
    $region75: #{lstm_model_forward.1} parent=1 // pred_check_branch
      %2294 = sbr.rel (0) target = $region77
    $region76: #{lstm_model_forward.1} parent=1 // pred_region
      %2296 = dma.done [#allocation8], 32
    $region77: #{lstm_model_forward.1} parent=1 // pred_fallthru
      _
    %2297 = vsyncpa [#allocation7], 1
    %2298 = vsyncpa [#allocation10], 1
    %2299 = vsyncpa [#allocation13], 1
    %2300 = vsyncpa [#allocation8], 1

</llo_original>
